<compile_context>
chip_gen: v5e
topology: v5e:2x2
jax: 0.10.0
libtpu: 0.0.40
codegen_flags: <defaults>
</compile_context>

<pallas_src>
import math
import functools

import jax
import jax.numpy as jnp
from jax.experimental import pallas as pl
from jax.experimental.pallas import tpu as pltpu


def _layernorm(x, w, b, eps=1e-5):
    mu = jnp.mean(x, axis=-1, keepdims=True)
    var = jnp.mean((x - mu) ** 2, axis=-1, keepdims=True)
    return (x - mu) * jax.lax.rsqrt(var + eps) * w + b


def _softmax(x):
    m = jnp.max(x, axis=-1, keepdims=True)
    e = jnp.exp(x - m)
    return e * pl.reciprocal(jnp.sum(e, axis=-1, keepdims=True), approx=True)


def _mxu(a_f32, w_bf16):
    # Cast activations to bf16 only at the MXU boundary; accumulate in f32.
    return jnp.dot(a_f32.astype(jnp.bfloat16), w_bf16,
                   preferred_element_type=jnp.float32)


def transformer_kernel(num_layers, num_heads,
                       x_ref, pe_ref,
                       projw_ref, projb_ref, tlnw_ref, tlnb_ref,
                       wq_ref, bq_ref, wk_ref, bk_ref, wv_ref, bv_ref,
                       wo_ref, bo_ref, ln1w_ref, ln1b_ref,
                       w1_ref, b1_ref, w2_ref, b2_ref, ln2w_ref, ln2b_ref,
                       hw1_ref, hb1_ref, hw2_ref, hb2_ref,
                       out_ref):
    E = projw_ref.shape[1]
    dh = E // num_heads

    # ---- Tokenizer: Linear(H*W -> E) + LayerNorm + positional encoding ----
    x2d = x_ref[0]                                       # (C, H*W) for this batch element
    h = jnp.dot(x2d, projw_ref[...],
                preferred_element_type=jnp.float32) + projb_ref[...]
    h = _layernorm(h, tlnw_ref[...], tlnb_ref[...])
    h = h + pe_ref[...]                                  # (C, E)

    def split_heads(t):                                  # (C, E) -> (nh, C, dh)
        return jnp.stack(
            [t[:, hh * dh:(hh + 1) * dh] for hh in range(num_heads)], axis=0)

    # ---- Post-norm transformer encoder layers ----
    for l in range(num_layers):
        # q/k/v: three single 2D MXU matmuls; 1/sqrt(dh) folded into wq/bq on host.
        q = split_heads(_mxu(h, wq_ref[l]) + bq_ref[l])
        k = split_heads(_mxu(h, wk_ref[l]) + bk_ref[l])
        v = split_heads(_mxu(h, wv_ref[l]) + bv_ref[l])

        # All heads at once: head is the batch axis of the dot_generals.
        s = jnp.einsum('hqd,hkd->hqk', q, k, preferred_element_type=jnp.float32)
        p = _softmax(s)
        o = jnp.einsum('hqk,hkd->hqd', p, v, preferred_element_type=jnp.float32)

        # Output projection: weight stored head-major (nh, dh, E); each term is
        # a clean 2D dot on a major-axis index (no lane slicing), summed in f32.
        wo_l = wo_ref[l]
        attn = sum(_mxu(o[hh], wo_l[hh]) for hh in range(num_heads)) + bo_ref[l]
        h = _layernorm(h + attn, ln1w_ref[l], ln1b_ref[l])

        # Feed-forward (relu); dropout is identity at inference.
        ff = jnp.maximum(_mxu(h, w1_ref[l]) + b1_ref[l], 0.0)
        ff = _mxu(ff, w2_ref[l]) + b2_ref[l]
        h = _layernorm(h + ff, ln2w_ref[l], ln2b_ref[l])

    # ---- Mean pool over tokens + classification head (lane-padded to 128) ----
    pooled = jnp.mean(h, axis=0, keepdims=True)          # (1, E)
    y = jnp.dot(pooled, hw1_ref[...],
                preferred_element_type=jnp.float32) + hb1_ref[...]
    y = jnp.maximum(y, 0.0)                              # Dropout(0.2) identity at inference
    y = jnp.dot(y, hw2_ref[...],
                preferred_element_type=jnp.float32) + hb2_ref[...]
    out_ref[0] = y                                       # (1, 128); sliced to 2 outside


def sinusoidal_pe(C, E):
    position = jnp.arange(C, dtype=jnp.float32)[:, None]
    div_term = jnp.exp(jnp.arange(0, E, 2, dtype=jnp.float32)
                       * (-math.log(10000.0) / E))
    angles = position * div_term                         # (C, E/2)
    pe = jnp.zeros((C, E), jnp.float32)
    pe = pe.at[:, 0::2].set(jnp.sin(angles))
    pe = pe.at[:, 1::2].set(jnp.cos(angles))
    return pe                                            # (C, E)


def init_torch_style_params(key, C, H, W, E, L, F):
    """PyTorch-layout parameters (same shapes as the module's state_dict)."""
    ks = iter(jax.random.split(key, 20))
    n = lambda shape, s=0.02: (s * jax.random.normal(next(ks), shape)).astype(jnp.float32)
    return dict(
        proj_w=n((E, H * W)), proj_b=n((E,)),
        tok_ln_w=jnp.ones((E,), jnp.float32), tok_ln_b=jnp.zeros((E,), jnp.float32),
        ipw=n((L, 3 * E, E)), ipb=n((L, 3 * E)),
        opw=n((L, E, E)), opb=n((L, E)),
        l1w=n((L, F, E)), l1b=n((L, F)),
        l2w=n((L, E, F)), l2b=n((L, E)),
        ln1w=jnp.ones((L, E), jnp.float32), ln1b=jnp.zeros((L, E), jnp.float32),
        ln2w=jnp.ones((L, E), jnp.float32), ln2b=jnp.zeros((L, E), jnp.float32),
        hw1=n((128, E)), hb1=n((128,)),
        hw2=n((2, 128)), hb2=n((2,)),
    )


def prepare_kernel_params(p, num_heads, C):
    """Host-side re-layout: transpose for right-multiply, split qkv on a major
    axis, fold 1/sqrt(dh) into Wq/bq, head-major out-proj, bf16 MXU weights,
    lane-padded classifier head."""
    E = p['proj_w'].shape[0]
    L = p['ipw'].shape[0]
    dh = E // num_heads
    scale = 1.0 / math.sqrt(dh)
    bf16 = jnp.bfloat16

    ipw, ipb = p['ipw'], p['ipb']                        # (L, 3E, E), (L, 3E)
    wq = jnp.swapaxes(ipw[:, :E, :], 1, 2) * scale       # (L, E, E), scale folded
    wk = jnp.swapaxes(ipw[:, E:2 * E, :], 1, 2)
    wv = jnp.swapaxes(ipw[:, 2 * E:, :], 1, 2)
    bq = ipb[:, None, :E] * scale                        # (L, 1, E)
    bk = ipb[:, None, E:2 * E]
    bv = ipb[:, None, 2 * E:]

    # Out-projection weight head-major: (L, nh, dh, E).
    wo = jnp.swapaxes(p['opw'], 1, 2).reshape(L, num_heads, dh, E)

    n_cls = p['hw2'].shape[0]
    hw2p = jnp.zeros((128, 128), jnp.float32).at[:, :n_cls].set(p['hw2'].T)
    hb2p = jnp.zeros((1, 128), jnp.float32).at[0, :n_cls].set(p['hb2'])

    return dict(
        pe=sinusoidal_pe(C, E),
        projw=p['proj_w'].T, projb=p['proj_b'][None, :],
        tlnw=p['tok_ln_w'][None, :], tlnb=p['tok_ln_b'][None, :],
        wq=wq.astype(bf16), bq=bq,
        wk=wk.astype(bf16), bk=bk,
        wv=wv.astype(bf16), bv=bv,
        wo=wo.astype(bf16), bo=p['opb'][:, None, :],
        ln1w=p['ln1w'][:, None, :], ln1b=p['ln1b'][:, None, :],
        w1=jnp.swapaxes(p['l1w'], 1, 2).astype(bf16), b1=p['l1b'][:, None, :],
        w2=jnp.swapaxes(p['l2w'], 1, 2).astype(bf16), b2=p['l2b'][:, None, :],
        ln2w=p['ln2w'][:, None, :], ln2b=p['ln2b'][:, None, :],
        hw1=p['hw1'].T, hb1=p['hb1'][None, :],
        hw2=hw2p, hb2=hb2p,
    )


def custom_transformer_encoder(x, torch_params, num_heads, num_layers):
    B, C, H, W = x.shape
    HW = H * W
    E = torch_params['proj_w'].shape[0]
    F = torch_params['l1w'].shape[1]
    assert E % num_heads == 0

    kp = prepare_kernel_params(torch_params, num_heads, C)
    x_blocks = x.reshape(B, C, HW).astype(jnp.float32)

    order = ['pe', 'projw', 'projb', 'tlnw', 'tlnb',
             'wq', 'bq', 'wk', 'bk', 'wv', 'bv', 'wo', 'bo',
             'ln1w', 'ln1b', 'w1', 'b1', 'w2', 'b2', 'ln2w', 'ln2b',
             'hw1', 'hb1', 'hw2', 'hb2']
    args = [x_blocks] + [kp[k] for k in order]

    # Whole-array resident blocks (constant index_map => no re-DMA across steps).
    zero_maps = {2: lambda i: (0, 0),
                 3: lambda i: (0, 0, 0),
                 4: lambda i: (0, 0, 0, 0)}
    in_specs = [pl.BlockSpec((1, C, HW), lambda i: (i, 0, 0))]
    in_specs += [pl.BlockSpec(a.shape, zero_maps[a.ndim]) for a in args[1:]]
    out_spec = pl.BlockSpec((1, 1, 128), lambda i: (i, 0, 0))

    # Advisory cost estimate so XLA can overlap this latency-bound call.
    dh = E // num_heads
    flops = 2 * B * C * HW * E + 2 * B * E * 128 + 2 * B * 128 * 128
    flops += num_layers * (4 * 2 * B * C * E * E
                           + 2 * 2 * B * num_heads * C * C * dh
                           + 2 * 2 * B * C * E * F)
    transcendentals = num_layers * B * num_heads * C * C + B * C * E
    bytes_accessed = sum(int(a.size) * a.dtype.itemsize for a in args) + B * 128 * 4

    kernel = functools.partial(transformer_kernel, num_layers, num_heads)
    out = pl.pallas_call(
        kernel,
        out_shape=jax.ShapeDtypeStruct((B, 1, 128), jnp.float32),
        grid=(B,),
        in_specs=in_specs,
        out_specs=out_spec,
        compiler_params=pltpu.CompilerParams(
            dimension_semantics=("parallel",)),
        cost_estimate=pl.CostEstimate(flops=int(flops),
                                      transcendentals=int(transcendentals),
                                      bytes_accessed=int(bytes_accessed)),
    )(*args)
    return out.reshape(B, 128)[:, :2]


if __name__ == "__main__":
    # Small shapes consistent with the module's forward.
    B, C, H, W = 2, 4, 16, 16
    embed_dim, num_heads, num_layers = 32, 4, 2
    ffn = 2048  # nn.TransformerEncoderLayer default dim_feedforward

    key = jax.random.PRNGKey(0)
    kx, kp = jax.random.split(key)
    x = jax.random.normal(kx, (B, C, H, W), dtype=jnp.float32)
    params = init_torch_style_params(kp, C, H, W, embed_dim, num_layers, ffn)

    out = custom_transformer_encoder(x, params, num_heads, num_layers)
    out = jax.block_until_ready(out)
    assert out.shape == (B, 2) and out.dtype == jnp.float32
    print("KERNEL_OK")
</pallas_src>

<mosaic_0001>
module attributes {stable_mosaic.version = 11 : i64} {
  func.func @transformer_kernel(%arg0: i32, %arg1: memref<1x4x256xf32, #tpu.memory_space<vmem>>, %arg2: memref<4x32xf32, #tpu.memory_space<vmem>>, %arg3: memref<256x32xf32, #tpu.memory_space<vmem>>, %arg4: memref<1x32xf32, #tpu.memory_space<vmem>>, %arg5: memref<1x32xf32, #tpu.memory_space<vmem>>, %arg6: memref<1x32xf32, #tpu.memory_space<vmem>>, %arg7: memref<2x32x32xbf16, #tpu.memory_space<vmem>>, %arg8: memref<2x1x32xf32, #tpu.memory_space<vmem>>, %arg9: memref<2x32x32xbf16, #tpu.memory_space<vmem>>, %arg10: memref<2x1x32xf32, #tpu.memory_space<vmem>>, %arg11: memref<2x32x32xbf16, #tpu.memory_space<vmem>>, %arg12: memref<2x1x32xf32, #tpu.memory_space<vmem>>, %arg13: memref<2x4x8x32xbf16, #tpu.memory_space<vmem>>, %arg14: memref<2x1x32xf32, #tpu.memory_space<vmem>>, %arg15: memref<2x1x32xf32, #tpu.memory_space<vmem>>, %arg16: memref<2x1x32xf32, #tpu.memory_space<vmem>>, %arg17: memref<2x32x2048xbf16, #tpu.memory_space<vmem>>, %arg18: memref<2x1x2048xf32, #tpu.memory_space<vmem>>, %arg19: memref<2x2048x32xbf16, #tpu.memory_space<vmem>>, %arg20: memref<2x1x32xf32, #tpu.memory_space<vmem>>, %arg21: memref<2x1x32xf32, #tpu.memory_space<vmem>>, %arg22: memref<2x1x32xf32, #tpu.memory_space<vmem>>, %arg23: memref<32x128xf32, #tpu.memory_space<vmem>>, %arg24: memref<1x128xf32, #tpu.memory_space<vmem>>, %arg25: memref<128x128xf32, #tpu.memory_space<vmem>>, %arg26: memref<1x128xf32, #tpu.memory_space<vmem>>, %arg27: memref<1x1x128xf32, #tpu.memory_space<vmem>>) attributes {dimension_semantics = [#tpu.dimension_semantics<parallel>], iteration_bounds = array<i64: 2>, scalar_prefetch = 0 : i64, scratch_operands = 0 : i64, tpu.core_type = #tpu.core_type<tc>, window_params = [{transform_indices = @transform_0, window_bounds = array<i64: 1, 4, 256>}, {pipeline_mode = #tpu.pipeline_mode<synchronous>, transform_indices = @transform_1, window_bounds = array<i64: 4, 32>}, {pipeline_mode = #tpu.pipeline_mode<synchronous>, transform_indices = @transform_2, window_bounds = array<i64: 256, 32>}, {pipeline_mode = #tpu.pipeline_mode<synchronous>, transform_indices = @transform_3, window_bounds = array<i64: 1, 32>}, {pipeline_mode = #tpu.pipeline_mode<synchronous>, transform_indices = @transform_4, window_bounds = array<i64: 1, 32>}, {pipeline_mode = #tpu.pipeline_mode<synchronous>, transform_indices = @transform_5, window_bounds = array<i64: 1, 32>}, {pipeline_mode = #tpu.pipeline_mode<synchronous>, transform_indices = @transform_6, window_bounds = array<i64: 2, 32, 32>}, {pipeline_mode = #tpu.pipeline_mode<synchronous>, transform_indices = @transform_7, window_bounds = array<i64: 2, 1, 32>}, {pipeline_mode = #tpu.pipeline_mode<synchronous>, transform_indices = @transform_8, window_bounds = array<i64: 2, 32, 32>}, {pipeline_mode = #tpu.pipeline_mode<synchronous>, transform_indices = @transform_9, window_bounds = array<i64: 2, 1, 32>}, {pipeline_mode = #tpu.pipeline_mode<synchronous>, transform_indices = @transform_10, window_bounds = array<i64: 2, 32, 32>}, {pipeline_mode = #tpu.pipeline_mode<synchronous>, transform_indices = @transform_11, window_bounds = array<i64: 2, 1, 32>}, {pipeline_mode = #tpu.pipeline_mode<synchronous>, transform_indices = @transform_12, window_bounds = array<i64: 2, 4, 8, 32>}, {pipeline_mode = #tpu.pipeline_mode<synchronous>, transform_indices = @transform_13, window_bounds = array<i64: 2, 1, 32>}, {pipeline_mode = #tpu.pipeline_mode<synchronous>, transform_indices = @transform_14, window_bounds = array<i64: 2, 1, 32>}, {pipeline_mode = #tpu.pipeline_mode<synchronous>, transform_indices = @transform_15, window_bounds = array<i64: 2, 1, 32>}, {pipeline_mode = #tpu.pipeline_mode<synchronous>, transform_indices = @transform_16, window_bounds = array<i64: 2, 32, 2048>}, {pipeline_mode = #tpu.pipeline_mode<synchronous>, transform_indices = @transform_17, window_bounds = array<i64: 2, 1, 2048>}, {pipeline_mode = #tpu.pipeline_mode<synchronous>, transform_indices = @transform_18, window_bounds = array<i64: 2, 2048, 32>}, {pipeline_mode = #tpu.pipeline_mode<synchronous>, transform_indices = @transform_19, window_bounds = array<i64: 2, 1, 32>}, {pipeline_mode = #tpu.pipeline_mode<synchronous>, transform_indices = @transform_20, window_bounds = array<i64: 2, 1, 32>}, {pipeline_mode = #tpu.pipeline_mode<synchronous>, transform_indices = @transform_21, window_bounds = array<i64: 2, 1, 32>}, {pipeline_mode = #tpu.pipeline_mode<synchronous>, transform_indices = @transform_22, window_bounds = array<i64: 32, 128>}, {pipeline_mode = #tpu.pipeline_mode<synchronous>, transform_indices = @transform_23, window_bounds = array<i64: 1, 128>}, {pipeline_mode = #tpu.pipeline_mode<synchronous>, transform_indices = @transform_24, window_bounds = array<i64: 128, 128>}, {pipeline_mode = #tpu.pipeline_mode<synchronous>, transform_indices = @transform_25, window_bounds = array<i64: 1, 128>}, {transform_indices = @transform_26, window_bounds = array<i64: 1, 1, 128>}]} {
    %c0 = arith.constant 0 : index
    %c0_0 = arith.constant 0 : index
    %c0_1 = arith.constant 0 : index
    %0 = vector.load %arg1[%c0, %c0_0, %c0_1] : memref<1x4x256xf32, #tpu.memory_space<vmem>>, vector<1x4x256xf32>
    %1 = vector.shape_cast %0 : vector<1x4x256xf32> to vector<4x256xf32>
    %c0_2 = arith.constant 0 : index
    %c0_3 = arith.constant 0 : index
    %2 = vector.load %arg3[%c0_2, %c0_3] : memref<256x32xf32, #tpu.memory_space<vmem>>, vector<256x32xf32>
    %cst = arith.constant dense<0.000000e+00> : vector<4x32xf32>
    %3 = tpu.matmul %1, %2, %cst {dimension_numbers = #tpu.dot_dimension_numbers<[1], [0], [0], [1], [0, 0, 1, 1], [], []>} : vector<4x256xf32>, vector<256x32xf32>, vector<4x32xf32> -> vector<4x32xf32>
    %c0_4 = arith.constant 0 : index
    %c0_5 = arith.constant 0 : index
    %4 = vector.load %arg4[%c0_4, %c0_5] : memref<1x32xf32, #tpu.memory_space<vmem>>, vector<1x32xf32>
    %5 = vector.broadcast %4 : vector<1x32xf32> to vector<4x32xf32>
    %6 = arith.addf %3, %5 : vector<4x32xf32>
    %c0_6 = arith.constant 0 : index
    %c0_7 = arith.constant 0 : index
    %7 = vector.load %arg5[%c0_6, %c0_7] : memref<1x32xf32, #tpu.memory_space<vmem>>, vector<1x32xf32>
    %c0_8 = arith.constant 0 : index
    %c0_9 = arith.constant 0 : index
    %8 = vector.load %arg6[%c0_8, %c0_9] : memref<1x32xf32, #tpu.memory_space<vmem>>, vector<1x32xf32>
    %cst_10 = arith.constant dense<0.000000e+00> : vector<4xf32>
    %9 = vector.multi_reduction <add>, %6, %cst_10 [1] : vector<4x32xf32> to vector<4xf32>
    %10 = vector.shape_cast %9 : vector<4xf32> to vector<4x1xf32>
    %cst_11 = arith.constant 3.200000e+01 : f32
    %11 = vector.broadcast %cst_11 : f32 to vector<4x1xf32>
    %12 = arith.divf %10, %11 : vector<4x1xf32>
    %13 = vector.broadcast %12 : vector<4x1xf32> to vector<4x32xf32>
    %14 = arith.subf %6, %13 : vector<4x32xf32>
    %15 = arith.mulf %14, %14 : vector<4x32xf32>
    %cst_12 = arith.constant dense<0.000000e+00> : vector<4xf32>
    %16 = vector.multi_reduction <add>, %15, %cst_12 [1] : vector<4x32xf32> to vector<4xf32>
    %17 = vector.shape_cast %16 : vector<4xf32> to vector<4x1xf32>
    %cst_13 = arith.constant 3.200000e+01 : f32
    %18 = vector.broadcast %cst_13 : f32 to vector<4x1xf32>
    %19 = arith.divf %17, %18 : vector<4x1xf32>
    %20 = vector.broadcast %12 : vector<4x1xf32> to vector<4x32xf32>
    %21 = arith.subf %6, %20 : vector<4x32xf32>
    %cst_14 = arith.constant 9.99999974E-6 : f32
    %22 = vector.broadcast %cst_14 : f32 to vector<4x1xf32>
    %23 = arith.addf %19, %22 : vector<4x1xf32>
    %24 = math.rsqrt %23 : vector<4x1xf32>
    %25 = vector.broadcast %24 : vector<4x1xf32> to vector<4x32xf32>
    %26 = arith.mulf %21, %25 : vector<4x32xf32>
    %27 = vector.broadcast %7 : vector<1x32xf32> to vector<4x32xf32>
    %28 = arith.mulf %26, %27 : vector<4x32xf32>
    %29 = vector.broadcast %8 : vector<1x32xf32> to vector<4x32xf32>
    %30 = arith.addf %28, %29 : vector<4x32xf32>
    %c0_15 = arith.constant 0 : index
    %c0_16 = arith.constant 0 : index
    %31 = vector.load %arg2[%c0_15, %c0_16] : memref<4x32xf32, #tpu.memory_space<vmem>>, vector<4x32xf32>
    %32 = arith.addf %30, %31 : vector<4x32xf32>
    %c0_17 = arith.constant 0 : index
    %c0_18 = arith.constant 0 : index
    %c0_19 = arith.constant 0 : index
    %33 = vector.load %arg7[%c0_17, %c0_18, %c0_19] : memref<2x32x32xbf16, #tpu.memory_space<vmem>>, vector<1x32x32xbf16>
    %34 = vector.shape_cast %33 : vector<1x32x32xbf16> to vector<32x32xbf16>
    %35 = arith.truncf %32 : vector<4x32xf32> to vector<4x32xbf16>
    %cst_20 = arith.constant dense<0.000000e+00> : vector<4x32xf32>
    %36 = tpu.matmul %35, %34, %cst_20 {dimension_numbers = #tpu.dot_dimension_numbers<[1], [0], [0], [1], [0, 0, 1, 1], [], []>} : vector<4x32xbf16>, vector<32x32xbf16>, vector<4x32xf32> -> vector<4x32xf32>
    %c0_21 = arith.constant 0 : index
    %c0_22 = arith.constant 0 : index
    %c0_23 = arith.constant 0 : index
    %37 = vector.load %arg8[%c0_21, %c0_22, %c0_23] : memref<2x1x32xf32, #tpu.memory_space<vmem>>, vector<1x1x32xf32>
    %38 = vector.shape_cast %37 : vector<1x1x32xf32> to vector<1x32xf32>
    %39 = vector.broadcast %38 : vector<1x32xf32> to vector<4x32xf32>
    %40 = arith.addf %36, %39 : vector<4x32xf32>
    %41 = vector.extract_strided_slice %40 {offsets = [0, 0], sizes = [4, 8], strides = [1, 1]} : vector<4x32xf32> to vector<4x8xf32>
    %42 = vector.extract_strided_slice %40 {offsets = [0, 8], sizes = [4, 8], strides = [1, 1]} : vector<4x32xf32> to vector<4x8xf32>
    %43 = vector.extract_strided_slice %40 {offsets = [0, 16], sizes = [4, 8], strides = [1, 1]} : vector<4x32xf32> to vector<4x8xf32>
    %44 = vector.extract_strided_slice %40 {offsets = [0, 24], sizes = [4, 8], strides = [1, 1]} : vector<4x32xf32> to vector<4x8xf32>
    %45 = vector.shape_cast %41 : vector<4x8xf32> to vector<1x4x8xf32>
    %46 = vector.shape_cast %42 : vector<4x8xf32> to vector<1x4x8xf32>
    %47 = vector.shape_cast %43 : vector<4x8xf32> to vector<1x4x8xf32>
    %48 = vector.shape_cast %44 : vector<4x8xf32> to vector<1x4x8xf32>
    %49 = tpu.concatenate %45, %46, %47, %48 in 0 : vector<1x4x8xf32>, vector<1x4x8xf32>, vector<1x4x8xf32>, vector<1x4x8xf32> -> vector<4x4x8xf32>
    %c0_24 = arith.constant 0 : index
    %c0_25 = arith.constant 0 : index
    %c0_26 = arith.constant 0 : index
    %50 = vector.load %arg9[%c0_24, %c0_25, %c0_26] : memref<2x32x32xbf16, #tpu.memory_space<vmem>>, vector<1x32x32xbf16>
    %51 = vector.shape_cast %50 : vector<1x32x32xbf16> to vector<32x32xbf16>
    %52 = arith.truncf %32 : vector<4x32xf32> to vector<4x32xbf16>
    %cst_27 = arith.constant dense<0.000000e+00> : vector<4x32xf32>
    %53 = tpu.matmul %52, %51, %cst_27 {dimension_numbers = #tpu.dot_dimension_numbers<[1], [0], [0], [1], [0, 0, 1, 1], [], []>} : vector<4x32xbf16>, vector<32x32xbf16>, vector<4x32xf32> -> vector<4x32xf32>
    %c0_28 = arith.constant 0 : index
    %c0_29 = arith.constant 0 : index
    %c0_30 = arith.constant 0 : index
    %54 = vector.load %arg10[%c0_28, %c0_29, %c0_30] : memref<2x1x32xf32, #tpu.memory_space<vmem>>, vector<1x1x32xf32>
    %55 = vector.shape_cast %54 : vector<1x1x32xf32> to vector<1x32xf32>
    %56 = vector.broadcast %55 : vector<1x32xf32> to vector<4x32xf32>
    %57 = arith.addf %53, %56 : vector<4x32xf32>
    %58 = vector.extract_strided_slice %57 {offsets = [0, 0], sizes = [4, 8], strides = [1, 1]} : vector<4x32xf32> to vector<4x8xf32>
    %59 = vector.extract_strided_slice %57 {offsets = [0, 8], sizes = [4, 8], strides = [1, 1]} : vector<4x32xf32> to vector<4x8xf32>
    %60 = vector.extract_strided_slice %57 {offsets = [0, 16], sizes = [4, 8], strides = [1, 1]} : vector<4x32xf32> to vector<4x8xf32>
    %61 = vector.extract_strided_slice %57 {offsets = [0, 24], sizes = [4, 8], strides = [1, 1]} : vector<4x32xf32> to vector<4x8xf32>
    %62 = vector.shape_cast %58 : vector<4x8xf32> to vector<1x4x8xf32>
    %63 = vector.shape_cast %59 : vector<4x8xf32> to vector<1x4x8xf32>
    %64 = vector.shape_cast %60 : vector<4x8xf32> to vector<1x4x8xf32>
    %65 = vector.shape_cast %61 : vector<4x8xf32> to vector<1x4x8xf32>
    %66 = tpu.concatenate %62, %63, %64, %65 in 0 : vector<1x4x8xf32>, vector<1x4x8xf32>, vector<1x4x8xf32>, vector<1x4x8xf32> -> vector<4x4x8xf32>
    %c0_31 = arith.constant 0 : index
    %c0_32 = arith.constant 0 : index
    %c0_33 = arith.constant 0 : index
    %67 = vector.load %arg11[%c0_31, %c0_32, %c0_33] : memref<2x32x32xbf16, #tpu.memory_space<vmem>>, vector<1x32x32xbf16>
    %68 = vector.shape_cast %67 : vector<1x32x32xbf16> to vector<32x32xbf16>
    %69 = arith.truncf %32 : vector<4x32xf32> to vector<4x32xbf16>
    %cst_34 = arith.constant dense<0.000000e+00> : vector<4x32xf32>
    %70 = tpu.matmul %69, %68, %cst_34 {dimension_numbers = #tpu.dot_dimension_numbers<[1], [0], [0], [1], [0, 0, 1, 1], [], []>} : vector<4x32xbf16>, vector<32x32xbf16>, vector<4x32xf32> -> vector<4x32xf32>
    %c0_35 = arith.constant 0 : index
    %c0_36 = arith.constant 0 : index
    %c0_37 = arith.constant 0 : index
    %71 = vector.load %arg12[%c0_35, %c0_36, %c0_37] : memref<2x1x32xf32, #tpu.memory_space<vmem>>, vector<1x1x32xf32>
    %72 = vector.shape_cast %71 : vector<1x1x32xf32> to vector<1x32xf32>
    %73 = vector.broadcast %72 : vector<1x32xf32> to vector<4x32xf32>
    %74 = arith.addf %70, %73 : vector<4x32xf32>
    %75 = vector.extract_strided_slice %74 {offsets = [0, 0], sizes = [4, 8], strides = [1, 1]} : vector<4x32xf32> to vector<4x8xf32>
    %76 = vector.extract_strided_slice %74 {offsets = [0, 8], sizes = [4, 8], strides = [1, 1]} : vector<4x32xf32> to vector<4x8xf32>
    %77 = vector.extract_strided_slice %74 {offsets = [0, 16], sizes = [4, 8], strides = [1, 1]} : vector<4x32xf32> to vector<4x8xf32>
    %78 = vector.extract_strided_slice %74 {offsets = [0, 24], sizes = [4, 8], strides = [1, 1]} : vector<4x32xf32> to vector<4x8xf32>
    %79 = vector.shape_cast %75 : vector<4x8xf32> to vector<1x4x8xf32>
    %80 = vector.shape_cast %76 : vector<4x8xf32> to vector<1x4x8xf32>
    %81 = vector.shape_cast %77 : vector<4x8xf32> to vector<1x4x8xf32>
    %82 = vector.shape_cast %78 : vector<4x8xf32> to vector<1x4x8xf32>
    %83 = tpu.concatenate %79, %80, %81, %82 in 0 : vector<1x4x8xf32>, vector<1x4x8xf32>, vector<1x4x8xf32>, vector<1x4x8xf32> -> vector<4x4x8xf32>
    "tpu.trace_start"() <{level = 10 : i32, message = "hqd,hkd->hqk"}> : () -> ()
    %cst_38 = arith.constant dense<0.000000e+00> : vector<4x4x4xf32>
    %84 = tpu.matmul %49, %66, %cst_38 {dimension_numbers = #tpu.dot_dimension_numbers<[2], [2], [1], [1], [0, 0, 0, 1, 1, 1], [0], [0]>} : vector<4x4x8xf32>, vector<4x4x8xf32>, vector<4x4x4xf32> -> vector<4x4x4xf32>
    "tpu.trace_stop"() : () -> ()
    %cst_39 = arith.constant dense<0xFF800000> : vector<4x4xf32>
    %85 = vector.multi_reduction <maximumf>, %84, %cst_39 [2] : vector<4x4x4xf32> to vector<4x4xf32>
    %86 = vector.shape_cast %85 : vector<4x4xf32> to vector<4x4x1xf32>
    %87 = vector.broadcast %86 : vector<4x4x1xf32> to vector<4x4x4xf32>
    %88 = arith.subf %84, %87 : vector<4x4x4xf32>
    %89 = math.exp %88 : vector<4x4x4xf32>
    %cst_40 = arith.constant dense<0.000000e+00> : vector<4x4xf32>
    %90 = vector.multi_reduction <add>, %89, %cst_40 [2] : vector<4x4x4xf32> to vector<4x4xf32>
    %91 = vector.shape_cast %90 : vector<4x4xf32> to vector<4x4x1xf32>
    %92 = tpu.reciprocal %91 {approx = true} : vector<4x4x1xf32> -> vector<4x4x1xf32>
    %93 = vector.broadcast %92 : vector<4x4x1xf32> to vector<4x4x4xf32>
    %94 = arith.mulf %89, %93 : vector<4x4x4xf32>
    "tpu.trace_start"() <{level = 10 : i32, message = "hqk,hkd->hqd"}> : () -> ()
    %cst_41 = arith.constant dense<0.000000e+00> : vector<4x4x8xf32>
    %95 = tpu.matmul %94, %83, %cst_41 {dimension_numbers = #tpu.dot_dimension_numbers<[2], [1], [1], [2], [0, 0, 0, 1, 1, 2], [0], [0]>} : vector<4x4x4xf32>, vector<4x4x8xf32>, vector<4x4x8xf32> -> vector<4x4x8xf32>
    "tpu.trace_stop"() : () -> ()
    %c0_42 = arith.constant 0 : index
    %c0_43 = arith.constant 0 : index
    %c0_44 = arith.constant 0 : index
    %c0_45 = arith.constant 0 : index
    %96 = vector.load %arg13[%c0_42, %c0_43, %c0_44, %c0_45] : memref<2x4x8x32xbf16, #tpu.memory_space<vmem>>, vector<1x4x8x32xbf16>
    %97 = vector.shape_cast %96 : vector<1x4x8x32xbf16> to vector<4x8x32xbf16>
    %98 = vector.extract_strided_slice %95 {offsets = [0, 0, 0], sizes = [1, 4, 8], strides = [1, 1, 1]} : vector<4x4x8xf32> to vector<1x4x8xf32>
    %99 = vector.shape_cast %98 : vector<1x4x8xf32> to vector<4x8xf32>
    %100 = vector.extract_strided_slice %97 {offsets = [0, 0, 0], sizes = [1, 8, 32], strides = [1, 1, 1]} : vector<4x8x32xbf16> to vector<1x8x32xbf16>
    %101 = vector.shape_cast %100 : vector<1x8x32xbf16> to vector<8x32xbf16>
    %102 = arith.truncf %99 : vector<4x8xf32> to vector<4x8xbf16>
    %cst_46 = arith.constant dense<0.000000e+00> : vector<4x32xf32>
    %103 = tpu.matmul %102, %101, %cst_46 {dimension_numbers = #tpu.dot_dimension_numbers<[1], [0], [0], [1], [0, 0, 1, 1], [], []>} : vector<4x8xbf16>, vector<8x32xbf16>, vector<4x32xf32> -> vector<4x32xf32>
    %cst_47 = arith.constant 0.000000e+00 : f32
    %104 = vector.broadcast %cst_47 : f32 to vector<4x32xf32>
    %105 = arith.addf %104, %103 : vector<4x32xf32>
    %106 = vector.extract_strided_slice %95 {offsets = [1, 0, 0], sizes = [1, 4, 8], strides = [1, 1, 1]} : vector<4x4x8xf32> to vector<1x4x8xf32>
    %107 = vector.shape_cast %106 : vector<1x4x8xf32> to vector<4x8xf32>
    %108 = vector.extract_strided_slice %97 {offsets = [1, 0, 0], sizes = [1, 8, 32], strides = [1, 1, 1]} : vector<4x8x32xbf16> to vector<1x8x32xbf16>
    %109 = vector.shape_cast %108 : vector<1x8x32xbf16> to vector<8x32xbf16>
    %110 = arith.truncf %107 : vector<4x8xf32> to vector<4x8xbf16>
    %cst_48 = arith.constant dense<0.000000e+00> : vector<4x32xf32>
    %111 = tpu.matmul %110, %109, %cst_48 {dimension_numbers = #tpu.dot_dimension_numbers<[1], [0], [0], [1], [0, 0, 1, 1], [], []>} : vector<4x8xbf16>, vector<8x32xbf16>, vector<4x32xf32> -> vector<4x32xf32>
    %112 = arith.addf %105, %111 : vector<4x32xf32>
    %113 = vector.extract_strided_slice %95 {offsets = [2, 0, 0], sizes = [1, 4, 8], strides = [1, 1, 1]} : vector<4x4x8xf32> to vector<1x4x8xf32>
    %114 = vector.shape_cast %113 : vector<1x4x8xf32> to vector<4x8xf32>
    %115 = vector.extract_strided_slice %97 {offsets = [2, 0, 0], sizes = [1, 8, 32], strides = [1, 1, 1]} : vector<4x8x32xbf16> to vector<1x8x32xbf16>
    %116 = vector.shape_cast %115 : vector<1x8x32xbf16> to vector<8x32xbf16>
    %117 = arith.truncf %114 : vector<4x8xf32> to vector<4x8xbf16>
    %cst_49 = arith.constant dense<0.000000e+00> : vector<4x32xf32>
    %118 = tpu.matmul %117, %116, %cst_49 {dimension_numbers = #tpu.dot_dimension_numbers<[1], [0], [0], [1], [0, 0, 1, 1], [], []>} : vector<4x8xbf16>, vector<8x32xbf16>, vector<4x32xf32> -> vector<4x32xf32>
    %119 = arith.addf %112, %118 : vector<4x32xf32>
    %120 = vector.extract_strided_slice %95 {offsets = [3, 0, 0], sizes = [1, 4, 8], strides = [1, 1, 1]} : vector<4x4x8xf32> to vector<1x4x8xf32>
    %121 = vector.shape_cast %120 : vector<1x4x8xf32> to vector<4x8xf32>
    %122 = vector.extract_strided_slice %97 {offsets = [3, 0, 0], sizes = [1, 8, 32], strides = [1, 1, 1]} : vector<4x8x32xbf16> to vector<1x8x32xbf16>
    %123 = vector.shape_cast %122 : vector<1x8x32xbf16> to vector<8x32xbf16>
    %124 = arith.truncf %121 : vector<4x8xf32> to vector<4x8xbf16>
    %cst_50 = arith.constant dense<0.000000e+00> : vector<4x32xf32>
    %125 = tpu.matmul %124, %123, %cst_50 {dimension_numbers = #tpu.dot_dimension_numbers<[1], [0], [0], [1], [0, 0, 1, 1], [], []>} : vector<4x8xbf16>, vector<8x32xbf16>, vector<4x32xf32> -> vector<4x32xf32>
    %126 = arith.addf %119, %125 : vector<4x32xf32>
    %c0_51 = arith.constant 0 : index
    %c0_52 = arith.constant 0 : index
    %c0_53 = arith.constant 0 : index
    %127 = vector.load %arg14[%c0_51, %c0_52, %c0_53] : memref<2x1x32xf32, #tpu.memory_space<vmem>>, vector<1x1x32xf32>
    %128 = vector.shape_cast %127 : vector<1x1x32xf32> to vector<1x32xf32>
    %129 = vector.broadcast %128 : vector<1x32xf32> to vector<4x32xf32>
    %130 = arith.addf %126, %129 : vector<4x32xf32>
    %131 = arith.addf %32, %130 : vector<4x32xf32>
    %c0_54 = arith.constant 0 : index
    %c0_55 = arith.constant 0 : index
    %c0_56 = arith.constant 0 : index
    %132 = vector.load %arg15[%c0_54, %c0_55, %c0_56] : memref<2x1x32xf32, #tpu.memory_space<vmem>>, vector<1x1x32xf32>
    %133 = vector.shape_cast %132 : vector<1x1x32xf32> to vector<1x32xf32>
    %c0_57 = arith.constant 0 : index
    %c0_58 = arith.constant 0 : index
    %c0_59 = arith.constant 0 : index
    %134 = vector.load %arg16[%c0_57, %c0_58, %c0_59] : memref<2x1x32xf32, #tpu.memory_space<vmem>>, vector<1x1x32xf32>
    %135 = vector.shape_cast %134 : vector<1x1x32xf32> to vector<1x32xf32>
    %cst_60 = arith.constant dense<0.000000e+00> : vector<4xf32>
    %136 = vector.multi_reduction <add>, %131, %cst_60 [1] : vector<4x32xf32> to vector<4xf32>
    %137 = vector.shape_cast %136 : vector<4xf32> to vector<4x1xf32>
    %cst_61 = arith.constant 3.200000e+01 : f32
    %138 = vector.broadcast %cst_61 : f32 to vector<4x1xf32>
    %139 = arith.divf %137, %138 : vector<4x1xf32>
    %140 = vector.broadcast %139 : vector<4x1xf32> to vector<4x32xf32>
    %141 = arith.subf %131, %140 : vector<4x32xf32>
    %142 = arith.mulf %141, %141 : vector<4x32xf32>
    %cst_62 = arith.constant dense<0.000000e+00> : vector<4xf32>
    %143 = vector.multi_reduction <add>, %142, %cst_62 [1] : vector<4x32xf32> to vector<4xf32>
    %144 = vector.shape_cast %143 : vector<4xf32> to vector<4x1xf32>
    %cst_63 = arith.constant 3.200000e+01 : f32
    %145 = vector.broadcast %cst_63 : f32 to vector<4x1xf32>
    %146 = arith.divf %144, %145 : vector<4x1xf32>
    %147 = vector.broadcast %139 : vector<4x1xf32> to vector<4x32xf32>
    %148 = arith.subf %131, %147 : vector<4x32xf32>
    %cst_64 = arith.constant 9.99999974E-6 : f32
    %149 = vector.broadcast %cst_64 : f32 to vector<4x1xf32>
    %150 = arith.addf %146, %149 : vector<4x1xf32>
    %151 = math.rsqrt %150 : vector<4x1xf32>
    %152 = vector.broadcast %151 : vector<4x1xf32> to vector<4x32xf32>
    %153 = arith.mulf %148, %152 : vector<4x32xf32>
    %154 = vector.broadcast %133 : vector<1x32xf32> to vector<4x32xf32>
    %155 = arith.mulf %153, %154 : vector<4x32xf32>
    %156 = vector.broadcast %135 : vector<1x32xf32> to vector<4x32xf32>
    %157 = arith.addf %155, %156 : vector<4x32xf32>
    %c0_65 = arith.constant 0 : index
    %c0_66 = arith.constant 0 : index
    %c0_67 = arith.constant 0 : index
    %158 = vector.load %arg17[%c0_65, %c0_66, %c0_67] : memref<2x32x2048xbf16, #tpu.memory_space<vmem>>, vector<1x32x2048xbf16>
    %159 = vector.shape_cast %158 : vector<1x32x2048xbf16> to vector<32x2048xbf16>
    %160 = arith.truncf %157 : vector<4x32xf32> to vector<4x32xbf16>
    %cst_68 = arith.constant dense<0.000000e+00> : vector<4x2048xf32>
    %161 = tpu.matmul %160, %159, %cst_68 {dimension_numbers = #tpu.dot_dimension_numbers<[1], [0], [0], [1], [0, 0, 1, 1], [], []>} : vector<4x32xbf16>, vector<32x2048xbf16>, vector<4x2048xf32> -> vector<4x2048xf32>
    %c0_69 = arith.constant 0 : index
    %c0_70 = arith.constant 0 : index
    %c0_71 = arith.constant 0 : index
    %162 = vector.load %arg18[%c0_69, %c0_70, %c0_71] : memref<2x1x2048xf32, #tpu.memory_space<vmem>>, vector<1x1x2048xf32>
    %163 = vector.shape_cast %162 : vector<1x1x2048xf32> to vector<1x2048xf32>
    %164 = vector.broadcast %163 : vector<1x2048xf32> to vector<4x2048xf32>
    %165 = arith.addf %161, %164 : vector<4x2048xf32>
    %cst_72 = arith.constant 0.000000e+00 : f32
    %166 = vector.broadcast %cst_72 : f32 to vector<4x2048xf32>
    %167 = arith.maximumf %165, %166 : vector<4x2048xf32>
    %c0_73 = arith.constant 0 : index
    %c0_74 = arith.constant 0 : index
    %c0_75 = arith.constant 0 : index
    %168 = vector.load %arg19[%c0_73, %c0_74, %c0_75] : memref<2x2048x32xbf16, #tpu.memory_space<vmem>>, vector<1x2048x32xbf16>
    %169 = vector.shape_cast %168 : vector<1x2048x32xbf16> to vector<2048x32xbf16>
    %170 = arith.truncf %167 : vector<4x2048xf32> to vector<4x2048xbf16>
    %cst_76 = arith.constant dense<0.000000e+00> : vector<4x32xf32>
    %171 = tpu.matmul %170, %169, %cst_76 {dimension_numbers = #tpu.dot_dimension_numbers<[1], [0], [0], [1], [0, 0, 1, 1], [], []>} : vector<4x2048xbf16>, vector<2048x32xbf16>, vector<4x32xf32> -> vector<4x32xf32>
    %c0_77 = arith.constant 0 : index
    %c0_78 = arith.constant 0 : index
    %c0_79 = arith.constant 0 : index
    %172 = vector.load %arg20[%c0_77, %c0_78, %c0_79] : memref<2x1x32xf32, #tpu.memory_space<vmem>>, vector<1x1x32xf32>
    %173 = vector.shape_cast %172 : vector<1x1x32xf32> to vector<1x32xf32>
    %174 = vector.broadcast %173 : vector<1x32xf32> to vector<4x32xf32>
    %175 = arith.addf %171, %174 : vector<4x32xf32>
    %176 = arith.addf %157, %175 : vector<4x32xf32>
    %c0_80 = arith.constant 0 : index
    %c0_81 = arith.constant 0 : index
    %c0_82 = arith.constant 0 : index
    %177 = vector.load %arg21[%c0_80, %c0_81, %c0_82] : memref<2x1x32xf32, #tpu.memory_space<vmem>>, vector<1x1x32xf32>
    %178 = vector.shape_cast %177 : vector<1x1x32xf32> to vector<1x32xf32>
    %c0_83 = arith.constant 0 : index
    %c0_84 = arith.constant 0 : index
    %c0_85 = arith.constant 0 : index
    %179 = vector.load %arg22[%c0_83, %c0_84, %c0_85] : memref<2x1x32xf32, #tpu.memory_space<vmem>>, vector<1x1x32xf32>
    %180 = vector.shape_cast %179 : vector<1x1x32xf32> to vector<1x32xf32>
    %cst_86 = arith.constant dense<0.000000e+00> : vector<4xf32>
    %181 = vector.multi_reduction <add>, %176, %cst_86 [1] : vector<4x32xf32> to vector<4xf32>
    %182 = vector.shape_cast %181 : vector<4xf32> to vector<4x1xf32>
    %cst_87 = arith.constant 3.200000e+01 : f32
    %183 = vector.broadcast %cst_87 : f32 to vector<4x1xf32>
    %184 = arith.divf %182, %183 : vector<4x1xf32>
    %185 = vector.broadcast %184 : vector<4x1xf32> to vector<4x32xf32>
    %186 = arith.subf %176, %185 : vector<4x32xf32>
    %187 = arith.mulf %186, %186 : vector<4x32xf32>
    %cst_88 = arith.constant dense<0.000000e+00> : vector<4xf32>
    %188 = vector.multi_reduction <add>, %187, %cst_88 [1] : vector<4x32xf32> to vector<4xf32>
    %189 = vector.shape_cast %188 : vector<4xf32> to vector<4x1xf32>
    %cst_89 = arith.constant 3.200000e+01 : f32
    %190 = vector.broadcast %cst_89 : f32 to vector<4x1xf32>
    %191 = arith.divf %189, %190 : vector<4x1xf32>
    %192 = vector.broadcast %184 : vector<4x1xf32> to vector<4x32xf32>
    %193 = arith.subf %176, %192 : vector<4x32xf32>
    %cst_90 = arith.constant 9.99999974E-6 : f32
    %194 = vector.broadcast %cst_90 : f32 to vector<4x1xf32>
    %195 = arith.addf %191, %194 : vector<4x1xf32>
    %196 = math.rsqrt %195 : vector<4x1xf32>
    %197 = vector.broadcast %196 : vector<4x1xf32> to vector<4x32xf32>
    %198 = arith.mulf %193, %197 : vector<4x32xf32>
    %199 = vector.broadcast %178 : vector<1x32xf32> to vector<4x32xf32>
    %200 = arith.mulf %198, %199 : vector<4x32xf32>
    %201 = vector.broadcast %180 : vector<1x32xf32> to vector<4x32xf32>
    %202 = arith.addf %200, %201 : vector<4x32xf32>
    %c1 = arith.constant 1 : index
    %c0_91 = arith.constant 0 : index
    %c0_92 = arith.constant 0 : index
    %203 = vector.load %arg7[%c1, %c0_91, %c0_92] : memref<2x32x32xbf16, #tpu.memory_space<vmem>>, vector<1x32x32xbf16>
    %204 = vector.shape_cast %203 : vector<1x32x32xbf16> to vector<32x32xbf16>
    %205 = arith.truncf %202 : vector<4x32xf32> to vector<4x32xbf16>
    %cst_93 = arith.constant dense<0.000000e+00> : vector<4x32xf32>
    %206 = tpu.matmul %205, %204, %cst_93 {dimension_numbers = #tpu.dot_dimension_numbers<[1], [0], [0], [1], [0, 0, 1, 1], [], []>} : vector<4x32xbf16>, vector<32x32xbf16>, vector<4x32xf32> -> vector<4x32xf32>
    %c1_94 = arith.constant 1 : index
    %c0_95 = arith.constant 0 : index
    %c0_96 = arith.constant 0 : index
    %207 = vector.load %arg8[%c1_94, %c0_95, %c0_96] : memref<2x1x32xf32, #tpu.memory_space<vmem>>, vector<1x1x32xf32>
    %208 = vector.shape_cast %207 : vector<1x1x32xf32> to vector<1x32xf32>
    %209 = vector.broadcast %208 : vector<1x32xf32> to vector<4x32xf32>
    %210 = arith.addf %206, %209 : vector<4x32xf32>
    %211 = vector.extract_strided_slice %210 {offsets = [0, 0], sizes = [4, 8], strides = [1, 1]} : vector<4x32xf32> to vector<4x8xf32>
    %212 = vector.extract_strided_slice %210 {offsets = [0, 8], sizes = [4, 8], strides = [1, 1]} : vector<4x32xf32> to vector<4x8xf32>
    %213 = vector.extract_strided_slice %210 {offsets = [0, 16], sizes = [4, 8], strides = [1, 1]} : vector<4x32xf32> to vector<4x8xf32>
    %214 = vector.extract_strided_slice %210 {offsets = [0, 24], sizes = [4, 8], strides = [1, 1]} : vector<4x32xf32> to vector<4x8xf32>
    %215 = vector.shape_cast %211 : vector<4x8xf32> to vector<1x4x8xf32>
    %216 = vector.shape_cast %212 : vector<4x8xf32> to vector<1x4x8xf32>
    %217 = vector.shape_cast %213 : vector<4x8xf32> to vector<1x4x8xf32>
    %218 = vector.shape_cast %214 : vector<4x8xf32> to vector<1x4x8xf32>
    %219 = tpu.concatenate %215, %216, %217, %218 in 0 : vector<1x4x8xf32>, vector<1x4x8xf32>, vector<1x4x8xf32>, vector<1x4x8xf32> -> vector<4x4x8xf32>
    %c1_97 = arith.constant 1 : index
    %c0_98 = arith.constant 0 : index
    %c0_99 = arith.constant 0 : index
    %220 = vector.load %arg9[%c1_97, %c0_98, %c0_99] : memref<2x32x32xbf16, #tpu.memory_space<vmem>>, vector<1x32x32xbf16>
    %221 = vector.shape_cast %220 : vector<1x32x32xbf16> to vector<32x32xbf16>
    %222 = arith.truncf %202 : vector<4x32xf32> to vector<4x32xbf16>
    %cst_100 = arith.constant dense<0.000000e+00> : vector<4x32xf32>
    %223 = tpu.matmul %222, %221, %cst_100 {dimension_numbers = #tpu.dot_dimension_numbers<[1], [0], [0], [1], [0, 0, 1, 1], [], []>} : vector<4x32xbf16>, vector<32x32xbf16>, vector<4x32xf32> -> vector<4x32xf32>
    %c1_101 = arith.constant 1 : index
    %c0_102 = arith.constant 0 : index
    %c0_103 = arith.constant 0 : index
    %224 = vector.load %arg10[%c1_101, %c0_102, %c0_103] : memref<2x1x32xf32, #tpu.memory_space<vmem>>, vector<1x1x32xf32>
    %225 = vector.shape_cast %224 : vector<1x1x32xf32> to vector<1x32xf32>
    %226 = vector.broadcast %225 : vector<1x32xf32> to vector<4x32xf32>
    %227 = arith.addf %223, %226 : vector<4x32xf32>
    %228 = vector.extract_strided_slice %227 {offsets = [0, 0], sizes = [4, 8], strides = [1, 1]} : vector<4x32xf32> to vector<4x8xf32>
    %229 = vector.extract_strided_slice %227 {offsets = [0, 8], sizes = [4, 8], strides = [1, 1]} : vector<4x32xf32> to vector<4x8xf32>
    %230 = vector.extract_strided_slice %227 {offsets = [0, 16], sizes = [4, 8], strides = [1, 1]} : vector<4x32xf32> to vector<4x8xf32>
    %231 = vector.extract_strided_slice %227 {offsets = [0, 24], sizes = [4, 8], strides = [1, 1]} : vector<4x32xf32> to vector<4x8xf32>
    %232 = vector.shape_cast %228 : vector<4x8xf32> to vector<1x4x8xf32>
    %233 = vector.shape_cast %229 : vector<4x8xf32> to vector<1x4x8xf32>
    %234 = vector.shape_cast %230 : vector<4x8xf32> to vector<1x4x8xf32>
    %235 = vector.shape_cast %231 : vector<4x8xf32> to vector<1x4x8xf32>
    %236 = tpu.concatenate %232, %233, %234, %235 in 0 : vector<1x4x8xf32>, vector<1x4x8xf32>, vector<1x4x8xf32>, vector<1x4x8xf32> -> vector<4x4x8xf32>
    %c1_104 = arith.constant 1 : index
    %c0_105 = arith.constant 0 : index
    %c0_106 = arith.constant 0 : index
    %237 = vector.load %arg11[%c1_104, %c0_105, %c0_106] : memref<2x32x32xbf16, #tpu.memory_space<vmem>>, vector<1x32x32xbf16>
    %238 = vector.shape_cast %237 : vector<1x32x32xbf16> to vector<32x32xbf16>
    %239 = arith.truncf %202 : vector<4x32xf32> to vector<4x32xbf16>
    %cst_107 = arith.constant dense<0.000000e+00> : vector<4x32xf32>
    %240 = tpu.matmul %239, %238, %cst_107 {dimension_numbers = #tpu.dot_dimension_numbers<[1], [0], [0], [1], [0, 0, 1, 1], [], []>} : vector<4x32xbf16>, vector<32x32xbf16>, vector<4x32xf32> -> vector<4x32xf32>
    %c1_108 = arith.constant 1 : index
    %c0_109 = arith.constant 0 : index
    %c0_110 = arith.constant 0 : index
    %241 = vector.load %arg12[%c1_108, %c0_109, %c0_110] : memref<2x1x32xf32, #tpu.memory_space<vmem>>, vector<1x1x32xf32>
    %242 = vector.shape_cast %241 : vector<1x1x32xf32> to vector<1x32xf32>
    %243 = vector.broadcast %242 : vector<1x32xf32> to vector<4x32xf32>
    %244 = arith.addf %240, %243 : vector<4x32xf32>
    %245 = vector.extract_strided_slice %244 {offsets = [0, 0], sizes = [4, 8], strides = [1, 1]} : vector<4x32xf32> to vector<4x8xf32>
    %246 = vector.extract_strided_slice %244 {offsets = [0, 8], sizes = [4, 8], strides = [1, 1]} : vector<4x32xf32> to vector<4x8xf32>
    %247 = vector.extract_strided_slice %244 {offsets = [0, 16], sizes = [4, 8], strides = [1, 1]} : vector<4x32xf32> to vector<4x8xf32>
    %248 = vector.extract_strided_slice %244 {offsets = [0, 24], sizes = [4, 8], strides = [1, 1]} : vector<4x32xf32> to vector<4x8xf32>
    %249 = vector.shape_cast %245 : vector<4x8xf32> to vector<1x4x8xf32>
    %250 = vector.shape_cast %246 : vector<4x8xf32> to vector<1x4x8xf32>
    %251 = vector.shape_cast %247 : vector<4x8xf32> to vector<1x4x8xf32>
    %252 = vector.shape_cast %248 : vector<4x8xf32> to vector<1x4x8xf32>
    %253 = tpu.concatenate %249, %250, %251, %252 in 0 : vector<1x4x8xf32>, vector<1x4x8xf32>, vector<1x4x8xf32>, vector<1x4x8xf32> -> vector<4x4x8xf32>
    "tpu.trace_start"() <{level = 10 : i32, message = "hqd,hkd->hqk"}> : () -> ()
    %cst_111 = arith.constant dense<0.000000e+00> : vector<4x4x4xf32>
    %254 = tpu.matmul %219, %236, %cst_111 {dimension_numbers = #tpu.dot_dimension_numbers<[2], [2], [1], [1], [0, 0, 0, 1, 1, 1], [0], [0]>} : vector<4x4x8xf32>, vector<4x4x8xf32>, vector<4x4x4xf32> -> vector<4x4x4xf32>
    "tpu.trace_stop"() : () -> ()
    %cst_112 = arith.constant dense<0xFF800000> : vector<4x4xf32>
    %255 = vector.multi_reduction <maximumf>, %254, %cst_112 [2] : vector<4x4x4xf32> to vector<4x4xf32>
    %256 = vector.shape_cast %255 : vector<4x4xf32> to vector<4x4x1xf32>
    %257 = vector.broadcast %256 : vector<4x4x1xf32> to vector<4x4x4xf32>
    %258 = arith.subf %254, %257 : vector<4x4x4xf32>
    %259 = math.exp %258 : vector<4x4x4xf32>
    %cst_113 = arith.constant dense<0.000000e+00> : vector<4x4xf32>
    %260 = vector.multi_reduction <add>, %259, %cst_113 [2] : vector<4x4x4xf32> to vector<4x4xf32>
    %261 = vector.shape_cast %260 : vector<4x4xf32> to vector<4x4x1xf32>
    %262 = tpu.reciprocal %261 {approx = true} : vector<4x4x1xf32> -> vector<4x4x1xf32>
    %263 = vector.broadcast %262 : vector<4x4x1xf32> to vector<4x4x4xf32>
    %264 = arith.mulf %259, %263 : vector<4x4x4xf32>
    "tpu.trace_start"() <{level = 10 : i32, message = "hqk,hkd->hqd"}> : () -> ()
    %cst_114 = arith.constant dense<0.000000e+00> : vector<4x4x8xf32>
    %265 = tpu.matmul %264, %253, %cst_114 {dimension_numbers = #tpu.dot_dimension_numbers<[2], [1], [1], [2], [0, 0, 0, 1, 1, 2], [0], [0]>} : vector<4x4x4xf32>, vector<4x4x8xf32>, vector<4x4x8xf32> -> vector<4x4x8xf32>
    "tpu.trace_stop"() : () -> ()
    %c1_115 = arith.constant 1 : index
    %c0_116 = arith.constant 0 : index
    %c0_117 = arith.constant 0 : index
    %c0_118 = arith.constant 0 : index
    %266 = vector.load %arg13[%c1_115, %c0_116, %c0_117, %c0_118] : memref<2x4x8x32xbf16, #tpu.memory_space<vmem>>, vector<1x4x8x32xbf16>
    %267 = vector.shape_cast %266 : vector<1x4x8x32xbf16> to vector<4x8x32xbf16>
    %268 = vector.extract_strided_slice %265 {offsets = [0, 0, 0], sizes = [1, 4, 8], strides = [1, 1, 1]} : vector<4x4x8xf32> to vector<1x4x8xf32>
    %269 = vector.shape_cast %268 : vector<1x4x8xf32> to vector<4x8xf32>
    %270 = vector.extract_strided_slice %267 {offsets = [0, 0, 0], sizes = [1, 8, 32], strides = [1, 1, 1]} : vector<4x8x32xbf16> to vector<1x8x32xbf16>
    %271 = vector.shape_cast %270 : vector<1x8x32xbf16> to vector<8x32xbf16>
    %272 = arith.truncf %269 : vector<4x8xf32> to vector<4x8xbf16>
    %cst_119 = arith.constant dense<0.000000e+00> : vector<4x32xf32>
    %273 = tpu.matmul %272, %271, %cst_119 {dimension_numbers = #tpu.dot_dimension_numbers<[1], [0], [0], [1], [0, 0, 1, 1], [], []>} : vector<4x8xbf16>, vector<8x32xbf16>, vector<4x32xf32> -> vector<4x32xf32>
    %cst_120 = arith.constant 0.000000e+00 : f32
    %274 = vector.broadcast %cst_120 : f32 to vector<4x32xf32>
    %275 = arith.addf %274, %273 : vector<4x32xf32>
    %276 = vector.extract_strided_slice %265 {offsets = [1, 0, 0], sizes = [1, 4, 8], strides = [1, 1, 1]} : vector<4x4x8xf32> to vector<1x4x8xf32>
    %277 = vector.shape_cast %276 : vector<1x4x8xf32> to vector<4x8xf32>
    %278 = vector.extract_strided_slice %267 {offsets = [1, 0, 0], sizes = [1, 8, 32], strides = [1, 1, 1]} : vector<4x8x32xbf16> to vector<1x8x32xbf16>
    %279 = vector.shape_cast %278 : vector<1x8x32xbf16> to vector<8x32xbf16>
    %280 = arith.truncf %277 : vector<4x8xf32> to vector<4x8xbf16>
    %cst_121 = arith.constant dense<0.000000e+00> : vector<4x32xf32>
    %281 = tpu.matmul %280, %279, %cst_121 {dimension_numbers = #tpu.dot_dimension_numbers<[1], [0], [0], [1], [0, 0, 1, 1], [], []>} : vector<4x8xbf16>, vector<8x32xbf16>, vector<4x32xf32> -> vector<4x32xf32>
    %282 = arith.addf %275, %281 : vector<4x32xf32>
    %283 = vector.extract_strided_slice %265 {offsets = [2, 0, 0], sizes = [1, 4, 8], strides = [1, 1, 1]} : vector<4x4x8xf32> to vector<1x4x8xf32>
    %284 = vector.shape_cast %283 : vector<1x4x8xf32> to vector<4x8xf32>
    %285 = vector.extract_strided_slice %267 {offsets = [2, 0, 0], sizes = [1, 8, 32], strides = [1, 1, 1]} : vector<4x8x32xbf16> to vector<1x8x32xbf16>
    %286 = vector.shape_cast %285 : vector<1x8x32xbf16> to vector<8x32xbf16>
    %287 = arith.truncf %284 : vector<4x8xf32> to vector<4x8xbf16>
    %cst_122 = arith.constant dense<0.000000e+00> : vector<4x32xf32>
    %288 = tpu.matmul %287, %286, %cst_122 {dimension_numbers = #tpu.dot_dimension_numbers<[1], [0], [0], [1], [0, 0, 1, 1], [], []>} : vector<4x8xbf16>, vector<8x32xbf16>, vector<4x32xf32> -> vector<4x32xf32>
    %289 = arith.addf %282, %288 : vector<4x32xf32>
    %290 = vector.extract_strided_slice %265 {offsets = [3, 0, 0], sizes = [1, 4, 8], strides = [1, 1, 1]} : vector<4x4x8xf32> to vector<1x4x8xf32>
    %291 = vector.shape_cast %290 : vector<1x4x8xf32> to vector<4x8xf32>
    %292 = vector.extract_strided_slice %267 {offsets = [3, 0, 0], sizes = [1, 8, 32], strides = [1, 1, 1]} : vector<4x8x32xbf16> to vector<1x8x32xbf16>
    %293 = vector.shape_cast %292 : vector<1x8x32xbf16> to vector<8x32xbf16>
    %294 = arith.truncf %291 : vector<4x8xf32> to vector<4x8xbf16>
    %cst_123 = arith.constant dense<0.000000e+00> : vector<4x32xf32>
    %295 = tpu.matmul %294, %293, %cst_123 {dimension_numbers = #tpu.dot_dimension_numbers<[1], [0], [0], [1], [0, 0, 1, 1], [], []>} : vector<4x8xbf16>, vector<8x32xbf16>, vector<4x32xf32> -> vector<4x32xf32>
    %296 = arith.addf %289, %295 : vector<4x32xf32>
    %c1_124 = arith.constant 1 : index
    %c0_125 = arith.constant 0 : index
    %c0_126 = arith.constant 0 : index
    %297 = vector.load %arg14[%c1_124, %c0_125, %c0_126] : memref<2x1x32xf32, #tpu.memory_space<vmem>>, vector<1x1x32xf32>
    %298 = vector.shape_cast %297 : vector<1x1x32xf32> to vector<1x32xf32>
    %299 = vector.broadcast %298 : vector<1x32xf32> to vector<4x32xf32>
    %300 = arith.addf %296, %299 : vector<4x32xf32>
    %301 = arith.addf %202, %300 : vector<4x32xf32>
    %c1_127 = arith.constant 1 : index
    %c0_128 = arith.constant 0 : index
    %c0_129 = arith.constant 0 : index
    %302 = vector.load %arg15[%c1_127, %c0_128, %c0_129] : memref<2x1x32xf32, #tpu.memory_space<vmem>>, vector<1x1x32xf32>
    %303 = vector.shape_cast %302 : vector<1x1x32xf32> to vector<1x32xf32>
    %c1_130 = arith.constant 1 : index
    %c0_131 = arith.constant 0 : index
    %c0_132 = arith.constant 0 : index
    %304 = vector.load %arg16[%c1_130, %c0_131, %c0_132] : memref<2x1x32xf32, #tpu.memory_space<vmem>>, vector<1x1x32xf32>
    %305 = vector.shape_cast %304 : vector<1x1x32xf32> to vector<1x32xf32>
    %cst_133 = arith.constant dense<0.000000e+00> : vector<4xf32>
    %306 = vector.multi_reduction <add>, %301, %cst_133 [1] : vector<4x32xf32> to vector<4xf32>
    %307 = vector.shape_cast %306 : vector<4xf32> to vector<4x1xf32>
    %cst_134 = arith.constant 3.200000e+01 : f32
    %308 = vector.broadcast %cst_134 : f32 to vector<4x1xf32>
    %309 = arith.divf %307, %308 : vector<4x1xf32>
    %310 = vector.broadcast %309 : vector<4x1xf32> to vector<4x32xf32>
    %311 = arith.subf %301, %310 : vector<4x32xf32>
    %312 = arith.mulf %311, %311 : vector<4x32xf32>
    %cst_135 = arith.constant dense<0.000000e+00> : vector<4xf32>
    %313 = vector.multi_reduction <add>, %312, %cst_135 [1] : vector<4x32xf32> to vector<4xf32>
    %314 = vector.shape_cast %313 : vector<4xf32> to vector<4x1xf32>
    %cst_136 = arith.constant 3.200000e+01 : f32
    %315 = vector.broadcast %cst_136 : f32 to vector<4x1xf32>
    %316 = arith.divf %314, %315 : vector<4x1xf32>
    %317 = vector.broadcast %309 : vector<4x1xf32> to vector<4x32xf32>
    %318 = arith.subf %301, %317 : vector<4x32xf32>
    %cst_137 = arith.constant 9.99999974E-6 : f32
    %319 = vector.broadcast %cst_137 : f32 to vector<4x1xf32>
    %320 = arith.addf %316, %319 : vector<4x1xf32>
    %321 = math.rsqrt %320 : vector<4x1xf32>
    %322 = vector.broadcast %321 : vector<4x1xf32> to vector<4x32xf32>
    %323 = arith.mulf %318, %322 : vector<4x32xf32>
    %324 = vector.broadcast %303 : vector<1x32xf32> to vector<4x32xf32>
    %325 = arith.mulf %323, %324 : vector<4x32xf32>
    %326 = vector.broadcast %305 : vector<1x32xf32> to vector<4x32xf32>
    %327 = arith.addf %325, %326 : vector<4x32xf32>
    %c1_138 = arith.constant 1 : index
    %c0_139 = arith.constant 0 : index
    %c0_140 = arith.constant 0 : index
    %328 = vector.load %arg17[%c1_138, %c0_139, %c0_140] : memref<2x32x2048xbf16, #tpu.memory_space<vmem>>, vector<1x32x2048xbf16>
    %329 = vector.shape_cast %328 : vector<1x32x2048xbf16> to vector<32x2048xbf16>
    %330 = arith.truncf %327 : vector<4x32xf32> to vector<4x32xbf16>
    %cst_141 = arith.constant dense<0.000000e+00> : vector<4x2048xf32>
    %331 = tpu.matmul %330, %329, %cst_141 {dimension_numbers = #tpu.dot_dimension_numbers<[1], [0], [0], [1], [0, 0, 1, 1], [], []>} : vector<4x32xbf16>, vector<32x2048xbf16>, vector<4x2048xf32> -> vector<4x2048xf32>
    %c1_142 = arith.constant 1 : index
    %c0_143 = arith.constant 0 : index
    %c0_144 = arith.constant 0 : index
    %332 = vector.load %arg18[%c1_142, %c0_143, %c0_144] : memref<2x1x2048xf32, #tpu.memory_space<vmem>>, vector<1x1x2048xf32>
    %333 = vector.shape_cast %332 : vector<1x1x2048xf32> to vector<1x2048xf32>
    %334 = vector.broadcast %333 : vector<1x2048xf32> to vector<4x2048xf32>
    %335 = arith.addf %331, %334 : vector<4x2048xf32>
    %cst_145 = arith.constant 0.000000e+00 : f32
    %336 = vector.broadcast %cst_145 : f32 to vector<4x2048xf32>
    %337 = arith.maximumf %335, %336 : vector<4x2048xf32>
    %c1_146 = arith.constant 1 : index
    %c0_147 = arith.constant 0 : index
    %c0_148 = arith.constant 0 : index
    %338 = vector.load %arg19[%c1_146, %c0_147, %c0_148] : memref<2x2048x32xbf16, #tpu.memory_space<vmem>>, vector<1x2048x32xbf16>
    %339 = vector.shape_cast %338 : vector<1x2048x32xbf16> to vector<2048x32xbf16>
    %340 = arith.truncf %337 : vector<4x2048xf32> to vector<4x2048xbf16>
    %cst_149 = arith.constant dense<0.000000e+00> : vector<4x32xf32>
    %341 = tpu.matmul %340, %339, %cst_149 {dimension_numbers = #tpu.dot_dimension_numbers<[1], [0], [0], [1], [0, 0, 1, 1], [], []>} : vector<4x2048xbf16>, vector<2048x32xbf16>, vector<4x32xf32> -> vector<4x32xf32>
    %c1_150 = arith.constant 1 : index
    %c0_151 = arith.constant 0 : index
    %c0_152 = arith.constant 0 : index
    %342 = vector.load %arg20[%c1_150, %c0_151, %c0_152] : memref<2x1x32xf32, #tpu.memory_space<vmem>>, vector<1x1x32xf32>
    %343 = vector.shape_cast %342 : vector<1x1x32xf32> to vector<1x32xf32>
    %344 = vector.broadcast %343 : vector<1x32xf32> to vector<4x32xf32>
    %345 = arith.addf %341, %344 : vector<4x32xf32>
    %346 = arith.addf %327, %345 : vector<4x32xf32>
    %c1_153 = arith.constant 1 : index
    %c0_154 = arith.constant 0 : index
    %c0_155 = arith.constant 0 : index
    %347 = vector.load %arg21[%c1_153, %c0_154, %c0_155] : memref<2x1x32xf32, #tpu.memory_space<vmem>>, vector<1x1x32xf32>
    %348 = vector.shape_cast %347 : vector<1x1x32xf32> to vector<1x32xf32>
    %c1_156 = arith.constant 1 : index
    %c0_157 = arith.constant 0 : index
    %c0_158 = arith.constant 0 : index
    %349 = vector.load %arg22[%c1_156, %c0_157, %c0_158] : memref<2x1x32xf32, #tpu.memory_space<vmem>>, vector<1x1x32xf32>
    %350 = vector.shape_cast %349 : vector<1x1x32xf32> to vector<1x32xf32>
    %cst_159 = arith.constant dense<0.000000e+00> : vector<4xf32>
    %351 = vector.multi_reduction <add>, %346, %cst_159 [1] : vector<4x32xf32> to vector<4xf32>
    %352 = vector.shape_cast %351 : vector<4xf32> to vector<4x1xf32>
    %cst_160 = arith.constant 3.200000e+01 : f32
    %353 = vector.broadcast %cst_160 : f32 to vector<4x1xf32>
    %354 = arith.divf %352, %353 : vector<4x1xf32>
    %355 = vector.broadcast %354 : vector<4x1xf32> to vector<4x32xf32>
    %356 = arith.subf %346, %355 : vector<4x32xf32>
    %357 = arith.mulf %356, %356 : vector<4x32xf32>
    %cst_161 = arith.constant dense<0.000000e+00> : vector<4xf32>
    %358 = vector.multi_reduction <add>, %357, %cst_161 [1] : vector<4x32xf32> to vector<4xf32>
    %359 = vector.shape_cast %358 : vector<4xf32> to vector<4x1xf32>
    %cst_162 = arith.constant 3.200000e+01 : f32
    %360 = vector.broadcast %cst_162 : f32 to vector<4x1xf32>
    %361 = arith.divf %359, %360 : vector<4x1xf32>
    %362 = vector.broadcast %354 : vector<4x1xf32> to vector<4x32xf32>
    %363 = arith.subf %346, %362 : vector<4x32xf32>
    %cst_163 = arith.constant 9.99999974E-6 : f32
    %364 = vector.broadcast %cst_163 : f32 to vector<4x1xf32>
    %365 = arith.addf %361, %364 : vector<4x1xf32>
    %366 = math.rsqrt %365 : vector<4x1xf32>
    %367 = vector.broadcast %366 : vector<4x1xf32> to vector<4x32xf32>
    %368 = arith.mulf %363, %367 : vector<4x32xf32>
    %369 = vector.broadcast %348 : vector<1x32xf32> to vector<4x32xf32>
    %370 = arith.mulf %368, %369 : vector<4x32xf32>
    %371 = vector.broadcast %350 : vector<1x32xf32> to vector<4x32xf32>
    %372 = arith.addf %370, %371 : vector<4x32xf32>
    %cst_164 = arith.constant dense<0.000000e+00> : vector<32xf32>
    %373 = vector.multi_reduction <add>, %372, %cst_164 [0] : vector<4x32xf32> to vector<32xf32>
    %374 = vector.shape_cast %373 : vector<32xf32> to vector<1x32xf32>
    %cst_165 = arith.constant 4.000000e+00 : f32
    %375 = vector.broadcast %cst_165 : f32 to vector<1x32xf32>
    %376 = arith.divf %374, %375 : vector<1x32xf32>
    %c0_166 = arith.constant 0 : index
    %c0_167 = arith.constant 0 : index
    %377 = vector.load %arg23[%c0_166, %c0_167] : memref<32x128xf32, #tpu.memory_space<vmem>>, vector<32x128xf32>
    %cst_168 = arith.constant dense<0.000000e+00> : vector<1x128xf32>
    %378 = tpu.matmul %376, %377, %cst_168 {dimension_numbers = #tpu.dot_dimension_numbers<[1], [0], [0], [1], [0, 0, 1, 1], [], []>} : vector<1x32xf32>, vector<32x128xf32>, vector<1x128xf32> -> vector<1x128xf32>
    %c0_169 = arith.constant 0 : index
    %c0_170 = arith.constant 0 : index
    %379 = vector.load %arg24[%c0_169, %c0_170] : memref<1x128xf32, #tpu.memory_space<vmem>>, vector<1x128xf32>
    %380 = arith.addf %378, %379 : vector<1x128xf32>
    %cst_171 = arith.constant 0.000000e+00 : f32
    %381 = vector.broadcast %cst_171 : f32 to vector<1x128xf32>
    %382 = arith.maximumf %380, %381 : vector<1x128xf32>
    %c0_172 = arith.constant 0 : index
    %c0_173 = arith.constant 0 : index
    %383 = vector.load %arg25[%c0_172, %c0_173] : memref<128x128xf32, #tpu.memory_space<vmem>>, vector<128x128xf32>
    %cst_174 = arith.constant dense<0.000000e+00> : vector<1x128xf32>
    %384 = tpu.matmul %382, %383, %cst_174 {dimension_numbers = #tpu.dot_dimension_numbers<[1], [0], [0], [1], [0, 0, 1, 1], [], []>} : vector<1x128xf32>, vector<128x128xf32>, vector<1x128xf32> -> vector<1x128xf32>
    %c0_175 = arith.constant 0 : index
    %c0_176 = arith.constant 0 : index
    %385 = vector.load %arg26[%c0_175, %c0_176] : memref<1x128xf32, #tpu.memory_space<vmem>>, vector<1x128xf32>
    %386 = arith.addf %384, %385 : vector<1x128xf32>
    %c0_177 = arith.constant 0 : index
    %c0_178 = arith.constant 0 : index
    %c0_179 = arith.constant 0 : index
    %387 = vector.load %arg27[%c0_177, %c0_178, %c0_179] : memref<1x1x128xf32, #tpu.memory_space<vmem>>, vector<1x1x128xf32>
    %388 = vector.shape_cast %387 : vector<1x1x128xf32> to vector<1x128xf32>
    %389 = vector.shape_cast %386 : vector<1x128xf32> to vector<1x1x128xf32>
    tpu.vector_store %arg27[%c0_177, %c0_178, %c0_179], %389 {strides = array<i32>} : memref<1x1x128xf32, #tpu.memory_space<vmem>>, vector<1x1x128xf32>,
    return
  }
  func.func @transform_0(%arg0: i32) -> (i32, i32, i32) {
    %c0_i32 = arith.constant 0 : i32
    %c0_i32_0 = arith.constant 0 : i32
    %c0_i32_1 = arith.constant 0 : i32
    return %arg0, %c0_i32, %c0_i32_0 : i32, i32, i32
  }
  func.func @transform_1(%arg0: i32) -> (i32, i32) {
    %c0_i32 = arith.constant 0 : i32
    %c0_i32_0 = arith.constant 0 : i32
    %c0_i32_1 = arith.constant 0 : i32
    return %c0_i32, %c0_i32_0 : i32, i32
  }
  func.func @transform_2(%arg0: i32) -> (i32, i32) {
    %c0_i32 = arith.constant 0 : i32
    %c0_i32_0 = arith.constant 0 : i32
    %c0_i32_1 = arith.constant 0 : i32
    return %c0_i32, %c0_i32_0 : i32, i32
  }
  func.func @transform_3(%arg0: i32) -> (i32, i32) {
    %c0_i32 = arith.constant 0 : i32
    %c0_i32_0 = arith.constant 0 : i32
    %c0_i32_1 = arith.constant 0 : i32
    return %c0_i32, %c0_i32_0 : i32, i32
  }
  func.func @transform_4(%arg0: i32) -> (i32, i32) {
    %c0_i32 = arith.constant 0 : i32
    %c0_i32_0 = arith.constant 0 : i32
    %c0_i32_1 = arith.constant 0 : i32
    return %c0_i32, %c0_i32_0 : i32, i32
  }
  func.func @transform_5(%arg0: i32) -> (i32, i32) {
    %c0_i32 = arith.constant 0 : i32
    %c0_i32_0 = arith.constant 0 : i32
    %c0_i32_1 = arith.constant 0 : i32
    return %c0_i32, %c0_i32_0 : i32, i32
  }
  func.func @transform_6(%arg0: i32) -> (i32, i32, i32) {
    %c0_i32 = arith.constant 0 : i32
    %c0_i32_0 = arith.constant 0 : i32
    %c0_i32_1 = arith.constant 0 : i32
    %c0_i32_2 = arith.constant 0 : i32
    return %c0_i32, %c0_i32_0, %c0_i32_1 : i32, i32, i32
  }
  func.func @transform_7(%arg0: i32) -> (i32, i32, i32) {
    %c0_i32 = arith.constant 0 : i32
    %c0_i32_0 = arith.constant 0 : i32
    %c0_i32_1 = arith.constant 0 : i32
    %c0_i32_2 = arith.constant 0 : i32
    return %c0_i32, %c0_i32_0, %c0_i32_1 : i32, i32, i32
  }
  func.func @transform_8(%arg0: i32) -> (i32, i32, i32) {
    %c0_i32 = arith.constant 0 : i32
    %c0_i32_0 = arith.constant 0 : i32
    %c0_i32_1 = arith.constant 0 : i32
    %c0_i32_2 = arith.constant 0 : i32
    return %c0_i32, %c0_i32_0, %c0_i32_1 : i32, i32, i32
  }
  func.func @transform_9(%arg0: i32) -> (i32, i32, i32) {
    %c0_i32 = arith.constant 0 : i32
    %c0_i32_0 = arith.constant 0 : i32
    %c0_i32_1 = arith.constant 0 : i32
    %c0_i32_2 = arith.constant 0 : i32
    return %c0_i32, %c0_i32_0, %c0_i32_1 : i32, i32, i32
  }
  func.func @transform_10(%arg0: i32) -> (i32, i32, i32) {
    %c0_i32 = arith.constant 0 : i32
    %c0_i32_0 = arith.constant 0 : i32
    %c0_i32_1 = arith.constant 0 : i32
    %c0_i32_2 = arith.constant 0 : i32
    return %c0_i32, %c0_i32_0, %c0_i32_1 : i32, i32, i32
  }
  func.func @transform_11(%arg0: i32) -> (i32, i32, i32) {
    %c0_i32 = arith.constant 0 : i32
    %c0_i32_0 = arith.constant 0 : i32
    %c0_i32_1 = arith.constant 0 : i32
    %c0_i32_2 = arith.constant 0 : i32
    return %c0_i32, %c0_i32_0, %c0_i32_1 : i32, i32, i32
  }
  func.func @transform_12(%arg0: i32) -> (i32, i32, i32, i32) {
    %c0_i32 = arith.constant 0 : i32
    %c0_i32_0 = arith.constant 0 : i32
    %c0_i32_1 = arith.constant 0 : i32
    %c0_i32_2 = arith.constant 0 : i32
    %c0_i32_3 = arith.constant 0 : i32
    return %c0_i32, %c0_i32_0, %c0_i32_1, %c0_i32_2 : i32, i32, i32, i32
  }
  func.func @transform_13(%arg0: i32) -> (i32, i32, i32) {
    %c0_i32 = arith.constant 0 : i32
    %c0_i32_0 = arith.constant 0 : i32
    %c0_i32_1 = arith.constant 0 : i32
    %c0_i32_2 = arith.constant 0 : i32
    return %c0_i32, %c0_i32_0, %c0_i32_1 : i32, i32, i32
  }
  func.func @transform_14(%arg0: i32) -> (i32, i32, i32) {
    %c0_i32 = arith.constant 0 : i32
    %c0_i32_0 = arith.constant 0 : i32
    %c0_i32_1 = arith.constant 0 : i32
    %c0_i32_2 = arith.constant 0 : i32
    return %c0_i32, %c0_i32_0, %c0_i32_1 : i32, i32, i32
  }
  func.func @transform_15(%arg0: i32) -> (i32, i32, i32) {
    %c0_i32 = arith.constant 0 : i32
    %c0_i32_0 = arith.constant 0 : i32
    %c0_i32_1 = arith.constant 0 : i32
    %c0_i32_2 = arith.constant 0 : i32
    return %c0_i32, %c0_i32_0, %c0_i32_1 : i32, i32, i32
  }
  func.func @transform_16(%arg0: i32) -> (i32, i32, i32) {
    %c0_i32 = arith.constant 0 : i32
    %c0_i32_0 = arith.constant 0 : i32
    %c0_i32_1 = arith.constant 0 : i32
    %c0_i32_2 = arith.constant 0 : i32
    return %c0_i32, %c0_i32_0, %c0_i32_1 : i32, i32, i32
  }
  func.func @transform_17(%arg0: i32) -> (i32, i32, i32) {
    %c0_i32 = arith.constant 0 : i32
    %c0_i32_0 = arith.constant 0 : i32
    %c0_i32_1 = arith.constant 0 : i32
    %c0_i32_2 = arith.constant 0 : i32
    return %c0_i32, %c0_i32_0, %c0_i32_1 : i32, i32, i32
  }
  func.func @transform_18(%arg0: i32) -> (i32, i32, i32) {
    %c0_i32 = arith.constant 0 : i32
    %c0_i32_0 = arith.constant 0 : i32
    %c0_i32_1 = arith.constant 0 : i32
    %c0_i32_2 = arith.constant 0 : i32
    return %c0_i32, %c0_i32_0, %c0_i32_1 : i32, i32, i32
  }
  func.func @transform_19(%arg0: i32) -> (i32, i32, i32) {
    %c0_i32 = arith.constant 0 : i32
    %c0_i32_0 = arith.constant 0 : i32
    %c0_i32_1 = arith.constant 0 : i32
    %c0_i32_2 = arith.constant 0 : i32
    return %c0_i32, %c0_i32_0, %c0_i32_1 : i32, i32, i32
  }
  func.func @transform_20(%arg0: i32) -> (i32, i32, i32) {
    %c0_i32 = arith.constant 0 : i32
    %c0_i32_0 = arith.constant 0 : i32
    %c0_i32_1 = arith.constant 0 : i32
    %c0_i32_2 = arith.constant 0 : i32
    return %c0_i32, %c0_i32_0, %c0_i32_1 : i32, i32, i32
  }
  func.func @transform_21(%arg0: i32) -> (i32, i32, i32) {
    %c0_i32 = arith.constant 0 : i32
    %c0_i32_0 = arith.constant 0 : i32
    %c0_i32_1 = arith.constant 0 : i32
    %c0_i32_2 = arith.constant 0 : i32
    return %c0_i32, %c0_i32_0, %c0_i32_1 : i32, i32, i32
  }
  func.func @transform_22(%arg0: i32) -> (i32, i32) {
    %c0_i32 = arith.constant 0 : i32
    %c0_i32_0 = arith.constant 0 : i32
    %c0_i32_1 = arith.constant 0 : i32
    return %c0_i32, %c0_i32_0 : i32, i32
  }
  func.func @transform_23(%arg0: i32) -> (i32, i32) {
    %c0_i32 = arith.constant 0 : i32
    %c0_i32_0 = arith.constant 0 : i32
    %c0_i32_1 = arith.constant 0 : i32
    return %c0_i32, %c0_i32_0 : i32, i32
  }
  func.func @transform_24(%arg0: i32) -> (i32, i32) {
    %c0_i32 = arith.constant 0 : i32
    %c0_i32_0 = arith.constant 0 : i32
    %c0_i32_1 = arith.constant 0 : i32
    return %c0_i32, %c0_i32_0 : i32, i32
  }
  func.func @transform_25(%arg0: i32) -> (i32, i32) {
    %c0_i32 = arith.constant 0 : i32
    %c0_i32_0 = arith.constant 0 : i32
    %c0_i32_1 = arith.constant 0 : i32
    return %c0_i32, %c0_i32_0 : i32, i32
  }
  func.func @transform_26(%arg0: i32) -> (i32, i32, i32) {
    %c0_i32 = arith.constant 0 : i32
    %c0_i32_0 = arith.constant 0 : i32
    %c0_i32_1 = arith.constant 0 : i32
    return %arg0, %c0_i32, %c0_i32_0 : i32, i32, i32
  }
}

</mosaic_0001>

<llo_original>
// kernel: tpu_custom_call.1
$region0: #{tpu_custom_call.1}
  #allocation0 [shape = 'u32[]', space=smem, size = 0x4, offset = 0x4, fixed_abs, tag = 'smem constant byte address 0x4 - core index']
  #allocation1 [shape = 'u32[72,128]{1,0:T(1,128)}', space=vmem, size = 0x9000, scoped, tag = 'internal scratch']
  %s0 = inlined_call_operand.vmem [shape: f32[2,4,256], index: 0, kind: input, shape index: {}]
  %s1 = inlined_call_operand.vmem [shape: f32[4,32], index: 1, kind: input, shape index: {}]
  %s2 = inlined_call_operand.vmem [shape: f32[256,32], index: 2, kind: input, shape index: {}]
  %s3 = inlined_call_operand.vmem [shape: f32[1,32], index: 3, kind: input, shape index: {}]
  %s4 = inlined_call_operand.vmem [shape: f32[1,32], index: 4, kind: input, shape index: {}]
  %s5 = inlined_call_operand.vmem [shape: f32[1,32], index: 5, kind: input, shape index: {}]
  %s6 = inlined_call_operand.vmem [shape: bf16[2,32,32], index: 6, kind: input, shape index: {}]
  %s7 = inlined_call_operand.vmem [shape: f32[2,1,32], index: 7, kind: input, shape index: {}]
  %s8 = inlined_call_operand.vmem [shape: bf16[2,32,32], index: 8, kind: input, shape index: {}]
  %s9 = inlined_call_operand.vmem [shape: f32[2,1,32], index: 9, kind: input, shape index: {}]
  %s10 = inlined_call_operand.vmem [shape: bf16[2,32,32], index: 10, kind: input, shape index: {}]
  %s11 = inlined_call_operand.vmem [shape: f32[2,1,32], index: 11, kind: input, shape index: {}]
  %s12 = inlined_call_operand.vmem [shape: bf16[2,4,8,32], index: 12, kind: input, shape index: {}]
  %s13 = inlined_call_operand.vmem [shape: f32[2,1,32], index: 13, kind: input, shape index: {}]
  %s14 = inlined_call_operand.vmem [shape: f32[2,1,32], index: 14, kind: input, shape index: {}]
  %s15 = inlined_call_operand.vmem [shape: f32[2,1,32], index: 15, kind: input, shape index: {}]
  %s16 = inlined_call_operand.vmem [shape: bf16[2,32,2048], index: 16, kind: input, shape index: {}]
  %s17 = inlined_call_operand.vmem [shape: f32[2,1,2048], index: 17, kind: input, shape index: {}]
  %s18 = inlined_call_operand.vmem [shape: bf16[2,2048,32], index: 18, kind: input, shape index: {}]
  %s19 = inlined_call_operand.vmem [shape: f32[2,1,32], index: 19, kind: input, shape index: {}]
  %s20 = inlined_call_operand.vmem [shape: f32[2,1,32], index: 20, kind: input, shape index: {}]
  %s21 = inlined_call_operand.vmem [shape: f32[2,1,32], index: 21, kind: input, shape index: {}]
  %s22 = inlined_call_operand.vmem [shape: f32[32,128], index: 22, kind: input, shape index: {}]
  %s23 = inlined_call_operand.vmem [shape: f32[1,128], index: 23, kind: input, shape index: {}]
  %s24 = inlined_call_operand.vmem [shape: f32[128,128], index: 24, kind: input, shape index: {}]
  %s25 = inlined_call_operand.vmem [shape: f32[1,128], index: 25, kind: input, shape index: {}]
  %s26 = inlined_call_operand.hbm [shape: f32[2,1,128], index: 26, kind: output, shape index: {}]
  %s27 = sld [smem:[#allocation0]]
  $region137: #{tpu_custom_call.1} parent=0
    _
  %s29 = ssub.s32 1, %s27
  %s30 = scalar_select 0, %s29, %s27
  $region1: #{tpu_custom_call.1} parent=0
    #allocation2 [shape = 'u8[1024]{0}', space=vmem, size = 0x400, scoped, tag = 'output window, operand 0']
    #allocation3 [shape = 's32[2]{0}', space=sflag, size = 0x8, scoped, tag = 'scoped memory for tpu_custom_call.1']
    %31 = vsyncpa [#allocation3], 0
    %s32 = scalar_lea.sflag [#allocation3], 1
    %33 = vsyncpa %s32, 0
    loop: start=0, step=1, limit=4
    $region2: #{tpu_custom_call.1} parent=1 // loop_pre_header
      _
    $region3: #{tpu_custom_call.1} parent=1 // loop_header
      %s35 = sphi 0, %s39
      %p36 = scmp.ge.s32.totalorder %s35, 4
      %s45 = sphi 0, %s47
      %s48 = sphi 0, %s45
      %s49 = sphi 0, %s48
      %s65 = sphi 0, %s49
      %s69 = sphi 0, %s69
      %s71 = sphi 0, %s69
      %s72 = sphi 0, %s71
      %s86 = sphi 0, %s72
      %s90 = sphi 0, %s90
      %s92 = sphi 0, %s90
      %s93 = sphi 0, %s92
      %s107 = sphi 0, %s93
      %s111 = sphi 0, %s111
      %s113 = sphi 0, %s111
      %s114 = sphi 0, %s113
      %s128 = sphi 0, %s114
      %s132 = sphi 0, %s132
      %s134 = sphi 0, %s132
      %s135 = sphi 0, %s134
      %s149 = sphi 0, %s135
      %s153 = sphi 0, %s153
      %s155 = sphi 0, %s153
      %s156 = sphi 0, %s155
      %s170 = sphi 0, %s156
      %s174 = sphi 0, %s174
      %s176 = sphi 0, %s174
      %s177 = sphi 0, %s176
      %s191 = sphi 0, %s177
      %s195 = sphi 0, %s195
      %s197 = sphi 0, %s195
      %s198 = sphi 0, %s197
      %s212 = sphi 0, %s198
      %s216 = sphi 0, %s216
      %s218 = sphi 0, %s216
      %s219 = sphi 0, %s218
      %s233 = sphi 0, %s219
      %s237 = sphi 0, %s237
      %s239 = sphi 0, %s237
      %s240 = sphi 0, %s239
      %s254 = sphi 0, %s240
      %s258 = sphi 0, %s258
      %s260 = sphi 0, %s258
      %s261 = sphi 0, %s260
      %s275 = sphi 0, %s261
      %s279 = sphi 0, %s279
      %s281 = sphi 0, %s279
      %s282 = sphi 0, %s281
      %s296 = sphi 0, %s282
      %s300 = sphi 0, %s300
      %s302 = sphi 0, %s300
      %s303 = sphi 0, %s302
      %s317 = sphi 0, %s303
      %s321 = sphi 0, %s321
      %s323 = sphi 0, %s321
      %s324 = sphi 0, %s323
      %s338 = sphi 0, %s324
      %s342 = sphi 0, %s342
      %s344 = sphi 0, %s342
      %s345 = sphi 0, %s344
      %s359 = sphi 0, %s345
      %s363 = sphi 0, %s363
      %s365 = sphi 0, %s363
      %s366 = sphi 0, %s365
      %s380 = sphi 0, %s366
      %s384 = sphi 0, %s384
      %s386 = sphi 0, %s384
      %s387 = sphi 0, %s386
      %s401 = sphi 0, %s387
      %s405 = sphi 0, %s405
      %s407 = sphi 0, %s405
      %s408 = sphi 0, %s407
      %s422 = sphi 0, %s408
      %s426 = sphi 0, %s426
      %s428 = sphi 0, %s426
      %s429 = sphi 0, %s428
      %s443 = sphi 0, %s429
      %s447 = sphi 0, %s447
      %s449 = sphi 0, %s447
      %s450 = sphi 0, %s449
      %s464 = sphi 0, %s450
      %s468 = sphi 0, %s468
      %s470 = sphi 0, %s468
      %s471 = sphi 0, %s470
      %s485 = sphi 0, %s471
      %s489 = sphi 0, %s489
      %s491 = sphi 0, %s489
      %s492 = sphi 0, %s491
      %s506 = sphi 0, %s492
      %s510 = sphi 0, %s510
      %s512 = sphi 0, %s510
      %s513 = sphi 0, %s512
      %s527 = sphi 0, %s513
      %s531 = sphi 0, %s531
      %s533 = sphi 0, %s531
      %s534 = sphi 0, %s533
      %s548 = sphi 0, %s534
      %s552 = sphi 0, %s552
      %s554 = sphi 0, %s552
      %s555 = sphi 0, %s554
      %s569 = sphi 0, %s555
      %s573 = sphi 0, %s573
      %s575 = sphi 0, %s573
      %s576 = sphi 0, %s575
      %s590 = sphi 0, %s576
      %s596 = sphi 0, %s598
      %s599 = sphi 0, %s596
      %s600 = sphi 0, %s599
      %s616 = sphi 0, %s600
    $region4: #{tpu_custom_call.1} parent=1 // loop_header_branch
      %38 = sbr.rel (%p36) target = $region8
    $region5: #{tpu_custom_call.1} parent=1 // loop_body
      %s40 = ssub.s32 %s35, 1
      %s41 = ssub.s32 %s35, 2
      %s42 = sadd.s32 %s35, 1
      %s43 = ssub.s32 %s35, %s42
      %p44 = scmp.eq.s32.totalorder %s43, 0
      %s46 = sadd.s32 %s45, 1
      %s47 = scalar_select %p44, %s45, %s46
      %p50 = pneg %p44
      %p51 = scmp.eq.s32.totalorder %s35, 1
      %p52 = por %p50, %p51
      %p53 = scmp.ne.s32.totalorder %s45, %s48
      %p54 = scmp.eq.s32.totalorder %s35, 0
      %p55 = por %p53, %p54
      %p56 = scmp.ne.s32.totalorder %s45, %s48
      %p57 = scmp.eq.s32.totalorder %s40, 1
      %p58 = por %p56, %p57
      %p59 = scmp.ne.s32.totalorder %s48, %s49
      %p60 = scmp.eq.s32.totalorder %s40, 0
      %p61 = por %p59, %p60
      %p62 = scmp.ne.s32.totalorder %s48, %s49
      %p63 = scmp.eq.s32.totalorder %s41, 1
      %p64 = por %p62, %p63
      %p66 = scmp.ne.s32.totalorder %s49, %s65
      %p67 = scmp.eq.s32.totalorder %s41, 0
      %p68 = por %p66, %p67
      %s70 = sadd.s32 %s69, 1
      %p73 = scmp.eq.s32.totalorder %s35, 1
      %p74 = scmp.ne.s32.totalorder %s69, %s71
      %p75 = scmp.eq.s32.totalorder %s35, 0
      %p76 = por %p74, %p75
      %p77 = scmp.ne.s32.totalorder %s69, %s71
      %p78 = scmp.eq.s32.totalorder %s40, 1
      %p79 = por %p77, %p78
      %p80 = scmp.ne.s32.totalorder %s71, %s72
      %p81 = scmp.eq.s32.totalorder %s40, 0
      %p82 = por %p80, %p81
      %p83 = scmp.ne.s32.totalorder %s71, %s72
      %p84 = scmp.eq.s32.totalorder %s41, 1
      %p85 = por %p83, %p84
      %p87 = scmp.ne.s32.totalorder %s72, %s86
      %p88 = scmp.eq.s32.totalorder %s41, 0
      %p89 = por %p87, %p88
      %s91 = sadd.s32 %s90, 1
      %p94 = scmp.eq.s32.totalorder %s35, 1
      %p95 = scmp.ne.s32.totalorder %s90, %s92
      %p96 = scmp.eq.s32.totalorder %s35, 0
      %p97 = por %p95, %p96
      %p98 = scmp.ne.s32.totalorder %s90, %s92
      %p99 = scmp.eq.s32.totalorder %s40, 1
      %p100 = por %p98, %p99
      %p101 = scmp.ne.s32.totalorder %s92, %s93
      %p102 = scmp.eq.s32.totalorder %s40, 0
      %p103 = por %p101, %p102
      %p104 = scmp.ne.s32.totalorder %s92, %s93
      %p105 = scmp.eq.s32.totalorder %s41, 1
      %p106 = por %p104, %p105
      %p108 = scmp.ne.s32.totalorder %s93, %s107
      %p109 = scmp.eq.s32.totalorder %s41, 0
      %p110 = por %p108, %p109
      %s112 = sadd.s32 %s111, 1
      %p115 = scmp.eq.s32.totalorder %s35, 1
      %p116 = scmp.ne.s32.totalorder %s111, %s113
      %p117 = scmp.eq.s32.totalorder %s35, 0
      %p118 = por %p116, %p117
      %p119 = scmp.ne.s32.totalorder %s111, %s113
      %p120 = scmp.eq.s32.totalorder %s40, 1
      %p121 = por %p119, %p120
      %p122 = scmp.ne.s32.totalorder %s113, %s114
      %p123 = scmp.eq.s32.totalorder %s40, 0
      %p124 = por %p122, %p123
      %p125 = scmp.ne.s32.totalorder %s113, %s114
      %p126 = scmp.eq.s32.totalorder %s41, 1
      %p127 = por %p125, %p126
      %p129 = scmp.ne.s32.totalorder %s114, %s128
      %p130 = scmp.eq.s32.totalorder %s41, 0
      %p131 = por %p129, %p130
      %s133 = sadd.s32 %s132, 1
      %p136 = scmp.eq.s32.totalorder %s35, 1
      %p137 = scmp.ne.s32.totalorder %s132, %s134
      %p138 = scmp.eq.s32.totalorder %s35, 0
      %p139 = por %p137, %p138
      %p140 = scmp.ne.s32.totalorder %s132, %s134
      %p141 = scmp.eq.s32.totalorder %s40, 1
      %p142 = por %p140, %p141
      %p143 = scmp.ne.s32.totalorder %s134, %s135
      %p144 = scmp.eq.s32.totalorder %s40, 0
      %p145 = por %p143, %p144
      %p146 = scmp.ne.s32.totalorder %s134, %s135
      %p147 = scmp.eq.s32.totalorder %s41, 1
      %p148 = por %p146, %p147
      %p150 = scmp.ne.s32.totalorder %s135, %s149
      %p151 = scmp.eq.s32.totalorder %s41, 0
      %p152 = por %p150, %p151
      %s154 = sadd.s32 %s153, 1
      %p157 = scmp.eq.s32.totalorder %s35, 1
      %p158 = scmp.ne.s32.totalorder %s153, %s155
      %p159 = scmp.eq.s32.totalorder %s35, 0
      %p160 = por %p158, %p159
      %p161 = scmp.ne.s32.totalorder %s153, %s155
      %p162 = scmp.eq.s32.totalorder %s40, 1
      %p163 = por %p161, %p162
      %p164 = scmp.ne.s32.totalorder %s155, %s156
      %p165 = scmp.eq.s32.totalorder %s40, 0
      %p166 = por %p164, %p165
      %p167 = scmp.ne.s32.totalorder %s155, %s156
      %p168 = scmp.eq.s32.totalorder %s41, 1
      %p169 = por %p167, %p168
      %p171 = scmp.ne.s32.totalorder %s156, %s170
      %p172 = scmp.eq.s32.totalorder %s41, 0
      %p173 = por %p171, %p172
      %s175 = sadd.s32 %s174, 1
      %p178 = scmp.eq.s32.totalorder %s35, 1
      %p179 = scmp.ne.s32.totalorder %s174, %s176
      %p180 = scmp.eq.s32.totalorder %s35, 0
      %p181 = por %p179, %p180
      %p182 = scmp.ne.s32.totalorder %s174, %s176
      %p183 = scmp.eq.s32.totalorder %s40, 1
      %p184 = por %p182, %p183
      %p185 = scmp.ne.s32.totalorder %s176, %s177
      %p186 = scmp.eq.s32.totalorder %s40, 0
      %p187 = por %p185, %p186
      %p188 = scmp.ne.s32.totalorder %s176, %s177
      %p189 = scmp.eq.s32.totalorder %s41, 1
      %p190 = por %p188, %p189
      %p192 = scmp.ne.s32.totalorder %s177, %s191
      %p193 = scmp.eq.s32.totalorder %s41, 0
      %p194 = por %p192, %p193
      %s196 = sadd.s32 %s195, 1
      %p199 = scmp.eq.s32.totalorder %s35, 1
      %p200 = scmp.ne.s32.totalorder %s195, %s197
      %p201 = scmp.eq.s32.totalorder %s35, 0
      %p202 = por %p200, %p201
      %p203 = scmp.ne.s32.totalorder %s195, %s197
      %p204 = scmp.eq.s32.totalorder %s40, 1
      %p205 = por %p203, %p204
      %p206 = scmp.ne.s32.totalorder %s197, %s198
      %p207 = scmp.eq.s32.totalorder %s40, 0
      %p208 = por %p206, %p207
      %p209 = scmp.ne.s32.totalorder %s197, %s198
      %p210 = scmp.eq.s32.totalorder %s41, 1
      %p211 = por %p209, %p210
      %p213 = scmp.ne.s32.totalorder %s198, %s212
      %p214 = scmp.eq.s32.totalorder %s41, 0
      %p215 = por %p213, %p214
      %s217 = sadd.s32 %s216, 1
      %p220 = scmp.eq.s32.totalorder %s35, 1
      %p221 = scmp.ne.s32.totalorder %s216, %s218
      %p222 = scmp.eq.s32.totalorder %s35, 0
      %p223 = por %p221, %p222
      %p224 = scmp.ne.s32.totalorder %s216, %s218
      %p225 = scmp.eq.s32.totalorder %s40, 1
      %p226 = por %p224, %p225
      %p227 = scmp.ne.s32.totalorder %s218, %s219
      %p228 = scmp.eq.s32.totalorder %s40, 0
      %p229 = por %p227, %p228
      %p230 = scmp.ne.s32.totalorder %s218, %s219
      %p231 = scmp.eq.s32.totalorder %s41, 1
      %p232 = por %p230, %p231
      %p234 = scmp.ne.s32.totalorder %s219, %s233
      %p235 = scmp.eq.s32.totalorder %s41, 0
      %p236 = por %p234, %p235
      %s238 = sadd.s32 %s237, 1
      %p241 = scmp.eq.s32.totalorder %s35, 1
      %p242 = scmp.ne.s32.totalorder %s237, %s239
      %p243 = scmp.eq.s32.totalorder %s35, 0
      %p244 = por %p242, %p243
      %p245 = scmp.ne.s32.totalorder %s237, %s239
      %p246 = scmp.eq.s32.totalorder %s40, 1
      %p247 = por %p245, %p246
      %p248 = scmp.ne.s32.totalorder %s239, %s240
      %p249 = scmp.eq.s32.totalorder %s40, 0
      %p250 = por %p248, %p249
      %p251 = scmp.ne.s32.totalorder %s239, %s240
      %p252 = scmp.eq.s32.totalorder %s41, 1
      %p253 = por %p251, %p252
      %p255 = scmp.ne.s32.totalorder %s240, %s254
      %p256 = scmp.eq.s32.totalorder %s41, 0
      %p257 = por %p255, %p256
      %s259 = sadd.s32 %s258, 1
      %p262 = scmp.eq.s32.totalorder %s35, 1
      %p263 = scmp.ne.s32.totalorder %s258, %s260
      %p264 = scmp.eq.s32.totalorder %s35, 0
      %p265 = por %p263, %p264
      %p266 = scmp.ne.s32.totalorder %s258, %s260
      %p267 = scmp.eq.s32.totalorder %s40, 1
      %p268 = por %p266, %p267
      %p269 = scmp.ne.s32.totalorder %s260, %s261
      %p270 = scmp.eq.s32.totalorder %s40, 0
      %p271 = por %p269, %p270
      %p272 = scmp.ne.s32.totalorder %s260, %s261
      %p273 = scmp.eq.s32.totalorder %s41, 1
      %p274 = por %p272, %p273
      %p276 = scmp.ne.s32.totalorder %s261, %s275
      %p277 = scmp.eq.s32.totalorder %s41, 0
      %p278 = por %p276, %p277
      %s280 = sadd.s32 %s279, 1
      %p283 = scmp.eq.s32.totalorder %s35, 1
      %p284 = scmp.ne.s32.totalorder %s279, %s281
      %p285 = scmp.eq.s32.totalorder %s35, 0
      %p286 = por %p284, %p285
      %p287 = scmp.ne.s32.totalorder %s279, %s281
      %p288 = scmp.eq.s32.totalorder %s40, 1
      %p289 = por %p287, %p288
      %p290 = scmp.ne.s32.totalorder %s281, %s282
      %p291 = scmp.eq.s32.totalorder %s40, 0
      %p292 = por %p290, %p291
      %p293 = scmp.ne.s32.totalorder %s281, %s282
      %p294 = scmp.eq.s32.totalorder %s41, 1
      %p295 = por %p293, %p294
      %p297 = scmp.ne.s32.totalorder %s282, %s296
      %p298 = scmp.eq.s32.totalorder %s41, 0
      %p299 = por %p297, %p298
      %s301 = sadd.s32 %s300, 1
      %p304 = scmp.eq.s32.totalorder %s35, 1
      %p305 = scmp.ne.s32.totalorder %s300, %s302
      %p306 = scmp.eq.s32.totalorder %s35, 0
      %p307 = por %p305, %p306
      %p308 = scmp.ne.s32.totalorder %s300, %s302
      %p309 = scmp.eq.s32.totalorder %s40, 1
      %p310 = por %p308, %p309
      %p311 = scmp.ne.s32.totalorder %s302, %s303
      %p312 = scmp.eq.s32.totalorder %s40, 0
      %p313 = por %p311, %p312
      %p314 = scmp.ne.s32.totalorder %s302, %s303
      %p315 = scmp.eq.s32.totalorder %s41, 1
      %p316 = por %p314, %p315
      %p318 = scmp.ne.s32.totalorder %s303, %s317
      %p319 = scmp.eq.s32.totalorder %s41, 0
      %p320 = por %p318, %p319
      %s322 = sadd.s32 %s321, 1
      %p325 = scmp.eq.s32.totalorder %s35, 1
      %p326 = scmp.ne.s32.totalorder %s321, %s323
      %p327 = scmp.eq.s32.totalorder %s35, 0
      %p328 = por %p326, %p327
      %p329 = scmp.ne.s32.totalorder %s321, %s323
      %p330 = scmp.eq.s32.totalorder %s40, 1
      %p331 = por %p329, %p330
      %p332 = scmp.ne.s32.totalorder %s323, %s324
      %p333 = scmp.eq.s32.totalorder %s40, 0
      %p334 = por %p332, %p333
      %p335 = scmp.ne.s32.totalorder %s323, %s324
      %p336 = scmp.eq.s32.totalorder %s41, 1
      %p337 = por %p335, %p336
      %p339 = scmp.ne.s32.totalorder %s324, %s338
      %p340 = scmp.eq.s32.totalorder %s41, 0
      %p341 = por %p339, %p340
      %s343 = sadd.s32 %s342, 1
      %p346 = scmp.eq.s32.totalorder %s35, 1
      %p347 = scmp.ne.s32.totalorder %s342, %s344
      %p348 = scmp.eq.s32.totalorder %s35, 0
      %p349 = por %p347, %p348
      %p350 = scmp.ne.s32.totalorder %s342, %s344
      %p351 = scmp.eq.s32.totalorder %s40, 1
      %p352 = por %p350, %p351
      %p353 = scmp.ne.s32.totalorder %s344, %s345
      %p354 = scmp.eq.s32.totalorder %s40, 0
      %p355 = por %p353, %p354
      %p356 = scmp.ne.s32.totalorder %s344, %s345
      %p357 = scmp.eq.s32.totalorder %s41, 1
      %p358 = por %p356, %p357
      %p360 = scmp.ne.s32.totalorder %s345, %s359
      %p361 = scmp.eq.s32.totalorder %s41, 0
      %p362 = por %p360, %p361
      %s364 = sadd.s32 %s363, 1
      %p367 = scmp.eq.s32.totalorder %s35, 1
      %p368 = scmp.ne.s32.totalorder %s363, %s365
      %p369 = scmp.eq.s32.totalorder %s35, 0
      %p370 = por %p368, %p369
      %p371 = scmp.ne.s32.totalorder %s363, %s365
      %p372 = scmp.eq.s32.totalorder %s40, 1
      %p373 = por %p371, %p372
      %p374 = scmp.ne.s32.totalorder %s365, %s366
      %p375 = scmp.eq.s32.totalorder %s40, 0
      %p376 = por %p374, %p375
      %p377 = scmp.ne.s32.totalorder %s365, %s366
      %p378 = scmp.eq.s32.totalorder %s41, 1
      %p379 = por %p377, %p378
      %p381 = scmp.ne.s32.totalorder %s366, %s380
      %p382 = scmp.eq.s32.totalorder %s41, 0
      %p383 = por %p381, %p382
      %s385 = sadd.s32 %s384, 1
      %p388 = scmp.eq.s32.totalorder %s35, 1
      %p389 = scmp.ne.s32.totalorder %s384, %s386
      %p390 = scmp.eq.s32.totalorder %s35, 0
      %p391 = por %p389, %p390
      %p392 = scmp.ne.s32.totalorder %s384, %s386
      %p393 = scmp.eq.s32.totalorder %s40, 1
      %p394 = por %p392, %p393
      %p395 = scmp.ne.s32.totalorder %s386, %s387
      %p396 = scmp.eq.s32.totalorder %s40, 0
      %p397 = por %p395, %p396
      %p398 = scmp.ne.s32.totalorder %s386, %s387
      %p399 = scmp.eq.s32.totalorder %s41, 1
      %p400 = por %p398, %p399
      %p402 = scmp.ne.s32.totalorder %s387, %s401
      %p403 = scmp.eq.s32.totalorder %s41, 0
      %p404 = por %p402, %p403
      %s406 = sadd.s32 %s405, 1
      %p409 = scmp.eq.s32.totalorder %s35, 1
      %p410 = scmp.ne.s32.totalorder %s405, %s407
      %p411 = scmp.eq.s32.totalorder %s35, 0
      %p412 = por %p410, %p411
      %p413 = scmp.ne.s32.totalorder %s405, %s407
      %p414 = scmp.eq.s32.totalorder %s40, 1
      %p415 = por %p413, %p414
      %p416 = scmp.ne.s32.totalorder %s407, %s408
      %p417 = scmp.eq.s32.totalorder %s40, 0
      %p418 = por %p416, %p417
      %p419 = scmp.ne.s32.totalorder %s407, %s408
      %p420 = scmp.eq.s32.totalorder %s41, 1
      %p421 = por %p419, %p420
      %p423 = scmp.ne.s32.totalorder %s408, %s422
      %p424 = scmp.eq.s32.totalorder %s41, 0
      %p425 = por %p423, %p424
      %s427 = sadd.s32 %s426, 1
      %p430 = scmp.eq.s32.totalorder %s35, 1
      %p431 = scmp.ne.s32.totalorder %s426, %s428
      %p432 = scmp.eq.s32.totalorder %s35, 0
      %p433 = por %p431, %p432
      %p434 = scmp.ne.s32.totalorder %s426, %s428
      %p435 = scmp.eq.s32.totalorder %s40, 1
      %p436 = por %p434, %p435
      %p437 = scmp.ne.s32.totalorder %s428, %s429
      %p438 = scmp.eq.s32.totalorder %s40, 0
      %p439 = por %p437, %p438
      %p440 = scmp.ne.s32.totalorder %s428, %s429
      %p441 = scmp.eq.s32.totalorder %s41, 1
      %p442 = por %p440, %p441
      %p444 = scmp.ne.s32.totalorder %s429, %s443
      %p445 = scmp.eq.s32.totalorder %s41, 0
      %p446 = por %p444, %p445
      %s448 = sadd.s32 %s447, 1
      %p451 = scmp.eq.s32.totalorder %s35, 1
      %p452 = scmp.ne.s32.totalorder %s447, %s449
      %p453 = scmp.eq.s32.totalorder %s35, 0
      %p454 = por %p452, %p453
      %p455 = scmp.ne.s32.totalorder %s447, %s449
      %p456 = scmp.eq.s32.totalorder %s40, 1
      %p457 = por %p455, %p456
      %p458 = scmp.ne.s32.totalorder %s449, %s450
      %p459 = scmp.eq.s32.totalorder %s40, 0
      %p460 = por %p458, %p459
      %p461 = scmp.ne.s32.totalorder %s449, %s450
      %p462 = scmp.eq.s32.totalorder %s41, 1
      %p463 = por %p461, %p462
      %p465 = scmp.ne.s32.totalorder %s450, %s464
      %p466 = scmp.eq.s32.totalorder %s41, 0
      %p467 = por %p465, %p466
      %s469 = sadd.s32 %s468, 1
      %p472 = scmp.eq.s32.totalorder %s35, 1
      %p473 = scmp.ne.s32.totalorder %s468, %s470
      %p474 = scmp.eq.s32.totalorder %s35, 0
      %p475 = por %p473, %p474
      %p476 = scmp.ne.s32.totalorder %s468, %s470
      %p477 = scmp.eq.s32.totalorder %s40, 1
      %p478 = por %p476, %p477
      %p479 = scmp.ne.s32.totalorder %s470, %s471
      %p480 = scmp.eq.s32.totalorder %s40, 0
      %p481 = por %p479, %p480
      %p482 = scmp.ne.s32.totalorder %s470, %s471
      %p483 = scmp.eq.s32.totalorder %s41, 1
      %p484 = por %p482, %p483
      %p486 = scmp.ne.s32.totalorder %s471, %s485
      %p487 = scmp.eq.s32.totalorder %s41, 0
      %p488 = por %p486, %p487
      %s490 = sadd.s32 %s489, 1
      %p493 = scmp.eq.s32.totalorder %s35, 1
      %p494 = scmp.ne.s32.totalorder %s489, %s491
      %p495 = scmp.eq.s32.totalorder %s35, 0
      %p496 = por %p494, %p495
      %p497 = scmp.ne.s32.totalorder %s489, %s491
      %p498 = scmp.eq.s32.totalorder %s40, 1
      %p499 = por %p497, %p498
      %p500 = scmp.ne.s32.totalorder %s491, %s492
      %p501 = scmp.eq.s32.totalorder %s40, 0
      %p502 = por %p500, %p501
      %p503 = scmp.ne.s32.totalorder %s491, %s492
      %p504 = scmp.eq.s32.totalorder %s41, 1
      %p505 = por %p503, %p504
      %p507 = scmp.ne.s32.totalorder %s492, %s506
      %p508 = scmp.eq.s32.totalorder %s41, 0
      %p509 = por %p507, %p508
      %s511 = sadd.s32 %s510, 1
      %p514 = scmp.eq.s32.totalorder %s35, 1
      %p515 = scmp.ne.s32.totalorder %s510, %s512
      %p516 = scmp.eq.s32.totalorder %s35, 0
      %p517 = por %p515, %p516
      %p518 = scmp.ne.s32.totalorder %s510, %s512
      %p519 = scmp.eq.s32.totalorder %s40, 1
      %p520 = por %p518, %p519
      %p521 = scmp.ne.s32.totalorder %s512, %s513
      %p522 = scmp.eq.s32.totalorder %s40, 0
      %p523 = por %p521, %p522
      %p524 = scmp.ne.s32.totalorder %s512, %s513
      %p525 = scmp.eq.s32.totalorder %s41, 1
      %p526 = por %p524, %p525
      %p528 = scmp.ne.s32.totalorder %s513, %s527
      %p529 = scmp.eq.s32.totalorder %s41, 0
      %p530 = por %p528, %p529
      %s532 = sadd.s32 %s531, 1
      %p535 = scmp.eq.s32.totalorder %s35, 1
      %p536 = scmp.ne.s32.totalorder %s531, %s533
      %p537 = scmp.eq.s32.totalorder %s35, 0
      %p538 = por %p536, %p537
      %p539 = scmp.ne.s32.totalorder %s531, %s533
      %p540 = scmp.eq.s32.totalorder %s40, 1
      %p541 = por %p539, %p540
      %p542 = scmp.ne.s32.totalorder %s533, %s534
      %p543 = scmp.eq.s32.totalorder %s40, 0
      %p544 = por %p542, %p543
      %p545 = scmp.ne.s32.totalorder %s533, %s534
      %p546 = scmp.eq.s32.totalorder %s41, 1
      %p547 = por %p545, %p546
      %p549 = scmp.ne.s32.totalorder %s534, %s548
      %p550 = scmp.eq.s32.totalorder %s41, 0
      %p551 = por %p549, %p550
      %s553 = sadd.s32 %s552, 1
      %p556 = scmp.eq.s32.totalorder %s35, 1
      %p557 = scmp.ne.s32.totalorder %s552, %s554
      %p558 = scmp.eq.s32.totalorder %s35, 0
      %p559 = por %p557, %p558
      %p560 = scmp.ne.s32.totalorder %s552, %s554
      %p561 = scmp.eq.s32.totalorder %s40, 1
      %p562 = por %p560, %p561
      %p563 = scmp.ne.s32.totalorder %s554, %s555
      %p564 = scmp.eq.s32.totalorder %s40, 0
      %p565 = por %p563, %p564
      %p566 = scmp.ne.s32.totalorder %s554, %s555
      %p567 = scmp.eq.s32.totalorder %s41, 1
      %p568 = por %p566, %p567
      %p570 = scmp.ne.s32.totalorder %s555, %s569
      %p571 = scmp.eq.s32.totalorder %s41, 0
      %p572 = por %p570, %p571
      %s574 = sadd.s32 %s573, 1
      %p577 = scmp.eq.s32.totalorder %s35, 1
      %p578 = scmp.ne.s32.totalorder %s573, %s575
      %p579 = scmp.eq.s32.totalorder %s35, 0
      %p580 = por %p578, %p579
      %p581 = scmp.ne.s32.totalorder %s573, %s575
      %p582 = scmp.eq.s32.totalorder %s40, 1
      %p583 = por %p581, %p582
      %p584 = scmp.ne.s32.totalorder %s575, %s576
      %p585 = scmp.eq.s32.totalorder %s40, 0
      %p586 = por %p584, %p585
      %p587 = scmp.ne.s32.totalorder %s575, %s576
      %p588 = scmp.eq.s32.totalorder %s41, 1
      %p589 = por %p587, %p588
      %p591 = scmp.ne.s32.totalorder %s576, %s590
      %p592 = scmp.eq.s32.totalorder %s41, 0
      %p593 = por %p591, %p592
      %s594 = ssub.s32 %s35, %s42
      %p595 = scmp.eq.s32.totalorder %s594, 0
      %s597 = sadd.s32 %s596, 1
      %s598 = scalar_select %p595, %s596, %s597
      %p601 = pneg %p595
      %p602 = scmp.eq.s32.totalorder %s35, 1
      %p603 = por %p601, %p602
      %p604 = scmp.ne.s32.totalorder %s596, %s599
      %p605 = scmp.eq.s32.totalorder %s35, 0
      %p606 = por %p604, %p605
      %p607 = scmp.ne.s32.totalorder %s596, %s599
      %p608 = scmp.eq.s32.totalorder %s40, 1
      %p609 = por %p607, %p608
      %p610 = scmp.ne.s32.totalorder %s599, %s600
      %p611 = scmp.eq.s32.totalorder %s40, 0
      %p612 = por %p610, %p611
      %p613 = scmp.ne.s32.totalorder %s599, %s600
      %p614 = scmp.eq.s32.totalorder %s41, 1
      %p615 = por %p613, %p614
      %p617 = scmp.ne.s32.totalorder %s600, %s616
      %p618 = scmp.eq.s32.totalorder %s41, 0
      %p619 = por %p617, %p618
      %p620 = scmp.le.s32.totalorder 1, %s35
      %p621 = scmp.lt.s32.totalorder %s35, 3
      %p622 = pnand %p620, %p621
      %p623 = pneg %p622
      // Predicated region
      $region9: #{tpu_custom_call.1} parent=5 // pred_check
        _
      $region10: #{tpu_custom_call.1} parent=5 // pred_check_branch
        %625 = sbr.rel (%p622) target = $region12
      $region11: #{tpu_custom_call.1} parent=5 // pred_region
        %s626 = ssub.s32 %s35, 1
        // Predicated region
        $region13: #{tpu_custom_call.1} parent=11 // pred_check
          %p627 = pneg %p82
        $region14: #{tpu_custom_call.1} parent=11 // pred_check_branch
          %629 = sbr.rel (%p627) target = $region16
        $region15: #{tpu_custom_call.1} parent=11 // pred_region
          _
        $region16: #{tpu_custom_call.1} parent=11 // pred_fallthru
          _
        // Predicated region
        $region17: #{tpu_custom_call.1} parent=11 // pred_check
          %p630 = pneg %p103
        $region18: #{tpu_custom_call.1} parent=11 // pred_check_branch
          %632 = sbr.rel (%p630) target = $region20
        $region19: #{tpu_custom_call.1} parent=11 // pred_region
          _
        $region20: #{tpu_custom_call.1} parent=11 // pred_fallthru
          _
        // Predicated region
        $region21: #{tpu_custom_call.1} parent=11 // pred_check
          %p633 = pneg %p124
        $region22: #{tpu_custom_call.1} parent=11 // pred_check_branch
          %635 = sbr.rel (%p633) target = $region24
        $region23: #{tpu_custom_call.1} parent=11 // pred_region
          _
        $region24: #{tpu_custom_call.1} parent=11 // pred_fallthru
          _
        // Predicated region
        $region25: #{tpu_custom_call.1} parent=11 // pred_check
          %p636 = pneg %p145
        $region26: #{tpu_custom_call.1} parent=11 // pred_check_branch
          %638 = sbr.rel (%p636) target = $region28
        $region27: #{tpu_custom_call.1} parent=11 // pred_region
          _
        $region28: #{tpu_custom_call.1} parent=11 // pred_fallthru
          _
        // Predicated region
        $region29: #{tpu_custom_call.1} parent=11 // pred_check
          %p639 = pneg %p166
        $region30: #{tpu_custom_call.1} parent=11 // pred_check_branch
          %641 = sbr.rel (%p639) target = $region32
        $region31: #{tpu_custom_call.1} parent=11 // pred_region
          _
        $region32: #{tpu_custom_call.1} parent=11 // pred_fallthru
          _
        // Predicated region
        $region33: #{tpu_custom_call.1} parent=11 // pred_check
          %p642 = pneg %p187
        $region34: #{tpu_custom_call.1} parent=11 // pred_check_branch
          %644 = sbr.rel (%p642) target = $region36
        $region35: #{tpu_custom_call.1} parent=11 // pred_region
          _
        $region36: #{tpu_custom_call.1} parent=11 // pred_fallthru
          _
        // Predicated region
        $region37: #{tpu_custom_call.1} parent=11 // pred_check
          %p645 = pneg %p208
        $region38: #{tpu_custom_call.1} parent=11 // pred_check_branch
          %647 = sbr.rel (%p645) target = $region40
        $region39: #{tpu_custom_call.1} parent=11 // pred_region
          _
        $region40: #{tpu_custom_call.1} parent=11 // pred_fallthru
          _
        // Predicated region
        $region41: #{tpu_custom_call.1} parent=11 // pred_check
          %p648 = pneg %p229
        $region42: #{tpu_custom_call.1} parent=11 // pred_check_branch
          %650 = sbr.rel (%p648) target = $region44
        $region43: #{tpu_custom_call.1} parent=11 // pred_region
          _
        $region44: #{tpu_custom_call.1} parent=11 // pred_fallthru
          _
        // Predicated region
        $region45: #{tpu_custom_call.1} parent=11 // pred_check
          %p651 = pneg %p250
        $region46: #{tpu_custom_call.1} parent=11 // pred_check_branch
          %653 = sbr.rel (%p651) target = $region48
        $region47: #{tpu_custom_call.1} parent=11 // pred_region
          _
        $region48: #{tpu_custom_call.1} parent=11 // pred_fallthru
          _
        // Predicated region
        $region49: #{tpu_custom_call.1} parent=11 // pred_check
          %p654 = pneg %p271
        $region50: #{tpu_custom_call.1} parent=11 // pred_check_branch
          %656 = sbr.rel (%p654) target = $region52
        $region51: #{tpu_custom_call.1} parent=11 // pred_region
          _
        $region52: #{tpu_custom_call.1} parent=11 // pred_fallthru
          _
        // Predicated region
        $region53: #{tpu_custom_call.1} parent=11 // pred_check
          %p657 = pneg %p292
        $region54: #{tpu_custom_call.1} parent=11 // pred_check_branch
          %659 = sbr.rel (%p657) target = $region56
        $region55: #{tpu_custom_call.1} parent=11 // pred_region
          _
        $region56: #{tpu_custom_call.1} parent=11 // pred_fallthru
          _
        // Predicated region
        $region57: #{tpu_custom_call.1} parent=11 // pred_check
          %p660 = pneg %p313
        $region58: #{tpu_custom_call.1} parent=11 // pred_check_branch
          %662 = sbr.rel (%p660) target = $region60
        $region59: #{tpu_custom_call.1} parent=11 // pred_region
          _
        $region60: #{tpu_custom_call.1} parent=11 // pred_fallthru
          _
        // Predicated region
        $region61: #{tpu_custom_call.1} parent=11 // pred_check
          %p663 = pneg %p334
        $region62: #{tpu_custom_call.1} parent=11 // pred_check_branch
          %665 = sbr.rel (%p663) target = $region64
        $region63: #{tpu_custom_call.1} parent=11 // pred_region
          _
        $region64: #{tpu_custom_call.1} parent=11 // pred_fallthru
          _
        // Predicated region
        $region65: #{tpu_custom_call.1} parent=11 // pred_check
          %p666 = pneg %p355
        $region66: #{tpu_custom_call.1} parent=11 // pred_check_branch
          %668 = sbr.rel (%p666) target = $region68
        $region67: #{tpu_custom_call.1} parent=11 // pred_region
          _
        $region68: #{tpu_custom_call.1} parent=11 // pred_fallthru
          _
        // Predicated region
        $region69: #{tpu_custom_call.1} parent=11 // pred_check
          %p669 = pneg %p376
        $region70: #{tpu_custom_call.1} parent=11 // pred_check_branch
          %671 = sbr.rel (%p669) target = $region72
        $region71: #{tpu_custom_call.1} parent=11 // pred_region
          _
        $region72: #{tpu_custom_call.1} parent=11 // pred_fallthru
          _
        // Predicated region
        $region73: #{tpu_custom_call.1} parent=11 // pred_check
          %p672 = pneg %p397
        $region74: #{tpu_custom_call.1} parent=11 // pred_check_branch
          %674 = sbr.rel (%p672) target = $region76
        $region75: #{tpu_custom_call.1} parent=11 // pred_region
          _
        $region76: #{tpu_custom_call.1} parent=11 // pred_fallthru
          _
        // Predicated region
        $region77: #{tpu_custom_call.1} parent=11 // pred_check
          %p675 = pneg %p418
        $region78: #{tpu_custom_call.1} parent=11 // pred_check_branch
          %677 = sbr.rel (%p675) target = $region80
        $region79: #{tpu_custom_call.1} parent=11 // pred_region
          _
        $region80: #{tpu_custom_call.1} parent=11 // pred_fallthru
          _
        // Predicated region
        $region81: #{tpu_custom_call.1} parent=11 // pred_check
          %p678 = pneg %p439
        $region82: #{tpu_custom_call.1} parent=11 // pred_check_branch
          %680 = sbr.rel (%p678) target = $region84
        $region83: #{tpu_custom_call.1} parent=11 // pred_region
          _
        $region84: #{tpu_custom_call.1} parent=11 // pred_fallthru
          _
        // Predicated region
        $region85: #{tpu_custom_call.1} parent=11 // pred_check
          %p681 = pneg %p460
        $region86: #{tpu_custom_call.1} parent=11 // pred_check_branch
          %683 = sbr.rel (%p681) target = $region88
        $region87: #{tpu_custom_call.1} parent=11 // pred_region
          _
        $region88: #{tpu_custom_call.1} parent=11 // pred_fallthru
          _
        // Predicated region
        $region89: #{tpu_custom_call.1} parent=11 // pred_check
          %p684 = pneg %p481
        $region90: #{tpu_custom_call.1} parent=11 // pred_check_branch
          %686 = sbr.rel (%p684) target = $region92
        $region91: #{tpu_custom_call.1} parent=11 // pred_region
          _
        $region92: #{tpu_custom_call.1} parent=11 // pred_fallthru
          _
        // Predicated region
        $region93: #{tpu_custom_call.1} parent=11 // pred_check
          %p687 = pneg %p502
        $region94: #{tpu_custom_call.1} parent=11 // pred_check_branch
          %689 = sbr.rel (%p687) target = $region96
        $region95: #{tpu_custom_call.1} parent=11 // pred_region
          _
        $region96: #{tpu_custom_call.1} parent=11 // pred_fallthru
          _
        // Predicated region
        $region97: #{tpu_custom_call.1} parent=11 // pred_check
          %p690 = pneg %p523
        $region98: #{tpu_custom_call.1} parent=11 // pred_check_branch
          %692 = sbr.rel (%p690) target = $region100
        $region99: #{tpu_custom_call.1} parent=11 // pred_region
          _
        $region100: #{tpu_custom_call.1} parent=11 // pred_fallthru
          _
        // Predicated region
        $region101: #{tpu_custom_call.1} parent=11 // pred_check
          %p693 = pneg %p544
        $region102: #{tpu_custom_call.1} parent=11 // pred_check_branch
          %695 = sbr.rel (%p693) target = $region104
        $region103: #{tpu_custom_call.1} parent=11 // pred_region
          _
        $region104: #{tpu_custom_call.1} parent=11 // pred_fallthru
          _
        // Predicated region
        $region105: #{tpu_custom_call.1} parent=11 // pred_check
          %p696 = pneg %p565
        $region106: #{tpu_custom_call.1} parent=11 // pred_check_branch
          %698 = sbr.rel (%p696) target = $region108
        $region107: #{tpu_custom_call.1} parent=11 // pred_region
          _
        $region108: #{tpu_custom_call.1} parent=11 // pred_fallthru
          _
        // Predicated region
        $region109: #{tpu_custom_call.1} parent=11 // pred_check
          %p699 = pneg %p586
        $region110: #{tpu_custom_call.1} parent=11 // pred_check_branch
          %701 = sbr.rel (%p699) target = $region112
        $region111: #{tpu_custom_call.1} parent=11 // pred_region
          _
        $region112: #{tpu_custom_call.1} parent=11 // pred_fallthru
          _
      $region12: #{tpu_custom_call.1} parent=5 // pred_fallthru
        _
      %p702 = scmp.lt.s32.totalorder %s35, 2
      // Predicated region
      $region113: #{tpu_custom_call.1} parent=5 // pred_check
        %p703 = pneg %p702
      $region114: #{tpu_custom_call.1} parent=5 // pred_check_branch
        %705 = sbr.rel (%p703) target = $region116
      $region115: #{tpu_custom_call.1} parent=5 // pred_region
        // Predicated region
        $region117: #{tpu_custom_call.1} parent=115 // pred_check
          %p706 = pneg %p55
        $region118: #{tpu_custom_call.1} parent=115 // pred_check_branch
          %708 = sbr.rel (%p706) target = $region120
        $region119: #{tpu_custom_call.1} parent=115 // pred_region
          %p709 = scmp.lt.s32.totalorder %s35, 1
          %s710 = scalar_select %p709, %s35, 1
          %s711 = smul.addr %s710, 2
          %s712 = smul.addr %s711, 4
          %s713 = scalar_lea.vmem %s0, %s712
        $region120: #{tpu_custom_call.1} parent=115 // pred_fallthru
          _
      $region116: #{tpu_custom_call.1} parent=5 // pred_fallthru
        _
      %p714 = scmp.le.s32.totalorder 1, %s35
      %p715 = scmp.lt.s32.totalorder %s35, 3
      %p716 = pnand %p714, %p715
      %p717 = pneg %p716
      // Predicated region
      $region121: #{tpu_custom_call.1} parent=5 // pred_check
        _
      $region122: #{tpu_custom_call.1} parent=5 // pred_check_branch
        %719 = sbr.rel (%p716) target = $region124
      $region123: #{tpu_custom_call.1} parent=5 // pred_region
        %s720 = ssub.s32 %s35, 1
        %p721 = scmp.lt.s32.totalorder %s40, 1
        %s722 = scalar_select %p721, %s40, 1
        %s723 = smul.addr %s722, 2
        %s724 = smul.addr %s723, 4
        %s725 = scalar_lea.vmem %s0, %s724
        %p726 = pneg %p61
        %p727 = pneg %p58
        %p728 = pneg %p82
        %p729 = pneg %p79
        %p730 = pneg %p103
        %p731 = pneg %p100
        %p732 = pneg %p124
        %p733 = pneg %p121
        %p734 = pneg %p145
        %p735 = pneg %p142
        %p736 = pneg %p166
        %p737 = pneg %p163
        %p738 = pneg %p187
        %p739 = pneg %p184
        %p740 = pneg %p208
        %p741 = pneg %p205
        %p742 = pneg %p229
        %p743 = pneg %p226
        %p744 = pneg %p250
        %p745 = pneg %p247
        %p746 = pneg %p271
        %p747 = pneg %p268
        %p748 = pneg %p292
        %p749 = pneg %p289
        %p750 = pneg %p313
        %p751 = pneg %p310
        %p752 = pneg %p334
        %p753 = pneg %p331
        %p754 = pneg %p355
        %p755 = pneg %p352
        %p756 = pneg %p376
        %p757 = pneg %p373
        %p758 = pneg %p397
        %p759 = pneg %p394
        %p760 = pneg %p418
        %p761 = pneg %p415
        %p762 = pneg %p439
        %p763 = pneg %p436
        %p764 = pneg %p460
        %p765 = pneg %p457
        %p766 = pneg %p481
        %p767 = pneg %p478
        %p768 = pneg %p502
        %p769 = pneg %p499
        %p770 = pneg %p523
        %p771 = pneg %p520
        %p772 = pneg %p544
        %p773 = pneg %p541
        %p774 = pneg %p565
        %p775 = pneg %p562
        %p776 = pneg %p586
        %p777 = pneg %p583
        %p778 = pneg %p612
        %p779 = pneg %p609
        %s780 = sand.u32 %s599, 1
        %s781 = scalar_lea.sflag [#allocation3], %s780
        %s782 = sand.u32 %s599, 1
        %s783 = scalar_lea.vmem [#allocation2], %s782
        %p784 = scmp.lt.s32.totalorder %s40, 1
        %s785 = scalar_select %p784, %s40, 1
        %s786 = smul.addr %s785, 2
        %s787 = smul.addr %s786, 4
        %s788 = scalar_lea.vmem %s0, %s787
        %v790 = vld [vmem:[%s788] sm:$0xff]
        %v791 = vld [vmem:[%s2] sm:$0xff]
        %v792 = vld [vmem:[%s2 + $0x8] sm:$0xff]
        %v793 = vld [vmem:[%s2 + $0x10] sm:$0xff]
        %v794 = vld [vmem:[%s2 + $0x18] sm:$0xff]
        %v795 = vld [vmem:[%s2 + $0x20] sm:$0xff]
        %v796 = vld [vmem:[%s2 + $0x28] sm:$0xff]
        %v797 = vld [vmem:[%s2 + $0x30] sm:$0xff]
        %v798 = vld [vmem:[%s2 + $0x38] sm:$0xff]
        %v799 = vld [vmem:[%s2 + $0x40] sm:$0xff]
        %v800 = vld [vmem:[%s2 + $0x48] sm:$0xff]
        %v801 = vld [vmem:[%s2 + $0x50] sm:$0xff]
        %v802 = vld [vmem:[%s2 + $0x58] sm:$0xff]
        %v803 = vld [vmem:[%s2 + $0x60] sm:$0xff]
        %v804 = vld [vmem:[%s2 + $0x68] sm:$0xff]
        %v805 = vld [vmem:[%s2 + $0x70] sm:$0xff]
        %v806 = vld [vmem:[%s2 + $0x78] sm:$0xff]
        %v807 = vld [vmem:[%s2 + $0x80] sm:$0xff]
        %v808 = vld [vmem:[%s2 + $0x88] sm:$0xff]
        %v809 = vld [vmem:[%s2 + $0x90] sm:$0xff]
        %v810 = vld [vmem:[%s2 + $0x98] sm:$0xff]
        %v811 = vld [vmem:[%s2 + $0xa0] sm:$0xff]
        %v812 = vld [vmem:[%s2 + $0xa8] sm:$0xff]
        %v813 = vld [vmem:[%s2 + $0xb0] sm:$0xff]
        %v814 = vld [vmem:[%s2 + $0xb8] sm:$0xff]
        %v815 = vld [vmem:[%s2 + $0xc0] sm:$0xff]
        %v816 = vld [vmem:[%s2 + $0xc8] sm:$0xff]
        %v817 = vld [vmem:[%s2 + $0xd0] sm:$0xff]
        %v818 = vld [vmem:[%s2 + $0xd8] sm:$0xff]
        %v819 = vld [vmem:[%s2 + $0xe0] sm:$0xff]
        %v820 = vld [vmem:[%s2 + $0xe8] sm:$0xff]
        %v821 = vld [vmem:[%s2 + $0xf0] sm:$0xff]
        %v822 = vld [vmem:[%s2 + $0xf8] sm:$0xff]
        %v823 = vld [vmem:[%s3] sm:$0x1]
        %v825 = vperm.slane %v823, 0
        %828 = vst [vmem:[#allocation1] ss:$2 sm:$0xff] %v790
        %v829 = vld.sshfl [vmem:[#allocation1] sm:$0xff pattern:$0x75316420]
        %v830 = vld.sshfl [vmem:[#allocation1 + $0x8] sm:$0xff pattern:$0x75316420]
        %833 = vmatpush.msra.mxu0 %v806
        %834 = vmatpush.msra.mxu0 %v805
        %835 = vmatpush.msra.mxu0 %v804
        %836 = vmatpush.msra.mxu0 %v803
        %837 = vmatpush.msra.mxu0 %v802
        %838 = vmatpush.msra.mxu0 %v801
        %839 = vmatpush.msra.mxu0 %v800
        %840 = vmatpush.msra.mxu0 %v799
        %841 = vmatpush.msra.mxu0 %v798
        %842 = vmatpush.msra.mxu0 %v797
        %843 = vmatpush.msra.mxu0 %v796
        %844 = vmatpush.msra.mxu0 %v795
        %845 = vmatpush.msra.mxu0 %v794
        %846 = vmatpush.msra.mxu0 %v793
        %847 = vmatpush.msra.mxu0 %v792
        %848 = vmatpush.msra.mxu0 %v791
        %849 = vmatmul.f32.gmra.mxu0 %v829
        %v850 = vpop.f32.mrf.mxu0
        %v851 = vadd.f32 %v825, %v850
        %852 = vdwg.mxu0
        %853 = vmatpush.msra.mxu0 %v822
        %854 = vmatpush.msra.mxu0 %v821
        %855 = vmatpush.msra.mxu0 %v820
        %856 = vmatpush.msra.mxu0 %v819
        %857 = vmatpush.msra.mxu0 %v818
        %858 = vmatpush.msra.mxu0 %v817
        %859 = vmatpush.msra.mxu0 %v816
        %860 = vmatpush.msra.mxu0 %v815
        %861 = vmatpush.msra.mxu0 %v814
        %862 = vmatpush.msra.mxu0 %v813
        %863 = vmatpush.msra.mxu0 %v812
        %864 = vmatpush.msra.mxu0 %v811
        %865 = vmatpush.msra.mxu0 %v810
        %866 = vmatpush.msra.mxu0 %v809
        %867 = vmatpush.msra.mxu0 %v808
        %868 = vmatpush.msra.mxu0 %v807
        %869 = vmatmul.f32.gmra.mxu0 %v830
        %v870 = vpop.f32.mrf.mxu0
        %v871 = vadd.f32 %v851, %v870
        %872 = vdwg.mxu0
        %v873 = vld [vmem:[%s4] sm:$0x1]
        %v874 = vld [vmem:[%s5] sm:$0x1]
        %vm875 = vcmask 257024
        %v876 = vsel %vm875, %v871, 0.0
        %877 = vadd.xlane.f32.xlu0 %v876
        %v878 = vpop.xlane.xlu0 %877
        %v879 = vrcp.pop 32.0
        %v880 = vmul.f32 32.0, %v879
        %v881 = vsub.f32 1.0, %v880
        %v882 = vmul.f32 %v879, %v881
        %v883 = vadd.f32 %v879, %v882
        %vm884 = vweird.f32 %v879
        %v885 = vsel %vm884, %v879, %v883
        %v886 = vmul.f32 %v878, %v885
        %v887 = vsub.f32 %v871, %v886
        %v888 = vmul.f32 %v887, %v887
        %v889 = vsel %vm875, %v888, 0.0
        %890 = vadd.xlane.f32.xlu0 %v889
        %v891 = vpop.xlane.xlu0 %890
        %v892 = vmul.f32 %v891, %v885
        %v893 = vadd.f32 %v892, 1e-05
        %v894 = vrsqrt.pop %v893
        %v895 = vmul.f32 %v894, %v893
        %v896 = vmul.f32 %v895, %v894
        %v897 = vmul.f32 0.5, %v896
        %v898 = vsub.f32 1.5, %v897
        %v899 = vmul.f32 %v894, %v898
        %vm900 = vweird.f32 %v893
        %vm901 = vweird.f32 %v894
        %vm902 = vmor %vm900, %vm901
        %v903 = vsel %vm902, %v894, %v899
        %v904 = vmul.f32 %v887, %v903
        %v906 = vperm.slane %v873, 0
        %v908 = vmul.f32 %v904, %v906
        %v910 = vperm.slane %v874, 0
        %v912 = vadd.f32 %v908, %v910
        %v913 = vld [vmem:[%s1] sm:$0xf]
        %v914 = vadd.f32 %v912, %v913
        %v915 = vld [vmem:[%s6] sm:$0xf]
        %v916 = vld [vmem:[%s6 + $0x4] sm:$0xf]
        %v917 = vld [vmem:[%s6 + $0x8] sm:$0xf]
        %v918 = vld [vmem:[%s6 + $0xc] sm:$0xf]
        %v919 = vpack.c.bf16 %v914, %v914
        %v920 = vld [vmem:[%s7] sm:$0x1]
        %v922 = vperm.slane %v920, 0
        %v928 = vunpack.c.l.b16 %v915
        %v929 = vunpack.c.l.b16 %v916
        %v930 = vunpack.c.l.b16 %v917
        %v931 = vunpack.c.l.b16 %v918
        %v932 = vpack.c.b16 %v929, %v928
        %v933 = vpack.c.b16 %v931, %v930
        %vm936 = vcmask 261120
        %v938 = vsel %vm936, %v919, 0
        %940 = vmatpush.bf16.msra.mxu0 0
        %941 = vmatpush.bf16.msra.mxu0 0
        %942 = vmatpush.bf16.msra.mxu0 0
        %943 = vmatpush.bf16.msra.mxu0 0
        %944 = vmatpush.bf16.msra.mxu0 0
        %945 = vmatpush.bf16.msra.mxu0 0
        %946 = vmatpush.bf16.msra.mxu0 %v933
        %947 = vmatpush.bf16.msra.mxu0 %v932
        %948 = vmatmul.bf16.gmra.mxu0 %v938
        %v949 = vpop.f32.mrf.mxu0
        %v950 = vadd.f32 %v922, %v949
        %v951 = vpop.f32.mrf.mxu0
        %952 = vdwg.mxu0
        %954 = vrot.lane.b32.xlu0 %v950, 120
        %v955 = vpop.permute.xlu0 %954
        %956 = vrot.lane.b32.xlu0 %v950, 112
        %v957 = vpop.permute.xlu0 %956
        %958 = vrot.lane.b32.xlu0 %v950, 104
        %v959 = vpop.permute.xlu0 %958
        %v960 = vld [vmem:[%s8] sm:$0xf]
        %v961 = vld [vmem:[%s8 + $0x4] sm:$0xf]
        %v962 = vld [vmem:[%s8 + $0x8] sm:$0xf]
        %v963 = vld [vmem:[%s8 + $0xc] sm:$0xf]
        %v964 = vld [vmem:[%s9] sm:$0x1]
        %v966 = vperm.slane %v964, 0
        %v972 = vunpack.c.l.b16 %v960
        %v973 = vunpack.c.l.b16 %v961
        %v974 = vunpack.c.l.b16 %v962
        %v975 = vunpack.c.l.b16 %v963
        %v976 = vpack.c.b16 %v973, %v972
        %v977 = vpack.c.b16 %v975, %v974
        %980 = vmatpush.bf16.msra.mxu0 0
        %981 = vmatpush.bf16.msra.mxu0 0
        %982 = vmatpush.bf16.msra.mxu0 0
        %983 = vmatpush.bf16.msra.mxu0 0
        %984 = vmatpush.bf16.msra.mxu0 0
        %985 = vmatpush.bf16.msra.mxu0 0
        %986 = vmatpush.bf16.msra.mxu0 %v977
        %987 = vmatpush.bf16.msra.mxu0 %v976
        %988 = vmatmul.bf16.gmra.mxu0 %v938
        %v989 = vpop.f32.mrf.mxu0
        %v990 = vadd.f32 %v966, %v989
        %v991 = vpop.f32.mrf.mxu0
        %992 = vdwg.mxu0
        %994 = vrot.lane.b32.xlu0 %v990, 120
        %v995 = vpop.permute.xlu0 %994
        %996 = vrot.lane.b32.xlu0 %v990, 112
        %v997 = vpop.permute.xlu0 %996
        %998 = vrot.lane.b32.xlu0 %v990, 104
        %v999 = vpop.permute.xlu0 %998
        %v1000 = vld [vmem:[%s10] sm:$0xf]
        %v1001 = vld [vmem:[%s10 + $0x4] sm:$0xf]
        %v1002 = vld [vmem:[%s10 + $0x8] sm:$0xf]
        %v1003 = vld [vmem:[%s10 + $0xc] sm:$0xf]
        %v1004 = vld [vmem:[%s11] sm:$0x1]
        %v1006 = vperm.slane %v1004, 0
        %v1012 = vunpack.c.l.b16 %v1000
        %v1013 = vunpack.c.l.b16 %v1001
        %v1014 = vunpack.c.l.b16 %v1002
        %v1015 = vunpack.c.l.b16 %v1003
        %v1016 = vpack.c.b16 %v1013, %v1012
        %v1017 = vpack.c.b16 %v1015, %v1014
        %1020 = vmatpush.bf16.msra.mxu0 0
        %1021 = vmatpush.bf16.msra.mxu0 0
        %1022 = vmatpush.bf16.msra.mxu0 0
        %1023 = vmatpush.bf16.msra.mxu0 0
        %1024 = vmatpush.bf16.msra.mxu0 0
        %1025 = vmatpush.bf16.msra.mxu0 0
        %1026 = vmatpush.bf16.msra.mxu0 %v1017
        %1027 = vmatpush.bf16.msra.mxu0 %v1016
        %1028 = vmatmul.bf16.gmra.mxu0 %v938
        %v1029 = vpop.f32.mrf.mxu0
        %v1030 = vadd.f32 %v1006, %v1029
        %v1031 = vpop.f32.mrf.mxu0
        %1032 = vdwg.mxu0
        %1034 = vrot.lane.b32.xlu0 %v1030, 120
        %v1035 = vpop.permute.xlu0 %1034
        %1036 = vrot.lane.b32.xlu0 %v1030, 112
        %v1037 = vpop.permute.xlu0 %1036
        %1038 = vrot.lane.b32.xlu0 %v1030, 104
        %v1039 = vpop.permute.xlu0 %1038
        %vm1040 = vcmask 64512
        %v1041 = vsel %vm1040, %v950, 0
        %v1043 = vsel %vm1040, %v990, 0
        %1045 = vmatpush.xpose.msra.mxu0 0.0
        %1046 = vmatpush.xpose.msra.mxu0 0.0
        %1047 = vmatpush.xpose.msra.mxu0 0.0
        %1048 = vmatpush.xpose.msra.mxu0 0.0
        %1049 = vmatpush.xpose.msra.mxu0 0.0
        %1050 = vmatpush.xpose.msra.mxu0 0.0
        %1051 = vmatpush.xpose.msra.mxu0 0.0
        %1052 = vmatpush.xpose.msra.mxu0 0.0
        %1053 = vmatpush.xpose.msra.mxu0 0.0
        %1054 = vmatpush.xpose.msra.mxu0 0.0
        %1055 = vmatpush.xpose.msra.mxu0 0.0
        %1056 = vmatpush.xpose.msra.mxu0 0.0
        %1057 = vmatpush.xpose.msra.mxu0 0.0
        %1058 = vmatpush.xpose.msra.mxu0 0.0
        %1059 = vmatpush.xpose.msra.mxu0 0.0
        %1060 = vmatpush.xpose.msra.mxu0 %v1043
        %1061 = vmatmul.f32.gmra.mxu0 %v1041
        %v1062 = vpop.f32.mrf.mxu0
        %v1063 = vadd.f32 0.0, %v1062
        %1064 = vdwg.mxu0
        %v1065 = vsel %vm1040, %v955, 0
        %v1067 = vsel %vm1040, %v995, 0
        %1069 = vmatpush.xpose.msra.mxu0 0.0
        %1070 = vmatpush.xpose.msra.mxu0 0.0
        %1071 = vmatpush.xpose.msra.mxu0 0.0
        %1072 = vmatpush.xpose.msra.mxu0 0.0
        %1073 = vmatpush.xpose.msra.mxu0 0.0
        %1074 = vmatpush.xpose.msra.mxu0 0.0
        %1075 = vmatpush.xpose.msra.mxu0 0.0
        %1076 = vmatpush.xpose.msra.mxu0 0.0
        %1077 = vmatpush.xpose.msra.mxu0 0.0
        %1078 = vmatpush.xpose.msra.mxu0 0.0
        %1079 = vmatpush.xpose.msra.mxu0 0.0
        %1080 = vmatpush.xpose.msra.mxu0 0.0
        %1081 = vmatpush.xpose.msra.mxu0 0.0
        %1082 = vmatpush.xpose.msra.mxu0 0.0
        %1083 = vmatpush.xpose.msra.mxu0 0.0
        %1084 = vmatpush.xpose.msra.mxu0 %v1067
        %1085 = vmatmul.f32.gmra.mxu0 %v1065
        %v1086 = vpop.f32.mrf.mxu0
        %v1087 = vadd.f32 0.0, %v1086
        %1088 = vdwg.mxu0
        %v1089 = vsel %vm1040, %v957, 0
        %v1091 = vsel %vm1040, %v997, 0
        %1093 = vmatpush.xpose.msra.mxu0 0.0
        %1094 = vmatpush.xpose.msra.mxu0 0.0
        %1095 = vmatpush.xpose.msra.mxu0 0.0
        %1096 = vmatpush.xpose.msra.mxu0 0.0
        %1097 = vmatpush.xpose.msra.mxu0 0.0
        %1098 = vmatpush.xpose.msra.mxu0 0.0
        %1099 = vmatpush.xpose.msra.mxu0 0.0
        %1100 = vmatpush.xpose.msra.mxu0 0.0
        %1101 = vmatpush.xpose.msra.mxu0 0.0
        %1102 = vmatpush.xpose.msra.mxu0 0.0
        %1103 = vmatpush.xpose.msra.mxu0 0.0
        %1104 = vmatpush.xpose.msra.mxu0 0.0
        %1105 = vmatpush.xpose.msra.mxu0 0.0
        %1106 = vmatpush.xpose.msra.mxu0 0.0
        %1107 = vmatpush.xpose.msra.mxu0 0.0
        %1108 = vmatpush.xpose.msra.mxu0 %v1091
        %1109 = vmatmul.f32.gmra.mxu0 %v1089
        %v1110 = vpop.f32.mrf.mxu0
        %v1111 = vadd.f32 0.0, %v1110
        %1112 = vdwg.mxu0
        %v1113 = vsel %vm1040, %v959, 0
        %v1115 = vsel %vm1040, %v999, 0
        %1117 = vmatpush.xpose.msra.mxu0 0.0
        %1118 = vmatpush.xpose.msra.mxu0 0.0
        %1119 = vmatpush.xpose.msra.mxu0 0.0
        %1120 = vmatpush.xpose.msra.mxu0 0.0
        %1121 = vmatpush.xpose.msra.mxu0 0.0
        %1122 = vmatpush.xpose.msra.mxu0 0.0
        %1123 = vmatpush.xpose.msra.mxu0 0.0
        %1124 = vmatpush.xpose.msra.mxu0 0.0
        %1125 = vmatpush.xpose.msra.mxu0 0.0
        %1126 = vmatpush.xpose.msra.mxu0 0.0
        %1127 = vmatpush.xpose.msra.mxu0 0.0
        %1128 = vmatpush.xpose.msra.mxu0 0.0
        %1129 = vmatpush.xpose.msra.mxu0 0.0
        %1130 = vmatpush.xpose.msra.mxu0 0.0
        %1131 = vmatpush.xpose.msra.mxu0 0.0
        %1132 = vmatpush.xpose.msra.mxu0 %v1115
        %1133 = vmatmul.f32.gmra.mxu0 %v1113
        %v1134 = vpop.f32.mrf.mxu0
        %v1135 = vadd.f32 0.0, %v1134
        %1136 = vdwg.mxu0
        %vm1137 = vcmask 27648
        %v1138 = vsel %vm1137, %v1063, -inf
        %1139 = vmax.xlane.f32.xlu0 %v1138
        %v1140 = vpop.xlane.xlu0 %1139
        %v1141 = vsel %vm1137, %v1087, -inf
        %1142 = vmax.xlane.f32.xlu0 %v1141
        %v1143 = vpop.xlane.xlu0 %1142
        %v1144 = vsel %vm1137, %v1111, -inf
        %1145 = vmax.xlane.f32.xlu0 %v1144
        %v1146 = vpop.xlane.xlu0 %1145
        %v1147 = vsel %vm1137, %v1135, -inf
        %1148 = vmax.xlane.f32.xlu0 %v1147
        %v1149 = vpop.xlane.xlu0 %1148
        %v1150 = vsub.f32 %v1063, %v1140
        %v1151 = vsub.f32 %v1087, %v1143
        %v1152 = vsub.f32 %v1111, %v1146
        %v1153 = vsub.f32 %v1135, %v1149
        %v1154 = vmul.f32 %v1150, 1.442695
        %v1155 = vpow.pop %v1154
        %v1156 = vmul.f32 %v1151, 1.442695
        %v1157 = vpow.pop %v1156
        %v1158 = vmul.f32 %v1152, 1.442695
        %v1159 = vpow.pop %v1158
        %v1160 = vmul.f32 %v1153, 1.442695
        %v1161 = vpow.pop %v1160
        %v1162 = vsel %vm1137, %v1155, 0.0
        %1163 = vadd.xlane.f32.xlu0 %v1162
        %v1164 = vpop.xlane.xlu0 %1163
        %v1165 = vsel %vm1137, %v1157, 0.0
        %1166 = vadd.xlane.f32.xlu0 %v1165
        %v1167 = vpop.xlane.xlu0 %1166
        %v1168 = vsel %vm1137, %v1159, 0.0
        %1169 = vadd.xlane.f32.xlu0 %v1168
        %v1170 = vpop.xlane.xlu0 %1169
        %v1171 = vsel %vm1137, %v1161, 0.0
        %1172 = vadd.xlane.f32.xlu0 %v1171
        %v1173 = vpop.xlane.xlu0 %1172
        %v1174 = vrcp.pop %v1164
        %v1175 = vrcp.pop %v1167
        %v1176 = vrcp.pop %v1170
        %v1177 = vrcp.pop %v1173
        %v1178 = vmul.f32 %v1155, %v1174
        %v1179 = vmul.f32 %v1157, %v1175
        %v1180 = vmul.f32 %v1159, %v1176
        %v1181 = vmul.f32 %v1161, %v1177
        %vm1182 = vcmask 31744
        %v1184 = vsel %vm1182, %v1178, 0
        %vm1186 = vcmask 1043456
        %v1187 = vsel %vm1186, %v1030, 0
        %1189 = vmatpush.msra.mxu0 0.0
        %1190 = vmatpush.msra.mxu0 0.0
        %1191 = vmatpush.msra.mxu0 0.0
        %1192 = vmatpush.msra.mxu0 0.0
        %1193 = vmatpush.msra.mxu0 0.0
        %1194 = vmatpush.msra.mxu0 0.0
        %1195 = vmatpush.msra.mxu0 0.0
        %1196 = vmatpush.msra.mxu0 0.0
        %1197 = vmatpush.msra.mxu0 0.0
        %1198 = vmatpush.msra.mxu0 0.0
        %1199 = vmatpush.msra.mxu0 0.0
        %1200 = vmatpush.msra.mxu0 0.0
        %1201 = vmatpush.msra.mxu0 0.0
        %1202 = vmatpush.msra.mxu0 0.0
        %1203 = vmatpush.msra.mxu0 0.0
        %1204 = vmatpush.msra.mxu0 %v1187
        %1205 = vmatmul.f32.gmra.mxu0 %v1184
        %v1206 = vpop.f32.mrf.mxu0
        %v1207 = vadd.f32 0.0, %v1206
        %1208 = vdwg.mxu0
        %v1210 = vsel %vm1182, %v1179, 0
        %v1212 = vsel %vm1186, %v1035, 0
        %1214 = vmatpush.msra.mxu0 0.0
        %1215 = vmatpush.msra.mxu0 0.0
        %1216 = vmatpush.msra.mxu0 0.0
        %1217 = vmatpush.msra.mxu0 0.0
        %1218 = vmatpush.msra.mxu0 0.0
        %1219 = vmatpush.msra.mxu0 0.0
        %1220 = vmatpush.msra.mxu0 0.0
        %1221 = vmatpush.msra.mxu0 0.0
        %1222 = vmatpush.msra.mxu0 0.0
        %1223 = vmatpush.msra.mxu0 0.0
        %1224 = vmatpush.msra.mxu0 0.0
        %1225 = vmatpush.msra.mxu0 0.0
        %1226 = vmatpush.msra.mxu0 0.0
        %1227 = vmatpush.msra.mxu0 0.0
        %1228 = vmatpush.msra.mxu0 0.0
        %1229 = vmatpush.msra.mxu0 %v1212
        %1230 = vmatmul.f32.gmra.mxu0 %v1210
        %v1231 = vpop.f32.mrf.mxu0
        %v1232 = vadd.f32 0.0, %v1231
        %1233 = vdwg.mxu0
        %v1235 = vsel %vm1182, %v1180, 0
        %v1237 = vsel %vm1186, %v1037, 0
        %1239 = vmatpush.msra.mxu0 0.0
        %1240 = vmatpush.msra.mxu0 0.0
        %1241 = vmatpush.msra.mxu0 0.0
        %1242 = vmatpush.msra.mxu0 0.0
        %1243 = vmatpush.msra.mxu0 0.0
        %1244 = vmatpush.msra.mxu0 0.0
        %1245 = vmatpush.msra.mxu0 0.0
        %1246 = vmatpush.msra.mxu0 0.0
        %1247 = vmatpush.msra.mxu0 0.0
        %1248 = vmatpush.msra.mxu0 0.0
        %1249 = vmatpush.msra.mxu0 0.0
        %1250 = vmatpush.msra.mxu0 0.0
        %1251 = vmatpush.msra.mxu0 0.0
        %1252 = vmatpush.msra.mxu0 0.0
        %1253 = vmatpush.msra.mxu0 0.0
        %1254 = vmatpush.msra.mxu0 %v1237
        %1255 = vmatmul.f32.gmra.mxu0 %v1235
        %v1256 = vpop.f32.mrf.mxu0
        %v1257 = vadd.f32 0.0, %v1256
        %1258 = vdwg.mxu0
        %v1260 = vsel %vm1182, %v1181, 0
        %v1262 = vsel %vm1186, %v1039, 0
        %1264 = vmatpush.msra.mxu0 0.0
        %1265 = vmatpush.msra.mxu0 0.0
        %1266 = vmatpush.msra.mxu0 0.0
        %1267 = vmatpush.msra.mxu0 0.0
        %1268 = vmatpush.msra.mxu0 0.0
        %1269 = vmatpush.msra.mxu0 0.0
        %1270 = vmatpush.msra.mxu0 0.0
        %1271 = vmatpush.msra.mxu0 0.0
        %1272 = vmatpush.msra.mxu0 0.0
        %1273 = vmatpush.msra.mxu0 0.0
        %1274 = vmatpush.msra.mxu0 0.0
        %1275 = vmatpush.msra.mxu0 0.0
        %1276 = vmatpush.msra.mxu0 0.0
        %1277 = vmatpush.msra.mxu0 0.0
        %1278 = vmatpush.msra.mxu0 0.0
        %1279 = vmatpush.msra.mxu0 %v1262
        %1280 = vmatmul.f32.gmra.mxu0 %v1260
        %v1281 = vpop.f32.mrf.mxu0
        %v1282 = vadd.f32 0.0, %v1281
        %1283 = vdwg.mxu0
        %v1284 = vld [vmem:[%s12] sm:$0xf]
        %v1285 = vld [vmem:[%s12 + $0x4] sm:$0xf]
        %v1286 = vld [vmem:[%s12 + $0x8] sm:$0xf]
        %v1287 = vld [vmem:[%s12 + $0xc] sm:$0xf]
        %v1288 = vpack.c.bf16 %v1207, %v1207
        %v1289 = vpack.c.bf16 %v1232, %v1232
        %v1291 = vsel %vm1040, %v1289, 0
        %v1294 = vsel %vm1186, %v1285, 0
        %1296 = vmatpush.bf16.msra.mxu0 0
        %1297 = vmatpush.bf16.msra.mxu0 0
        %1298 = vmatpush.bf16.msra.mxu0 0
        %1299 = vmatpush.bf16.msra.mxu0 0
        %1300 = vmatpush.bf16.msra.mxu0 0
        %1301 = vmatpush.bf16.msra.mxu0 0
        %1302 = vmatpush.bf16.msra.mxu0 0
        %1303 = vmatpush.bf16.msra.mxu0 %v1294
        %1304 = vmatmul.bf16.gmra.mxu0 %v1291
        %v1305 = vpop.f32.mrf.mxu0
        %v1306 = vadd.f32 0.0, %v1305
        %v1307 = vpop.f32.mrf.mxu0
        %1308 = vdwg.mxu0
        %v1310 = vsel %vm1040, %v1288, 0
        %v1313 = vsel %vm1186, %v1284, 0
        %1315 = vmatpush.bf16.msra.mxu0 0
        %1316 = vmatpush.bf16.msra.mxu0 0
        %1317 = vmatpush.bf16.msra.mxu0 0
        %1318 = vmatpush.bf16.msra.mxu0 0
        %1319 = vmatpush.bf16.msra.mxu0 0
        %1320 = vmatpush.bf16.msra.mxu0 0
        %1321 = vmatpush.bf16.msra.mxu0 0
        %1322 = vmatpush.bf16.msra.mxu0 %v1313
        %1323 = vmatmul.bf16.gmra.mxu0 %v1310
        %v1324 = vpop.f32.mrf.mxu0
        %v1325 = vadd.f32 %v1306, %v1324
        %v1326 = vpop.f32.mrf.mxu0
        %1327 = vdwg.mxu0
        %v1328 = vpack.c.bf16 %v1257, %v1257
        %v1330 = vsel %vm1040, %v1328, 0
        %v1333 = vsel %vm1186, %v1286, 0
        %1335 = vmatpush.bf16.msra.mxu0 0
        %1336 = vmatpush.bf16.msra.mxu0 0
        %1337 = vmatpush.bf16.msra.mxu0 0
        %1338 = vmatpush.bf16.msra.mxu0 0
        %1339 = vmatpush.bf16.msra.mxu0 0
        %1340 = vmatpush.bf16.msra.mxu0 0
        %1341 = vmatpush.bf16.msra.mxu0 0
        %1342 = vmatpush.bf16.msra.mxu0 %v1333
        %1343 = vmatmul.bf16.gmra.mxu0 %v1330
        %v1344 = vpop.f32.mrf.mxu0
        %v1345 = vadd.f32 0.0, %v1344
        %v1346 = vpop.f32.mrf.mxu0
        %1347 = vdwg.mxu0
        %v1348 = vadd.f32 %v1325, %v1345
        %v1349 = vpack.c.bf16 %v1282, %v1282
        %v1351 = vsel %vm1040, %v1349, 0
        %v1354 = vsel %vm1186, %v1287, 0
        %1356 = vmatpush.bf16.msra.mxu0 0
        %1357 = vmatpush.bf16.msra.mxu0 0
        %1358 = vmatpush.bf16.msra.mxu0 0
        %1359 = vmatpush.bf16.msra.mxu0 0
        %1360 = vmatpush.bf16.msra.mxu0 0
        %1361 = vmatpush.bf16.msra.mxu0 0
        %1362 = vmatpush.bf16.msra.mxu0 0
        %1363 = vmatpush.bf16.msra.mxu0 %v1354
        %1364 = vmatmul.bf16.gmra.mxu0 %v1351
        %v1365 = vpop.f32.mrf.mxu0
        %v1366 = vadd.f32 0.0, %v1365
        %v1367 = vpop.f32.mrf.mxu0
        %1368 = vdwg.mxu0
        %v1369 = vadd.f32 %v1348, %v1366
        %v1370 = vld [vmem:[%s13] sm:$0x1]
        %v1372 = vperm.slane %v1370, 0
        %v1374 = vadd.f32 %v1369, %v1372
        %v1375 = vadd.f32 %v914, %v1374
        %v1376 = vld [vmem:[%s14] sm:$0x1]
        %v1377 = vld [vmem:[%s15] sm:$0x1]
        %v1378 = vsel %vm875, %v1375, 0.0
        %1379 = vadd.xlane.f32.xlu0 %v1378
        %v1380 = vpop.xlane.xlu0 %1379
        %v1381 = vmul.f32 %v1380, %v885
        %v1382 = vsub.f32 %v1375, %v1381
        %v1383 = vmul.f32 %v1382, %v1382
        %v1384 = vsel %vm875, %v1383, 0.0
        %1385 = vadd.xlane.f32.xlu0 %v1384
        %v1386 = vpop.xlane.xlu0 %1385
        %v1387 = vmul.f32 %v1386, %v885
        %v1388 = vadd.f32 %v1387, 1e-05
        %v1389 = vrsqrt.pop %v1388
        %v1390 = vmul.f32 %v1389, %v1388
        %v1391 = vmul.f32 %v1390, %v1389
        %v1392 = vmul.f32 0.5, %v1391
        %v1393 = vsub.f32 1.5, %v1392
        %v1394 = vmul.f32 %v1389, %v1393
        %vm1395 = vweird.f32 %v1388
        %vm1396 = vweird.f32 %v1389
        %vm1397 = vmor %vm1395, %vm1396
        %v1398 = vsel %vm1397, %v1389, %v1394
        %v1399 = vmul.f32 %v1382, %v1398
        %v1401 = vperm.slane %v1376, 0
        %v1403 = vmul.f32 %v1399, %v1401
        %v1405 = vperm.slane %v1377, 0
        %v1407 = vadd.f32 %v1403, %v1405
        %v1408 = vld [vmem:[%s16] sm:$0xff]
        %v1409 = vld [vmem:[%s16 + $0x8] sm:$0xff]
        %v1410 = vld [vmem:[%s16 + $0x10] sm:$0xff]
        %v1411 = vld [vmem:[%s16 + $0x18] sm:$0xff]
        %v1412 = vld [vmem:[%s16 + $0x20] sm:$0xff]
        %v1413 = vld [vmem:[%s16 + $0x28] sm:$0xff]
        %v1414 = vld [vmem:[%s16 + $0x30] sm:$0xff]
        %v1415 = vld [vmem:[%s16 + $0x38] sm:$0xff]
        %v1416 = vld [vmem:[%s16 + $0x40] sm:$0xff]
        %v1417 = vld [vmem:[%s16 + $0x48] sm:$0xff]
        %v1418 = vld [vmem:[%s16 + $0x50] sm:$0xff]
        %v1419 = vld [vmem:[%s16 + $0x58] sm:$0xff]
        %v1420 = vld [vmem:[%s16 + $0x60] sm:$0xff]
        %v1421 = vld [vmem:[%s16 + $0x68] sm:$0xff]
        %v1422 = vld [vmem:[%s16 + $0x70] sm:$0xff]
        %v1423 = vld [vmem:[%s16 + $0x78] sm:$0xff]
        %v1424 = vld [vmem:[%s16 + $0x80] sm:$0xff]
        %v1425 = vld [vmem:[%s16 + $0x88] sm:$0xff]
        %v1426 = vld [vmem:[%s16 + $0x90] sm:$0xff]
        %v1427 = vld [vmem:[%s16 + $0x98] sm:$0xff]
        %v1428 = vld [vmem:[%s16 + $0xa0] sm:$0xff]
        %v1429 = vld [vmem:[%s16 + $0xa8] sm:$0xff]
        %v1430 = vld [vmem:[%s16 + $0xb0] sm:$0xff]
        %v1431 = vld [vmem:[%s16 + $0xb8] sm:$0xff]
        %v1432 = vld [vmem:[%s16 + $0xc0] sm:$0xff]
        %v1433 = vld [vmem:[%s16 + $0xc8] sm:$0xff]
        %v1434 = vld [vmem:[%s16 + $0xd0] sm:$0xff]
        %v1435 = vld [vmem:[%s16 + $0xd8] sm:$0xff]
        %v1436 = vld [vmem:[%s16 + $0xe0] sm:$0xff]
        %v1437 = vld [vmem:[%s16 + $0xe8] sm:$0xff]
        %v1438 = vld [vmem:[%s16 + $0xf0] sm:$0xff]
        %v1439 = vld [vmem:[%s16 + $0xf8] sm:$0xff]
        %v1440 = vpack.c.bf16 %v1407, %v1407
        %v1441 = vld [vmem:[%s17] sm:$0xff]
        %v1442 = vld [vmem:[%s17 + $0x8] sm:$0xff]
        %v1445 = vperm.slane %v1441, 0
        %v1446 = vperm.slane %v1441, 1
        %v1447 = vperm.slane %v1441, 2
        %v1448 = vperm.slane %v1441, 3
        %v1449 = vperm.slane %v1441, 4
        %v1450 = vperm.slane %v1441, 5
        %v1451 = vperm.slane %v1441, 6
        %v1452 = vperm.slane %v1441, 7
        %v1453 = vperm.slane %v1442, 0
        %v1454 = vperm.slane %v1442, 1
        %v1455 = vperm.slane %v1442, 2
        %v1456 = vperm.slane %v1442, 3
        %v1457 = vperm.slane %v1442, 4
        %v1458 = vperm.slane %v1442, 5
        %v1459 = vperm.slane %v1442, 6
        %v1460 = vperm.slane %v1442, 7
        %v1509 = vunpack.c.l.b16 %v1408
        %v1510 = vunpack.c.h.b16 %v1408
        %v1511 = vunpack.c.l.b16 %v1409
        %v1512 = vunpack.c.h.b16 %v1409
        %v1513 = vunpack.c.l.b16 %v1410
        %v1514 = vunpack.c.h.b16 %v1410
        %v1515 = vunpack.c.l.b16 %v1411
        %v1516 = vunpack.c.h.b16 %v1411
        %v1517 = vunpack.c.l.b16 %v1412
        %v1518 = vunpack.c.h.b16 %v1412
        %v1519 = vunpack.c.l.b16 %v1413
        %v1520 = vunpack.c.h.b16 %v1413
        %v1521 = vunpack.c.l.b16 %v1414
        %v1522 = vunpack.c.h.b16 %v1414
        %v1523 = vunpack.c.l.b16 %v1415
        %v1524 = vunpack.c.h.b16 %v1415
        %v1525 = vunpack.c.l.b16 %v1416
        %v1526 = vunpack.c.h.b16 %v1416
        %v1527 = vunpack.c.l.b16 %v1417
        %v1528 = vunpack.c.h.b16 %v1417
        %v1529 = vunpack.c.l.b16 %v1418
        %v1530 = vunpack.c.h.b16 %v1418
        %v1531 = vunpack.c.l.b16 %v1419
        %v1532 = vunpack.c.h.b16 %v1419
        %v1533 = vunpack.c.l.b16 %v1420
        %v1534 = vunpack.c.h.b16 %v1420
        %v1535 = vunpack.c.l.b16 %v1421
        %v1536 = vunpack.c.h.b16 %v1421
        %v1537 = vunpack.c.l.b16 %v1422
        %v1538 = vunpack.c.h.b16 %v1422
        %v1539 = vunpack.c.l.b16 %v1423
        %v1540 = vunpack.c.h.b16 %v1423
        %v1541 = vunpack.c.l.b16 %v1424
        %v1542 = vunpack.c.h.b16 %v1424
        %v1543 = vunpack.c.l.b16 %v1425
        %v1544 = vunpack.c.h.b16 %v1425
        %v1545 = vunpack.c.l.b16 %v1426
        %v1546 = vunpack.c.h.b16 %v1426
        %v1547 = vunpack.c.l.b16 %v1427
        %v1548 = vunpack.c.h.b16 %v1427
        %v1549 = vunpack.c.l.b16 %v1428
        %v1550 = vunpack.c.h.b16 %v1428
        %v1551 = vunpack.c.l.b16 %v1429
        %v1552 = vunpack.c.h.b16 %v1429
        %v1553 = vunpack.c.l.b16 %v1430
        %v1554 = vunpack.c.h.b16 %v1430
        %v1555 = vunpack.c.l.b16 %v1431
        %v1556 = vunpack.c.h.b16 %v1431
        %v1557 = vunpack.c.l.b16 %v1432
        %v1558 = vunpack.c.h.b16 %v1432
        %v1559 = vunpack.c.l.b16 %v1433
        %v1560 = vunpack.c.h.b16 %v1433
        %v1561 = vunpack.c.l.b16 %v1434
        %v1562 = vunpack.c.h.b16 %v1434
        %v1563 = vunpack.c.l.b16 %v1435
        %v1564 = vunpack.c.h.b16 %v1435
        %v1565 = vunpack.c.l.b16 %v1436
        %v1566 = vunpack.c.h.b16 %v1436
        %v1567 = vunpack.c.l.b16 %v1437
        %v1568 = vunpack.c.h.b16 %v1437
        %v1569 = vunpack.c.l.b16 %v1438
        %v1570 = vunpack.c.h.b16 %v1438
        %v1571 = vunpack.c.l.b16 %v1439
        %v1572 = vunpack.c.h.b16 %v1439
        %v1573 = vpack.c.b16 %v1525, %v1509
        %v1574 = vpack.c.b16 %v1526, %v1510
        %v1575 = vpack.c.b16 %v1527, %v1511
        %v1576 = vpack.c.b16 %v1528, %v1512
        %v1577 = vpack.c.b16 %v1529, %v1513
        %v1578 = vpack.c.b16 %v1530, %v1514
        %v1579 = vpack.c.b16 %v1531, %v1515
        %v1580 = vpack.c.b16 %v1532, %v1516
        %v1581 = vpack.c.b16 %v1533, %v1517
        %v1582 = vpack.c.b16 %v1534, %v1518
        %v1583 = vpack.c.b16 %v1535, %v1519
        %v1584 = vpack.c.b16 %v1536, %v1520
        %v1585 = vpack.c.b16 %v1537, %v1521
        %v1586 = vpack.c.b16 %v1538, %v1522
        %v1587 = vpack.c.b16 %v1539, %v1523
        %v1588 = vpack.c.b16 %v1540, %v1524
        %v1589 = vpack.c.b16 %v1557, %v1541
        %v1590 = vpack.c.b16 %v1558, %v1542
        %v1591 = vpack.c.b16 %v1559, %v1543
        %v1592 = vpack.c.b16 %v1560, %v1544
        %v1593 = vpack.c.b16 %v1561, %v1545
        %v1594 = vpack.c.b16 %v1562, %v1546
        %v1595 = vpack.c.b16 %v1563, %v1547
        %v1596 = vpack.c.b16 %v1564, %v1548
        %v1597 = vpack.c.b16 %v1565, %v1549
        %v1598 = vpack.c.b16 %v1566, %v1550
        %v1599 = vpack.c.b16 %v1567, %v1551
        %v1600 = vpack.c.b16 %v1568, %v1552
        %v1601 = vpack.c.b16 %v1569, %v1553
        %v1602 = vpack.c.b16 %v1570, %v1554
        %v1603 = vpack.c.b16 %v1571, %v1555
        %v1604 = vpack.c.b16 %v1572, %v1556
        %v1638 = vsel %vm936, %v1440, 0
        %1640 = vmatpush.bf16.msra.mxu0 0
        %1641 = vmatpush.bf16.msra.mxu0 0
        %1642 = vmatpush.bf16.msra.mxu0 0
        %1643 = vmatpush.bf16.msra.mxu0 0
        %1644 = vmatpush.bf16.msra.mxu0 0
        %1645 = vmatpush.bf16.msra.mxu0 0
        %1646 = vmatpush.bf16.msra.mxu0 %v1589
        %1647 = vmatpush.bf16.msra.mxu0 %v1573
        %1648 = vmatmul.bf16.gmra.mxu0 %v1638
        %v1649 = vpop.f32.mrf.mxu0
        %v1650 = vadd.f32 %v1445, %v1649
        %v1651 = vpop.f32.mrf.mxu0
        %1652 = vdwg.mxu0
        %1653 = vmatpush.bf16.msra.mxu0 0
        %1654 = vmatpush.bf16.msra.mxu0 0
        %1655 = vmatpush.bf16.msra.mxu0 0
        %1656 = vmatpush.bf16.msra.mxu0 0
        %1657 = vmatpush.bf16.msra.mxu0 0
        %1658 = vmatpush.bf16.msra.mxu0 0
        %1659 = vmatpush.bf16.msra.mxu0 %v1590
        %1660 = vmatpush.bf16.msra.mxu0 %v1574
        %1661 = vmatmul.bf16.gmra.mxu0 %v1638
        %v1662 = vpop.f32.mrf.mxu0
        %v1663 = vadd.f32 %v1446, %v1662
        %v1664 = vpop.f32.mrf.mxu0
        %1665 = vdwg.mxu0
        %1666 = vmatpush.bf16.msra.mxu0 0
        %1667 = vmatpush.bf16.msra.mxu0 0
        %1668 = vmatpush.bf16.msra.mxu0 0
        %1669 = vmatpush.bf16.msra.mxu0 0
        %1670 = vmatpush.bf16.msra.mxu0 0
        %1671 = vmatpush.bf16.msra.mxu0 0
        %1672 = vmatpush.bf16.msra.mxu0 %v1591
        %1673 = vmatpush.bf16.msra.mxu0 %v1575
        %1674 = vmatmul.bf16.gmra.mxu0 %v1638
        %v1675 = vpop.f32.mrf.mxu0
        %v1676 = vadd.f32 %v1447, %v1675
        %v1677 = vpop.f32.mrf.mxu0
        %1678 = vdwg.mxu0
        %1679 = vmatpush.bf16.msra.mxu0 0
        %1680 = vmatpush.bf16.msra.mxu0 0
        %1681 = vmatpush.bf16.msra.mxu0 0
        %1682 = vmatpush.bf16.msra.mxu0 0
        %1683 = vmatpush.bf16.msra.mxu0 0
        %1684 = vmatpush.bf16.msra.mxu0 0
        %1685 = vmatpush.bf16.msra.mxu0 %v1592
        %1686 = vmatpush.bf16.msra.mxu0 %v1576
        %1687 = vmatmul.bf16.gmra.mxu0 %v1638
        %v1688 = vpop.f32.mrf.mxu0
        %v1689 = vadd.f32 %v1448, %v1688
        %v1690 = vpop.f32.mrf.mxu0
        %1691 = vdwg.mxu0
        %1692 = vmatpush.bf16.msra.mxu0 0
        %1693 = vmatpush.bf16.msra.mxu0 0
        %1694 = vmatpush.bf16.msra.mxu0 0
        %1695 = vmatpush.bf16.msra.mxu0 0
        %1696 = vmatpush.bf16.msra.mxu0 0
        %1697 = vmatpush.bf16.msra.mxu0 0
        %1698 = vmatpush.bf16.msra.mxu0 %v1593
        %1699 = vmatpush.bf16.msra.mxu0 %v1577
        %1700 = vmatmul.bf16.gmra.mxu0 %v1638
        %v1701 = vpop.f32.mrf.mxu0
        %v1702 = vadd.f32 %v1449, %v1701
        %v1703 = vpop.f32.mrf.mxu0
        %1704 = vdwg.mxu0
        %1705 = vmatpush.bf16.msra.mxu0 0
        %1706 = vmatpush.bf16.msra.mxu0 0
        %1707 = vmatpush.bf16.msra.mxu0 0
        %1708 = vmatpush.bf16.msra.mxu0 0
        %1709 = vmatpush.bf16.msra.mxu0 0
        %1710 = vmatpush.bf16.msra.mxu0 0
        %1711 = vmatpush.bf16.msra.mxu0 %v1594
        %1712 = vmatpush.bf16.msra.mxu0 %v1578
        %1713 = vmatmul.bf16.gmra.mxu0 %v1638
        %v1714 = vpop.f32.mrf.mxu0
        %v1715 = vadd.f32 %v1450, %v1714
        %v1716 = vpop.f32.mrf.mxu0
        %1717 = vdwg.mxu0
        %1718 = vmatpush.bf16.msra.mxu0 0
        %1719 = vmatpush.bf16.msra.mxu0 0
        %1720 = vmatpush.bf16.msra.mxu0 0
        %1721 = vmatpush.bf16.msra.mxu0 0
        %1722 = vmatpush.bf16.msra.mxu0 0
        %1723 = vmatpush.bf16.msra.mxu0 0
        %1724 = vmatpush.bf16.msra.mxu0 %v1595
        %1725 = vmatpush.bf16.msra.mxu0 %v1579
        %1726 = vmatmul.bf16.gmra.mxu0 %v1638
        %v1727 = vpop.f32.mrf.mxu0
        %v1728 = vadd.f32 %v1451, %v1727
        %v1729 = vpop.f32.mrf.mxu0
        %1730 = vdwg.mxu0
        %1731 = vmatpush.bf16.msra.mxu0 0
        %1732 = vmatpush.bf16.msra.mxu0 0
        %1733 = vmatpush.bf16.msra.mxu0 0
        %1734 = vmatpush.bf16.msra.mxu0 0
        %1735 = vmatpush.bf16.msra.mxu0 0
        %1736 = vmatpush.bf16.msra.mxu0 0
        %1737 = vmatpush.bf16.msra.mxu0 %v1596
        %1738 = vmatpush.bf16.msra.mxu0 %v1580
        %1739 = vmatmul.bf16.gmra.mxu0 %v1638
        %v1740 = vpop.f32.mrf.mxu0
        %v1741 = vadd.f32 %v1452, %v1740
        %v1742 = vpop.f32.mrf.mxu0
        %1743 = vdwg.mxu0
        %1744 = vmatpush.bf16.msra.mxu0 0
        %1745 = vmatpush.bf16.msra.mxu0 0
        %1746 = vmatpush.bf16.msra.mxu0 0
        %1747 = vmatpush.bf16.msra.mxu0 0
        %1748 = vmatpush.bf16.msra.mxu0 0
        %1749 = vmatpush.bf16.msra.mxu0 0
        %1750 = vmatpush.bf16.msra.mxu0 %v1597
        %1751 = vmatpush.bf16.msra.mxu0 %v1581
        %1752 = vmatmul.bf16.gmra.mxu0 %v1638
        %v1753 = vpop.f32.mrf.mxu0
        %v1754 = vadd.f32 %v1453, %v1753
        %v1755 = vpop.f32.mrf.mxu0
        %1756 = vdwg.mxu0
        %1757 = vmatpush.bf16.msra.mxu0 0
        %1758 = vmatpush.bf16.msra.mxu0 0
        %1759 = vmatpush.bf16.msra.mxu0 0
        %1760 = vmatpush.bf16.msra.mxu0 0
        %1761 = vmatpush.bf16.msra.mxu0 0
        %1762 = vmatpush.bf16.msra.mxu0 0
        %1763 = vmatpush.bf16.msra.mxu0 %v1598
        %1764 = vmatpush.bf16.msra.mxu0 %v1582
        %1765 = vmatmul.bf16.gmra.mxu0 %v1638
        %v1766 = vpop.f32.mrf.mxu0
        %v1767 = vadd.f32 %v1454, %v1766
        %v1768 = vpop.f32.mrf.mxu0
        %1769 = vdwg.mxu0
        %1770 = vmatpush.bf16.msra.mxu0 0
        %1771 = vmatpush.bf16.msra.mxu0 0
        %1772 = vmatpush.bf16.msra.mxu0 0
        %1773 = vmatpush.bf16.msra.mxu0 0
        %1774 = vmatpush.bf16.msra.mxu0 0
        %1775 = vmatpush.bf16.msra.mxu0 0
        %1776 = vmatpush.bf16.msra.mxu0 %v1599
        %1777 = vmatpush.bf16.msra.mxu0 %v1583
        %1778 = vmatmul.bf16.gmra.mxu0 %v1638
        %v1779 = vpop.f32.mrf.mxu0
        %v1780 = vadd.f32 %v1455, %v1779
        %v1781 = vpop.f32.mrf.mxu0
        %1782 = vdwg.mxu0
        %1783 = vmatpush.bf16.msra.mxu0 0
        %1784 = vmatpush.bf16.msra.mxu0 0
        %1785 = vmatpush.bf16.msra.mxu0 0
        %1786 = vmatpush.bf16.msra.mxu0 0
        %1787 = vmatpush.bf16.msra.mxu0 0
        %1788 = vmatpush.bf16.msra.mxu0 0
        %1789 = vmatpush.bf16.msra.mxu0 %v1600
        %1790 = vmatpush.bf16.msra.mxu0 %v1584
        %1791 = vmatmul.bf16.gmra.mxu0 %v1638
        %v1792 = vpop.f32.mrf.mxu0
        %v1793 = vadd.f32 %v1456, %v1792
        %v1794 = vpop.f32.mrf.mxu0
        %1795 = vdwg.mxu0
        %1796 = vmatpush.bf16.msra.mxu0 0
        %1797 = vmatpush.bf16.msra.mxu0 0
        %1798 = vmatpush.bf16.msra.mxu0 0
        %1799 = vmatpush.bf16.msra.mxu0 0
        %1800 = vmatpush.bf16.msra.mxu0 0
        %1801 = vmatpush.bf16.msra.mxu0 0
        %1802 = vmatpush.bf16.msra.mxu0 %v1601
        %1803 = vmatpush.bf16.msra.mxu0 %v1585
        %1804 = vmatmul.bf16.gmra.mxu0 %v1638
        %v1805 = vpop.f32.mrf.mxu0
        %v1806 = vadd.f32 %v1457, %v1805
        %v1807 = vpop.f32.mrf.mxu0
        %1808 = vdwg.mxu0
        %1809 = vmatpush.bf16.msra.mxu0 0
        %1810 = vmatpush.bf16.msra.mxu0 0
        %1811 = vmatpush.bf16.msra.mxu0 0
        %1812 = vmatpush.bf16.msra.mxu0 0
        %1813 = vmatpush.bf16.msra.mxu0 0
        %1814 = vmatpush.bf16.msra.mxu0 0
        %1815 = vmatpush.bf16.msra.mxu0 %v1602
        %1816 = vmatpush.bf16.msra.mxu0 %v1586
        %1817 = vmatmul.bf16.gmra.mxu0 %v1638
        %v1818 = vpop.f32.mrf.mxu0
        %v1819 = vadd.f32 %v1458, %v1818
        %v1820 = vpop.f32.mrf.mxu0
        %1821 = vdwg.mxu0
        %1822 = vmatpush.bf16.msra.mxu0 0
        %1823 = vmatpush.bf16.msra.mxu0 0
        %1824 = vmatpush.bf16.msra.mxu0 0
        %1825 = vmatpush.bf16.msra.mxu0 0
        %1826 = vmatpush.bf16.msra.mxu0 0
        %1827 = vmatpush.bf16.msra.mxu0 0
        %1828 = vmatpush.bf16.msra.mxu0 %v1603
        %1829 = vmatpush.bf16.msra.mxu0 %v1587
        %1830 = vmatmul.bf16.gmra.mxu0 %v1638
        %v1831 = vpop.f32.mrf.mxu0
        %v1832 = vadd.f32 %v1459, %v1831
        %v1833 = vpop.f32.mrf.mxu0
        %1834 = vdwg.mxu0
        %1835 = vmatpush.bf16.msra.mxu0 0
        %1836 = vmatpush.bf16.msra.mxu0 0
        %1837 = vmatpush.bf16.msra.mxu0 0
        %1838 = vmatpush.bf16.msra.mxu0 0
        %1839 = vmatpush.bf16.msra.mxu0 0
        %1840 = vmatpush.bf16.msra.mxu0 0
        %1841 = vmatpush.bf16.msra.mxu0 %v1604
        %1842 = vmatpush.bf16.msra.mxu0 %v1588
        %1843 = vmatmul.bf16.gmra.mxu0 %v1638
        %v1844 = vpop.f32.mrf.mxu0
        %v1845 = vadd.f32 %v1460, %v1844
        %v1846 = vpop.f32.mrf.mxu0
        %1847 = vdwg.mxu0
        %v1848 = vmax.f32 %v1650, 0.0
        %v1849 = vmax.f32 %v1663, 0.0
        %v1850 = vmax.f32 %v1676, 0.0
        %v1851 = vmax.f32 %v1689, 0.0
        %v1852 = vmax.f32 %v1702, 0.0
        %v1853 = vmax.f32 %v1715, 0.0
        %v1854 = vmax.f32 %v1728, 0.0
        %v1855 = vmax.f32 %v1741, 0.0
        %v1856 = vmax.f32 %v1754, 0.0
        %v1857 = vmax.f32 %v1767, 0.0
        %v1858 = vmax.f32 %v1780, 0.0
        %v1859 = vmax.f32 %v1793, 0.0
        %v1860 = vmax.f32 %v1806, 0.0
        %v1861 = vmax.f32 %v1819, 0.0
        %v1862 = vmax.f32 %v1832, 0.0
        %v1863 = vmax.f32 %v1845, 0.0
        %v1864 = vld [vmem:[%s18] sm:$0xf]
        %v1865 = vld [vmem:[%s18 + $0x4] sm:$0xf]
        %v1866 = vld [vmem:[%s18 + $0x8] sm:$0xf]
        %v1867 = vld [vmem:[%s18 + $0xc] sm:$0xf]
        %v1868 = vld [vmem:[%s18 + $0x10] sm:$0xf]
        %v1869 = vld [vmem:[%s18 + $0x14] sm:$0xf]
        %v1870 = vld [vmem:[%s18 + $0x18] sm:$0xf]
        %v1871 = vld [vmem:[%s18 + $0x1c] sm:$0xf]
        %v1872 = vld [vmem:[%s18 + $0x20] sm:$0xf]
        %v1873 = vld [vmem:[%s18 + $0x24] sm:$0xf]
        %v1874 = vld [vmem:[%s18 + $0x28] sm:$0xf]
        %v1875 = vld [vmem:[%s18 + $0x2c] sm:$0xf]
        %v1876 = vld [vmem:[%s18 + $0x30] sm:$0xf]
        %v1877 = vld [vmem:[%s18 + $0x34] sm:$0xf]
        %v1878 = vld [vmem:[%s18 + $0x38] sm:$0xf]
        %v1879 = vld [vmem:[%s18 + $0x3c] sm:$0xf]
        %v1880 = vld [vmem:[%s18 + $0x40] sm:$0xf]
        %v1881 = vld [vmem:[%s18 + $0x44] sm:$0xf]
        %v1882 = vld [vmem:[%s18 + $0x48] sm:$0xf]
        %v1883 = vld [vmem:[%s18 + $0x4c] sm:$0xf]
        %v1884 = vld [vmem:[%s18 + $0x50] sm:$0xf]
        %v1885 = vld [vmem:[%s18 + $0x54] sm:$0xf]
        %v1886 = vld [vmem:[%s18 + $0x58] sm:$0xf]
        %v1887 = vld [vmem:[%s18 + $0x5c] sm:$0xf]
        %v1888 = vld [vmem:[%s18 + $0x60] sm:$0xf]
        %v1889 = vld [vmem:[%s18 + $0x64] sm:$0xf]
        %v1890 = vld [vmem:[%s18 + $0x68] sm:$0xf]
        %v1891 = vld [vmem:[%s18 + $0x6c] sm:$0xf]
        %v1892 = vld [vmem:[%s18 + $0x70] sm:$0xf]
        %v1893 = vld [vmem:[%s18 + $0x74] sm:$0xf]
        %v1894 = vld [vmem:[%s18 + $0x78] sm:$0xf]
        %v1895 = vld [vmem:[%s18 + $0x7c] sm:$0xf]
        %v1896 = vld [vmem:[%s18 + $0x80] sm:$0xf]
        %v1897 = vld [vmem:[%s18 + $0x84] sm:$0xf]
        %v1898 = vld [vmem:[%s18 + $0x88] sm:$0xf]
        %v1899 = vld [vmem:[%s18 + $0x8c] sm:$0xf]
        %v1900 = vld [vmem:[%s18 + $0x90] sm:$0xf]
        %v1901 = vld [vmem:[%s18 + $0x94] sm:$0xf]
        %v1902 = vld [vmem:[%s18 + $0x98] sm:$0xf]
        %v1903 = vld [vmem:[%s18 + $0x9c] sm:$0xf]
        %v1904 = vld [vmem:[%s18 + $0xa0] sm:$0xf]
        %v1905 = vld [vmem:[%s18 + $0xa4] sm:$0xf]
        %v1906 = vld [vmem:[%s18 + $0xa8] sm:$0xf]
        %v1907 = vld [vmem:[%s18 + $0xac] sm:$0xf]
        %v1908 = vld [vmem:[%s18 + $0xb0] sm:$0xf]
        %v1909 = vld [vmem:[%s18 + $0xb4] sm:$0xf]
        %v1910 = vld [vmem:[%s18 + $0xb8] sm:$0xf]
        %v1911 = vld [vmem:[%s18 + $0xbc] sm:$0xf]
        %v1912 = vld [vmem:[%s18 + $0xc0] sm:$0xf]
        %v1913 = vld [vmem:[%s18 + $0xc4] sm:$0xf]
        %v1914 = vld [vmem:[%s18 + $0xc8] sm:$0xf]
        %v1915 = vld [vmem:[%s18 + $0xcc] sm:$0xf]
        %v1916 = vld [vmem:[%s18 + $0xd0] sm:$0xf]
        %v1917 = vld [vmem:[%s18 + $0xd4] sm:$0xf]
        %v1918 = vld [vmem:[%s18 + $0xd8] sm:$0xf]
        %v1919 = vld [vmem:[%s18 + $0xdc] sm:$0xf]
        %v1920 = vld [vmem:[%s18 + $0xe0] sm:$0xf]
        %v1921 = vld [vmem:[%s18 + $0xe4] sm:$0xf]
        %v1922 = vld [vmem:[%s18 + $0xe8] sm:$0xf]
        %v1923 = vld [vmem:[%s18 + $0xec] sm:$0xf]
        %v1924 = vld [vmem:[%s18 + $0xf0] sm:$0xf]
        %v1925 = vld [vmem:[%s18 + $0xf4] sm:$0xf]
        %v1926 = vld [vmem:[%s18 + $0xf8] sm:$0xf]
        %v1927 = vld [vmem:[%s18 + $0xfc] sm:$0xf]
        %v1928 = vld [vmem:[%s18 + $0x100] sm:$0xf]
        %v1929 = vld [vmem:[%s18 + $0x104] sm:$0xf]
        %v1930 = vld [vmem:[%s18 + $0x108] sm:$0xf]
        %v1931 = vld [vmem:[%s18 + $0x10c] sm:$0xf]
        %v1932 = vld [vmem:[%s18 + $0x110] sm:$0xf]
        %v1933 = vld [vmem:[%s18 + $0x114] sm:$0xf]
        %v1934 = vld [vmem:[%s18 + $0x118] sm:$0xf]
        %v1935 = vld [vmem:[%s18 + $0x11c] sm:$0xf]
        %v1936 = vld [vmem:[%s18 + $0x120] sm:$0xf]
        %v1937 = vld [vmem:[%s18 + $0x124] sm:$0xf]
        %v1938 = vld [vmem:[%s18 + $0x128] sm:$0xf]
        %v1939 = vld [vmem:[%s18 + $0x12c] sm:$0xf]
        %v1940 = vld [vmem:[%s18 + $0x130] sm:$0xf]
        %v1941 = vld [vmem:[%s18 + $0x134] sm:$0xf]
        %v1942 = vld [vmem:[%s18 + $0x138] sm:$0xf]
        %v1943 = vld [vmem:[%s18 + $0x13c] sm:$0xf]
        %v1944 = vld [vmem:[%s18 + $0x140] sm:$0xf]
        %v1945 = vld [vmem:[%s18 + $0x144] sm:$0xf]
        %v1946 = vld [vmem:[%s18 + $0x148] sm:$0xf]
        %v1947 = vld [vmem:[%s18 + $0x14c] sm:$0xf]
        %v1948 = vld [vmem:[%s18 + $0x150] sm:$0xf]
        %v1949 = vld [vmem:[%s18 + $0x154] sm:$0xf]
        %v1950 = vld [vmem:[%s18 + $0x158] sm:$0xf]
        %v1951 = vld [vmem:[%s18 + $0x15c] sm:$0xf]
        %v1952 = vld [vmem:[%s18 + $0x160] sm:$0xf]
        %v1953 = vld [vmem:[%s18 + $0x164] sm:$0xf]
        %v1954 = vld [vmem:[%s18 + $0x168] sm:$0xf]
        %v1955 = vld [vmem:[%s18 + $0x16c] sm:$0xf]
        %v1956 = vld [vmem:[%s18 + $0x170] sm:$0xf]
        %v1957 = vld [vmem:[%s18 + $0x174] sm:$0xf]
        %v1958 = vld [vmem:[%s18 + $0x178] sm:$0xf]
        %v1959 = vld [vmem:[%s18 + $0x17c] sm:$0xf]
        %v1960 = vld [vmem:[%s18 + $0x180] sm:$0xf]
        %v1961 = vld [vmem:[%s18 + $0x184] sm:$0xf]
        %v1962 = vld [vmem:[%s18 + $0x188] sm:$0xf]
        %v1963 = vld [vmem:[%s18 + $0x18c] sm:$0xf]
        %v1964 = vld [vmem:[%s18 + $0x190] sm:$0xf]
        %v1965 = vld [vmem:[%s18 + $0x194] sm:$0xf]
        %v1966 = vld [vmem:[%s18 + $0x198] sm:$0xf]
        %v1967 = vld [vmem:[%s18 + $0x19c] sm:$0xf]
        %v1968 = vld [vmem:[%s18 + $0x1a0] sm:$0xf]
        %v1969 = vld [vmem:[%s18 + $0x1a4] sm:$0xf]
        %v1970 = vld [vmem:[%s18 + $0x1a8] sm:$0xf]
        %v1971 = vld [vmem:[%s18 + $0x1ac] sm:$0xf]
        %v1972 = vld [vmem:[%s18 + $0x1b0] sm:$0xf]
        %v1973 = vld [vmem:[%s18 + $0x1b4] sm:$0xf]
        %v1974 = vld [vmem:[%s18 + $0x1b8] sm:$0xf]
        %v1975 = vld [vmem:[%s18 + $0x1bc] sm:$0xf]
        %v1976 = vld [vmem:[%s18 + $0x1c0] sm:$0xf]
        %v1977 = vld [vmem:[%s18 + $0x1c4] sm:$0xf]
        %v1978 = vld [vmem:[%s18 + $0x1c8] sm:$0xf]
        %v1979 = vld [vmem:[%s18 + $0x1cc] sm:$0xf]
        %v1980 = vld [vmem:[%s18 + $0x1d0] sm:$0xf]
        %v1981 = vld [vmem:[%s18 + $0x1d4] sm:$0xf]
        %v1982 = vld [vmem:[%s18 + $0x1d8] sm:$0xf]
        %v1983 = vld [vmem:[%s18 + $0x1dc] sm:$0xf]
        %v1984 = vld [vmem:[%s18 + $0x1e0] sm:$0xf]
        %v1985 = vld [vmem:[%s18 + $0x1e4] sm:$0xf]
        %v1986 = vld [vmem:[%s18 + $0x1e8] sm:$0xf]
        %v1987 = vld [vmem:[%s18 + $0x1ec] sm:$0xf]
        %v1988 = vld [vmem:[%s18 + $0x1f0] sm:$0xf]
        %v1989 = vld [vmem:[%s18 + $0x1f4] sm:$0xf]
        %v1990 = vld [vmem:[%s18 + $0x1f8] sm:$0xf]
        %v1991 = vld [vmem:[%s18 + $0x1fc] sm:$0xf]
        %v1992 = vld [vmem:[%s18 + $0x200] sm:$0xf]
        %v1993 = vld [vmem:[%s18 + $0x204] sm:$0xf]
        %v1994 = vld [vmem:[%s18 + $0x208] sm:$0xf]
        %v1995 = vld [vmem:[%s18 + $0x20c] sm:$0xf]
        %v1996 = vld [vmem:[%s18 + $0x210] sm:$0xf]
        %v1997 = vld [vmem:[%s18 + $0x214] sm:$0xf]
        %v1998 = vld [vmem:[%s18 + $0x218] sm:$0xf]
        %v1999 = vld [vmem:[%s18 + $0x21c] sm:$0xf]
        %v2000 = vld [vmem:[%s18 + $0x220] sm:$0xf]
        %v2001 = vld [vmem:[%s18 + $0x224] sm:$0xf]
        %v2002 = vld [vmem:[%s18 + $0x228] sm:$0xf]
        %v2003 = vld [vmem:[%s18 + $0x22c] sm:$0xf]
        %v2004 = vld [vmem:[%s18 + $0x230] sm:$0xf]
        %v2005 = vld [vmem:[%s18 + $0x234] sm:$0xf]
        %v2006 = vld [vmem:[%s18 + $0x238] sm:$0xf]
        %v2007 = vld [vmem:[%s18 + $0x23c] sm:$0xf]
        %v2008 = vld [vmem:[%s18 + $0x240] sm:$0xf]
        %v2009 = vld [vmem:[%s18 + $0x244] sm:$0xf]
        %v2010 = vld [vmem:[%s18 + $0x248] sm:$0xf]
        %v2011 = vld [vmem:[%s18 + $0x24c] sm:$0xf]
        %v2012 = vld [vmem:[%s18 + $0x250] sm:$0xf]
        %v2013 = vld [vmem:[%s18 + $0x254] sm:$0xf]
        %v2014 = vld [vmem:[%s18 + $0x258] sm:$0xf]
        %v2015 = vld [vmem:[%s18 + $0x25c] sm:$0xf]
        %v2016 = vld [vmem:[%s18 + $0x260] sm:$0xf]
        %v2017 = vld [vmem:[%s18 + $0x264] sm:$0xf]
        %v2018 = vld [vmem:[%s18 + $0x268] sm:$0xf]
        %v2019 = vld [vmem:[%s18 + $0x26c] sm:$0xf]
        %v2020 = vld [vmem:[%s18 + $0x270] sm:$0xf]
        %v2021 = vld [vmem:[%s18 + $0x274] sm:$0xf]
        %v2022 = vld [vmem:[%s18 + $0x278] sm:$0xf]
        %v2023 = vld [vmem:[%s18 + $0x27c] sm:$0xf]
        %v2024 = vld [vmem:[%s18 + $0x280] sm:$0xf]
        %v2025 = vld [vmem:[%s18 + $0x284] sm:$0xf]
        %v2026 = vld [vmem:[%s18 + $0x288] sm:$0xf]
        %v2027 = vld [vmem:[%s18 + $0x28c] sm:$0xf]
        %v2028 = vld [vmem:[%s18 + $0x290] sm:$0xf]
        %v2029 = vld [vmem:[%s18 + $0x294] sm:$0xf]
        %v2030 = vld [vmem:[%s18 + $0x298] sm:$0xf]
        %v2031 = vld [vmem:[%s18 + $0x29c] sm:$0xf]
        %v2032 = vld [vmem:[%s18 + $0x2a0] sm:$0xf]
        %v2033 = vld [vmem:[%s18 + $0x2a4] sm:$0xf]
        %v2034 = vld [vmem:[%s18 + $0x2a8] sm:$0xf]
        %v2035 = vld [vmem:[%s18 + $0x2ac] sm:$0xf]
        %v2036 = vld [vmem:[%s18 + $0x2b0] sm:$0xf]
        %v2037 = vld [vmem:[%s18 + $0x2b4] sm:$0xf]
        %v2038 = vld [vmem:[%s18 + $0x2b8] sm:$0xf]
        %v2039 = vld [vmem:[%s18 + $0x2bc] sm:$0xf]
        %v2040 = vld [vmem:[%s18 + $0x2c0] sm:$0xf]
        %v2041 = vld [vmem:[%s18 + $0x2c4] sm:$0xf]
        %v2042 = vld [vmem:[%s18 + $0x2c8] sm:$0xf]
        %v2043 = vld [vmem:[%s18 + $0x2cc] sm:$0xf]
        %v2044 = vld [vmem:[%s18 + $0x2d0] sm:$0xf]
        %v2045 = vld [vmem:[%s18 + $0x2d4] sm:$0xf]
        %v2046 = vld [vmem:[%s18 + $0x2d8] sm:$0xf]
        %v2047 = vld [vmem:[%s18 + $0x2dc] sm:$0xf]
        %v2048 = vld [vmem:[%s18 + $0x2e0] sm:$0xf]
        %v2049 = vld [vmem:[%s18 + $0x2e4] sm:$0xf]
        %v2050 = vld [vmem:[%s18 + $0x2e8] sm:$0xf]
        %v2051 = vld [vmem:[%s18 + $0x2ec] sm:$0xf]
        %v2052 = vld [vmem:[%s18 + $0x2f0] sm:$0xf]
        %v2053 = vld [vmem:[%s18 + $0x2f4] sm:$0xf]
        %v2054 = vld [vmem:[%s18 + $0x2f8] sm:$0xf]
        %v2055 = vld [vmem:[%s18 + $0x2fc] sm:$0xf]
        %v2056 = vld [vmem:[%s18 + $0x300] sm:$0xf]
        %v2057 = vld [vmem:[%s18 + $0x304] sm:$0xf]
        %v2058 = vld [vmem:[%s18 + $0x308] sm:$0xf]
        %v2059 = vld [vmem:[%s18 + $0x30c] sm:$0xf]
        %v2060 = vld [vmem:[%s18 + $0x310] sm:$0xf]
        %v2061 = vld [vmem:[%s18 + $0x314] sm:$0xf]
        %v2062 = vld [vmem:[%s18 + $0x318] sm:$0xf]
        %v2063 = vld [vmem:[%s18 + $0x31c] sm:$0xf]
        %v2064 = vld [vmem:[%s18 + $0x320] sm:$0xf]
        %v2065 = vld [vmem:[%s18 + $0x324] sm:$0xf]
        %v2066 = vld [vmem:[%s18 + $0x328] sm:$0xf]
        %v2067 = vld [vmem:[%s18 + $0x32c] sm:$0xf]
        %v2068 = vld [vmem:[%s18 + $0x330] sm:$0xf]
        %v2069 = vld [vmem:[%s18 + $0x334] sm:$0xf]
        %v2070 = vld [vmem:[%s18 + $0x338] sm:$0xf]
        %v2071 = vld [vmem:[%s18 + $0x33c] sm:$0xf]
        %v2072 = vld [vmem:[%s18 + $0x340] sm:$0xf]
        %v2073 = vld [vmem:[%s18 + $0x344] sm:$0xf]
        %v2074 = vld [vmem:[%s18 + $0x348] sm:$0xf]
        %v2075 = vld [vmem:[%s18 + $0x34c] sm:$0xf]
        %v2076 = vld [vmem:[%s18 + $0x350] sm:$0xf]
        %v2077 = vld [vmem:[%s18 + $0x354] sm:$0xf]
        %v2078 = vld [vmem:[%s18 + $0x358] sm:$0xf]
        %v2079 = vld [vmem:[%s18 + $0x35c] sm:$0xf]
        %v2080 = vld [vmem:[%s18 + $0x360] sm:$0xf]
        %v2081 = vld [vmem:[%s18 + $0x364] sm:$0xf]
        %v2082 = vld [vmem:[%s18 + $0x368] sm:$0xf]
        %v2083 = vld [vmem:[%s18 + $0x36c] sm:$0xf]
        %v2084 = vld [vmem:[%s18 + $0x370] sm:$0xf]
        %v2085 = vld [vmem:[%s18 + $0x374] sm:$0xf]
        %v2086 = vld [vmem:[%s18 + $0x378] sm:$0xf]
        %v2087 = vld [vmem:[%s18 + $0x37c] sm:$0xf]
        %v2088 = vld [vmem:[%s18 + $0x380] sm:$0xf]
        %v2089 = vld [vmem:[%s18 + $0x384] sm:$0xf]
        %v2090 = vld [vmem:[%s18 + $0x388] sm:$0xf]
        %v2091 = vld [vmem:[%s18 + $0x38c] sm:$0xf]
        %v2092 = vld [vmem:[%s18 + $0x390] sm:$0xf]
        %v2093 = vld [vmem:[%s18 + $0x394] sm:$0xf]
        %v2094 = vld [vmem:[%s18 + $0x398] sm:$0xf]
        %v2095 = vld [vmem:[%s18 + $0x39c] sm:$0xf]
        %v2096 = vld [vmem:[%s18 + $0x3a0] sm:$0xf]
        %v2097 = vld [vmem:[%s18 + $0x3a4] sm:$0xf]
        %v2098 = vld [vmem:[%s18 + $0x3a8] sm:$0xf]
        %v2099 = vld [vmem:[%s18 + $0x3ac] sm:$0xf]
        %v2100 = vld [vmem:[%s18 + $0x3b0] sm:$0xf]
        %v2101 = vld [vmem:[%s18 + $0x3b4] sm:$0xf]
        %v2102 = vld [vmem:[%s18 + $0x3b8] sm:$0xf]
        %v2103 = vld [vmem:[%s18 + $0x3bc] sm:$0xf]
        %v2104 = vld [vmem:[%s18 + $0x3c0] sm:$0xf]
        %v2105 = vld [vmem:[%s18 + $0x3c4] sm:$0xf]
        %v2106 = vld [vmem:[%s18 + $0x3c8] sm:$0xf]
        %v2107 = vld [vmem:[%s18 + $0x3cc] sm:$0xf]
        %v2108 = vld [vmem:[%s18 + $0x3d0] sm:$0xf]
        %v2109 = vld [vmem:[%s18 + $0x3d4] sm:$0xf]
        %v2110 = vld [vmem:[%s18 + $0x3d8] sm:$0xf]
        %v2111 = vld [vmem:[%s18 + $0x3dc] sm:$0xf]
        %v2112 = vld [vmem:[%s18 + $0x3e0] sm:$0xf]
        %v2113 = vld [vmem:[%s18 + $0x3e4] sm:$0xf]
        %v2114 = vld [vmem:[%s18 + $0x3e8] sm:$0xf]
        %v2115 = vld [vmem:[%s18 + $0x3ec] sm:$0xf]
        %v2116 = vld [vmem:[%s18 + $0x3f0] sm:$0xf]
        %v2117 = vld [vmem:[%s18 + $0x3f4] sm:$0xf]
        %v2118 = vld [vmem:[%s18 + $0x3f8] sm:$0xf]
        %v2119 = vld [vmem:[%s18 + $0x3fc] sm:$0xf]
        %v2120 = vpack.c.bf16 %v1848, %v1848
        %v2121 = vpack.c.bf16 %v1849, %v1849
        %v2122 = vpack.c.bf16 %v1850, %v1850
        %v2123 = vpack.c.bf16 %v1851, %v1851
        %v2124 = vpack.c.bf16 %v1852, %v1852
        %v2125 = vpack.c.bf16 %v1853, %v1853
        %v2126 = vpack.c.bf16 %v1854, %v1854
        %v2127 = vpack.c.bf16 %v1855, %v1855
        %v2128 = vpack.c.bf16 %v1856, %v1856
        %v2129 = vpack.c.bf16 %v1857, %v1857
        %v2130 = vpack.c.bf16 %v1858, %v1858
        %v2131 = vpack.c.bf16 %v1859, %v1859
        %v2132 = vpack.c.bf16 %v1860, %v1860
        %v2133 = vpack.c.bf16 %v1861, %v1861
        %v2134 = vpack.c.bf16 %v1862, %v1862
        %v2135 = vpack.c.bf16 %v1863, %v1863
        %v2136 = vld [vmem:[%s19] sm:$0x1]
        %v2138 = vperm.slane %v2136, 0
        %v2396 = vunpack.c.l.b16 %v1864
        %v2397 = vunpack.c.l.b16 %v1865
        %v2398 = vunpack.c.l.b16 %v1866
        %v2399 = vunpack.c.l.b16 %v1867
        %v2400 = vunpack.c.l.b16 %v1868
        %v2401 = vunpack.c.l.b16 %v1869
        %v2402 = vunpack.c.l.b16 %v1870
        %v2403 = vunpack.c.l.b16 %v1871
        %v2404 = vunpack.c.l.b16 %v1872
        %v2405 = vunpack.c.l.b16 %v1873
        %v2406 = vunpack.c.l.b16 %v1874
        %v2407 = vunpack.c.l.b16 %v1875
        %v2408 = vunpack.c.l.b16 %v1876
        %v2409 = vunpack.c.l.b16 %v1877
        %v2410 = vunpack.c.l.b16 %v1878
        %v2411 = vunpack.c.l.b16 %v1879
        %v2412 = vunpack.c.l.b16 %v1880
        %v2413 = vunpack.c.l.b16 %v1881
        %v2414 = vunpack.c.l.b16 %v1882
        %v2415 = vunpack.c.l.b16 %v1883
        %v2416 = vunpack.c.l.b16 %v1884
        %v2417 = vunpack.c.l.b16 %v1885
        %v2418 = vunpack.c.l.b16 %v1886
        %v2419 = vunpack.c.l.b16 %v1887
        %v2420 = vunpack.c.l.b16 %v1888
        %v2421 = vunpack.c.l.b16 %v1889
        %v2422 = vunpack.c.l.b16 %v1890
        %v2423 = vunpack.c.l.b16 %v1891
        %v2424 = vunpack.c.l.b16 %v1892
        %v2425 = vunpack.c.l.b16 %v1893
        %v2426 = vunpack.c.l.b16 %v1894
        %v2427 = vunpack.c.l.b16 %v1895
        %v2428 = vunpack.c.l.b16 %v1896
        %v2429 = vunpack.c.l.b16 %v1897
        %v2430 = vunpack.c.l.b16 %v1898
        %v2431 = vunpack.c.l.b16 %v1899
        %v2432 = vunpack.c.l.b16 %v1900
        %v2433 = vunpack.c.l.b16 %v1901
        %v2434 = vunpack.c.l.b16 %v1902
        %v2435 = vunpack.c.l.b16 %v1903
        %v2436 = vunpack.c.l.b16 %v1904
        %v2437 = vunpack.c.l.b16 %v1905
        %v2438 = vunpack.c.l.b16 %v1906
        %v2439 = vunpack.c.l.b16 %v1907
        %v2440 = vunpack.c.l.b16 %v1908
        %v2441 = vunpack.c.l.b16 %v1909
        %v2442 = vunpack.c.l.b16 %v1910
        %v2443 = vunpack.c.l.b16 %v1911
        %v2444 = vunpack.c.l.b16 %v1912
        %v2445 = vunpack.c.l.b16 %v1913
        %v2446 = vunpack.c.l.b16 %v1914
        %v2447 = vunpack.c.l.b16 %v1915
        %v2448 = vunpack.c.l.b16 %v1916
        %v2449 = vunpack.c.l.b16 %v1917
        %v2450 = vunpack.c.l.b16 %v1918
        %v2451 = vunpack.c.l.b16 %v1919
        %v2452 = vunpack.c.l.b16 %v1920
        %v2453 = vunpack.c.l.b16 %v1921
        %v2454 = vunpack.c.l.b16 %v1922
        %v2455 = vunpack.c.l.b16 %v1923
        %v2456 = vunpack.c.l.b16 %v1924
        %v2457 = vunpack.c.l.b16 %v1925
        %v2458 = vunpack.c.l.b16 %v1926
        %v2459 = vunpack.c.l.b16 %v1927
        %v2460 = vunpack.c.l.b16 %v1928
        %v2461 = vunpack.c.l.b16 %v1929
        %v2462 = vunpack.c.l.b16 %v1930
        %v2463 = vunpack.c.l.b16 %v1931
        %v2464 = vunpack.c.l.b16 %v1932
        %v2465 = vunpack.c.l.b16 %v1933
        %v2466 = vunpack.c.l.b16 %v1934
        %v2467 = vunpack.c.l.b16 %v1935
        %v2468 = vunpack.c.l.b16 %v1936
        %v2469 = vunpack.c.l.b16 %v1937
        %v2470 = vunpack.c.l.b16 %v1938
        %v2471 = vunpack.c.l.b16 %v1939
        %v2472 = vunpack.c.l.b16 %v1940
        %v2473 = vunpack.c.l.b16 %v1941
        %v2474 = vunpack.c.l.b16 %v1942
        %v2475 = vunpack.c.l.b16 %v1943
        %v2476 = vunpack.c.l.b16 %v1944
        %v2477 = vunpack.c.l.b16 %v1945
        %v2478 = vunpack.c.l.b16 %v1946
        %v2479 = vunpack.c.l.b16 %v1947
        %v2480 = vunpack.c.l.b16 %v1948
        %v2481 = vunpack.c.l.b16 %v1949
        %v2482 = vunpack.c.l.b16 %v1950
        %v2483 = vunpack.c.l.b16 %v1951
        %v2484 = vunpack.c.l.b16 %v1952
        %v2485 = vunpack.c.l.b16 %v1953
        %v2486 = vunpack.c.l.b16 %v1954
        %v2487 = vunpack.c.l.b16 %v1955
        %v2488 = vunpack.c.l.b16 %v1956
        %v2489 = vunpack.c.l.b16 %v1957
        %v2490 = vunpack.c.l.b16 %v1958
        %v2491 = vunpack.c.l.b16 %v1959
        %v2492 = vunpack.c.l.b16 %v1960
        %v2493 = vunpack.c.l.b16 %v1961
        %v2494 = vunpack.c.l.b16 %v1962
        %v2495 = vunpack.c.l.b16 %v1963
        %v2496 = vunpack.c.l.b16 %v1964
        %v2497 = vunpack.c.l.b16 %v1965
        %v2498 = vunpack.c.l.b16 %v1966
        %v2499 = vunpack.c.l.b16 %v1967
        %v2500 = vunpack.c.l.b16 %v1968
        %v2501 = vunpack.c.l.b16 %v1969
        %v2502 = vunpack.c.l.b16 %v1970
        %v2503 = vunpack.c.l.b16 %v1971
        %v2504 = vunpack.c.l.b16 %v1972
        %v2505 = vunpack.c.l.b16 %v1973
        %v2506 = vunpack.c.l.b16 %v1974
        %v2507 = vunpack.c.l.b16 %v1975
        %v2508 = vunpack.c.l.b16 %v1976
        %v2509 = vunpack.c.l.b16 %v1977
        %v2510 = vunpack.c.l.b16 %v1978
        %v2511 = vunpack.c.l.b16 %v1979
        %v2512 = vunpack.c.l.b16 %v1980
        %v2513 = vunpack.c.l.b16 %v1981
        %v2514 = vunpack.c.l.b16 %v1982
        %v2515 = vunpack.c.l.b16 %v1983
        %v2516 = vunpack.c.l.b16 %v1984
        %v2517 = vunpack.c.l.b16 %v1985
        %v2518 = vunpack.c.l.b16 %v1986
        %v2519 = vunpack.c.l.b16 %v1987
        %v2520 = vunpack.c.l.b16 %v1988
        %v2521 = vunpack.c.l.b16 %v1989
        %v2522 = vunpack.c.l.b16 %v1990
        %v2523 = vunpack.c.l.b16 %v1991
        %v2524 = vunpack.c.l.b16 %v1992
        %v2525 = vunpack.c.l.b16 %v1993
        %v2526 = vunpack.c.l.b16 %v1994
        %v2527 = vunpack.c.l.b16 %v1995
        %v2528 = vunpack.c.l.b16 %v1996
        %v2529 = vunpack.c.l.b16 %v1997
        %v2530 = vunpack.c.l.b16 %v1998
        %v2531 = vunpack.c.l.b16 %v1999
        %v2532 = vunpack.c.l.b16 %v2000
        %v2533 = vunpack.c.l.b16 %v2001
        %v2534 = vunpack.c.l.b16 %v2002
        %v2535 = vunpack.c.l.b16 %v2003
        %v2536 = vunpack.c.l.b16 %v2004
        %v2537 = vunpack.c.l.b16 %v2005
        %v2538 = vunpack.c.l.b16 %v2006
        %v2539 = vunpack.c.l.b16 %v2007
        %v2540 = vunpack.c.l.b16 %v2008
        %v2541 = vunpack.c.l.b16 %v2009
        %v2542 = vunpack.c.l.b16 %v2010
        %v2543 = vunpack.c.l.b16 %v2011
        %v2544 = vunpack.c.l.b16 %v2012
        %v2545 = vunpack.c.l.b16 %v2013
        %v2546 = vunpack.c.l.b16 %v2014
        %v2547 = vunpack.c.l.b16 %v2015
        %v2548 = vunpack.c.l.b16 %v2016
        %v2549 = vunpack.c.l.b16 %v2017
        %v2550 = vunpack.c.l.b16 %v2018
        %v2551 = vunpack.c.l.b16 %v2019
        %v2552 = vunpack.c.l.b16 %v2020
        %v2553 = vunpack.c.l.b16 %v2021
        %v2554 = vunpack.c.l.b16 %v2022
        %v2555 = vunpack.c.l.b16 %v2023
        %v2556 = vunpack.c.l.b16 %v2024
        %v2557 = vunpack.c.l.b16 %v2025
        %v2558 = vunpack.c.l.b16 %v2026
        %v2559 = vunpack.c.l.b16 %v2027
        %v2560 = vunpack.c.l.b16 %v2028
        %v2561 = vunpack.c.l.b16 %v2029
        %v2562 = vunpack.c.l.b16 %v2030
        %v2563 = vunpack.c.l.b16 %v2031
        %v2564 = vunpack.c.l.b16 %v2032
        %v2565 = vunpack.c.l.b16 %v2033
        %v2566 = vunpack.c.l.b16 %v2034
        %v2567 = vunpack.c.l.b16 %v2035
        %v2568 = vunpack.c.l.b16 %v2036
        %v2569 = vunpack.c.l.b16 %v2037
        %v2570 = vunpack.c.l.b16 %v2038
        %v2571 = vunpack.c.l.b16 %v2039
        %v2572 = vunpack.c.l.b16 %v2040
        %v2573 = vunpack.c.l.b16 %v2041
        %v2574 = vunpack.c.l.b16 %v2042
        %v2575 = vunpack.c.l.b16 %v2043
        %v2576 = vunpack.c.l.b16 %v2044
        %v2577 = vunpack.c.l.b16 %v2045
        %v2578 = vunpack.c.l.b16 %v2046
        %v2579 = vunpack.c.l.b16 %v2047
        %v2580 = vunpack.c.l.b16 %v2048
        %v2581 = vunpack.c.l.b16 %v2049
        %v2582 = vunpack.c.l.b16 %v2050
        %v2583 = vunpack.c.l.b16 %v2051
        %v2584 = vunpack.c.l.b16 %v2052
        %v2585 = vunpack.c.l.b16 %v2053
        %v2586 = vunpack.c.l.b16 %v2054
        %v2587 = vunpack.c.l.b16 %v2055
        %v2588 = vunpack.c.l.b16 %v2056
        %v2589 = vunpack.c.l.b16 %v2057
        %v2590 = vunpack.c.l.b16 %v2058
        %v2591 = vunpack.c.l.b16 %v2059
        %v2592 = vunpack.c.l.b16 %v2060
        %v2593 = vunpack.c.l.b16 %v2061
        %v2594 = vunpack.c.l.b16 %v2062
        %v2595 = vunpack.c.l.b16 %v2063
        %v2596 = vunpack.c.l.b16 %v2064
        %v2597 = vunpack.c.l.b16 %v2065
        %v2598 = vunpack.c.l.b16 %v2066
        %v2599 = vunpack.c.l.b16 %v2067
        %v2600 = vunpack.c.l.b16 %v2068
        %v2601 = vunpack.c.l.b16 %v2069
        %v2602 = vunpack.c.l.b16 %v2070
        %v2603 = vunpack.c.l.b16 %v2071
        %v2604 = vunpack.c.l.b16 %v2072
        %v2605 = vunpack.c.l.b16 %v2073
        %v2606 = vunpack.c.l.b16 %v2074
        %v2607 = vunpack.c.l.b16 %v2075
        %v2608 = vunpack.c.l.b16 %v2076
        %v2609 = vunpack.c.l.b16 %v2077
        %v2610 = vunpack.c.l.b16 %v2078
        %v2611 = vunpack.c.l.b16 %v2079
        %v2612 = vunpack.c.l.b16 %v2080
        %v2613 = vunpack.c.l.b16 %v2081
        %v2614 = vunpack.c.l.b16 %v2082
        %v2615 = vunpack.c.l.b16 %v2083
        %v2616 = vunpack.c.l.b16 %v2084
        %v2617 = vunpack.c.l.b16 %v2085
        %v2618 = vunpack.c.l.b16 %v2086
        %v2619 = vunpack.c.l.b16 %v2087
        %v2620 = vunpack.c.l.b16 %v2088
        %v2621 = vunpack.c.l.b16 %v2089
        %v2622 = vunpack.c.l.b16 %v2090
        %v2623 = vunpack.c.l.b16 %v2091
        %v2624 = vunpack.c.l.b16 %v2092
        %v2625 = vunpack.c.l.b16 %v2093
        %v2626 = vunpack.c.l.b16 %v2094
        %v2627 = vunpack.c.l.b16 %v2095
        %v2628 = vunpack.c.l.b16 %v2096
        %v2629 = vunpack.c.l.b16 %v2097
        %v2630 = vunpack.c.l.b16 %v2098
        %v2631 = vunpack.c.l.b16 %v2099
        %v2632 = vunpack.c.l.b16 %v2100
        %v2633 = vunpack.c.l.b16 %v2101
        %v2634 = vunpack.c.l.b16 %v2102
        %v2635 = vunpack.c.l.b16 %v2103
        %v2636 = vunpack.c.l.b16 %v2104
        %v2637 = vunpack.c.l.b16 %v2105
        %v2638 = vunpack.c.l.b16 %v2106
        %v2639 = vunpack.c.l.b16 %v2107
        %v2640 = vunpack.c.l.b16 %v2108
        %v2641 = vunpack.c.l.b16 %v2109
        %v2642 = vunpack.c.l.b16 %v2110
        %v2643 = vunpack.c.l.b16 %v2111
        %v2644 = vunpack.c.l.b16 %v2112
        %v2645 = vunpack.c.l.b16 %v2113
        %v2646 = vunpack.c.l.b16 %v2114
        %v2647 = vunpack.c.l.b16 %v2115
        %v2648 = vunpack.c.l.b16 %v2116
        %v2649 = vunpack.c.l.b16 %v2117
        %v2650 = vunpack.c.l.b16 %v2118
        %v2651 = vunpack.c.l.b16 %v2119
        %v2652 = vpack.c.b16 %v2397, %v2396
        %v2653 = vpack.c.b16 %v2399, %v2398
        %v2654 = vpack.c.b16 %v2401, %v2400
        %v2655 = vpack.c.b16 %v2403, %v2402
        %v2656 = vpack.c.b16 %v2405, %v2404
        %v2657 = vpack.c.b16 %v2407, %v2406
        %v2658 = vpack.c.b16 %v2409, %v2408
        %v2659 = vpack.c.b16 %v2411, %v2410
        %v2660 = vpack.c.b16 %v2413, %v2412
        %v2661 = vpack.c.b16 %v2415, %v2414
        %v2662 = vpack.c.b16 %v2417, %v2416
        %v2663 = vpack.c.b16 %v2419, %v2418
        %v2664 = vpack.c.b16 %v2421, %v2420
        %v2665 = vpack.c.b16 %v2423, %v2422
        %v2666 = vpack.c.b16 %v2425, %v2424
        %v2667 = vpack.c.b16 %v2427, %v2426
        %v2668 = vpack.c.b16 %v2429, %v2428
        %v2669 = vpack.c.b16 %v2431, %v2430
        %v2670 = vpack.c.b16 %v2433, %v2432
        %v2671 = vpack.c.b16 %v2435, %v2434
        %v2672 = vpack.c.b16 %v2437, %v2436
        %v2673 = vpack.c.b16 %v2439, %v2438
        %v2674 = vpack.c.b16 %v2441, %v2440
        %v2675 = vpack.c.b16 %v2443, %v2442
        %v2676 = vpack.c.b16 %v2445, %v2444
        %v2677 = vpack.c.b16 %v2447, %v2446
        %v2678 = vpack.c.b16 %v2449, %v2448
        %v2679 = vpack.c.b16 %v2451, %v2450
        %v2680 = vpack.c.b16 %v2453, %v2452
        %v2681 = vpack.c.b16 %v2455, %v2454
        %v2682 = vpack.c.b16 %v2457, %v2456
        %v2683 = vpack.c.b16 %v2459, %v2458
        %v2684 = vpack.c.b16 %v2461, %v2460
        %v2685 = vpack.c.b16 %v2463, %v2462
        %v2686 = vpack.c.b16 %v2465, %v2464
        %v2687 = vpack.c.b16 %v2467, %v2466
        %v2688 = vpack.c.b16 %v2469, %v2468
        %v2689 = vpack.c.b16 %v2471, %v2470
        %v2690 = vpack.c.b16 %v2473, %v2472
        %v2691 = vpack.c.b16 %v2475, %v2474
        %v2692 = vpack.c.b16 %v2477, %v2476
        %v2693 = vpack.c.b16 %v2479, %v2478
        %v2694 = vpack.c.b16 %v2481, %v2480
        %v2695 = vpack.c.b16 %v2483, %v2482
        %v2696 = vpack.c.b16 %v2485, %v2484
        %v2697 = vpack.c.b16 %v2487, %v2486
        %v2698 = vpack.c.b16 %v2489, %v2488
        %v2699 = vpack.c.b16 %v2491, %v2490
        %v2700 = vpack.c.b16 %v2493, %v2492
        %v2701 = vpack.c.b16 %v2495, %v2494
        %v2702 = vpack.c.b16 %v2497, %v2496
        %v2703 = vpack.c.b16 %v2499, %v2498
        %v2704 = vpack.c.b16 %v2501, %v2500
        %v2705 = vpack.c.b16 %v2503, %v2502
        %v2706 = vpack.c.b16 %v2505, %v2504
        %v2707 = vpack.c.b16 %v2507, %v2506
        %v2708 = vpack.c.b16 %v2509, %v2508
        %v2709 = vpack.c.b16 %v2511, %v2510
        %v2710 = vpack.c.b16 %v2513, %v2512
        %v2711 = vpack.c.b16 %v2515, %v2514
        %v2712 = vpack.c.b16 %v2517, %v2516
        %v2713 = vpack.c.b16 %v2519, %v2518
        %v2714 = vpack.c.b16 %v2521, %v2520
        %v2715 = vpack.c.b16 %v2523, %v2522
        %v2716 = vpack.c.b16 %v2525, %v2524
        %v2717 = vpack.c.b16 %v2527, %v2526
        %v2718 = vpack.c.b16 %v2529, %v2528
        %v2719 = vpack.c.b16 %v2531, %v2530
        %v2720 = vpack.c.b16 %v2533, %v2532
        %v2721 = vpack.c.b16 %v2535, %v2534
        %v2722 = vpack.c.b16 %v2537, %v2536
        %v2723 = vpack.c.b16 %v2539, %v2538
        %v2724 = vpack.c.b16 %v2541, %v2540
        %v2725 = vpack.c.b16 %v2543, %v2542
        %v2726 = vpack.c.b16 %v2545, %v2544
        %v2727 = vpack.c.b16 %v2547, %v2546
        %v2728 = vpack.c.b16 %v2549, %v2548
        %v2729 = vpack.c.b16 %v2551, %v2550
        %v2730 = vpack.c.b16 %v2553, %v2552
        %v2731 = vpack.c.b16 %v2555, %v2554
        %v2732 = vpack.c.b16 %v2557, %v2556
        %v2733 = vpack.c.b16 %v2559, %v2558
        %v2734 = vpack.c.b16 %v2561, %v2560
        %v2735 = vpack.c.b16 %v2563, %v2562
        %v2736 = vpack.c.b16 %v2565, %v2564
        %v2737 = vpack.c.b16 %v2567, %v2566
        %v2738 = vpack.c.b16 %v2569, %v2568
        %v2739 = vpack.c.b16 %v2571, %v2570
        %v2740 = vpack.c.b16 %v2573, %v2572
        %v2741 = vpack.c.b16 %v2575, %v2574
        %v2742 = vpack.c.b16 %v2577, %v2576
        %v2743 = vpack.c.b16 %v2579, %v2578
        %v2744 = vpack.c.b16 %v2581, %v2580
        %v2745 = vpack.c.b16 %v2583, %v2582
        %v2746 = vpack.c.b16 %v2585, %v2584
        %v2747 = vpack.c.b16 %v2587, %v2586
        %v2748 = vpack.c.b16 %v2589, %v2588
        %v2749 = vpack.c.b16 %v2591, %v2590
        %v2750 = vpack.c.b16 %v2593, %v2592
        %v2751 = vpack.c.b16 %v2595, %v2594
        %v2752 = vpack.c.b16 %v2597, %v2596
        %v2753 = vpack.c.b16 %v2599, %v2598
        %v2754 = vpack.c.b16 %v2601, %v2600
        %v2755 = vpack.c.b16 %v2603, %v2602
        %v2756 = vpack.c.b16 %v2605, %v2604
        %v2757 = vpack.c.b16 %v2607, %v2606
        %v2758 = vpack.c.b16 %v2609, %v2608
        %v2759 = vpack.c.b16 %v2611, %v2610
        %v2760 = vpack.c.b16 %v2613, %v2612
        %v2761 = vpack.c.b16 %v2615, %v2614
        %v2762 = vpack.c.b16 %v2617, %v2616
        %v2763 = vpack.c.b16 %v2619, %v2618
        %v2764 = vpack.c.b16 %v2621, %v2620
        %v2765 = vpack.c.b16 %v2623, %v2622
        %v2766 = vpack.c.b16 %v2625, %v2624
        %v2767 = vpack.c.b16 %v2627, %v2626
        %v2768 = vpack.c.b16 %v2629, %v2628
        %v2769 = vpack.c.b16 %v2631, %v2630
        %v2770 = vpack.c.b16 %v2633, %v2632
        %v2771 = vpack.c.b16 %v2635, %v2634
        %v2772 = vpack.c.b16 %v2637, %v2636
        %v2773 = vpack.c.b16 %v2639, %v2638
        %v2774 = vpack.c.b16 %v2641, %v2640
        %v2775 = vpack.c.b16 %v2643, %v2642
        %v2776 = vpack.c.b16 %v2645, %v2644
        %v2777 = vpack.c.b16 %v2647, %v2646
        %v2778 = vpack.c.b16 %v2649, %v2648
        %v2779 = vpack.c.b16 %v2651, %v2650
        %2908 = vmatpush.bf16.msra.mxu0 %v2659
        %2909 = vmatpush.bf16.msra.mxu0 %v2658
        %2910 = vmatpush.bf16.msra.mxu0 %v2657
        %2911 = vmatpush.bf16.msra.mxu0 %v2656
        %2912 = vmatpush.bf16.msra.mxu0 %v2655
        %2913 = vmatpush.bf16.msra.mxu0 %v2654
        %2914 = vmatpush.bf16.msra.mxu0 %v2653
        %2915 = vmatpush.bf16.msra.mxu0 %v2652
        %2916 = vmatmul.bf16.gmra.mxu0 %v2120
        %v2917 = vpop.f32.mrf.mxu0
        %v2918 = vadd.f32 %v2138, %v2917
        %v2919 = vpop.f32.mrf.mxu0
        %2920 = vdwg.mxu0
        %2921 = vmatpush.bf16.msra.mxu0 %v2667
        %2922 = vmatpush.bf16.msra.mxu0 %v2666
        %2923 = vmatpush.bf16.msra.mxu0 %v2665
        %2924 = vmatpush.bf16.msra.mxu0 %v2664
        %2925 = vmatpush.bf16.msra.mxu0 %v2663
        %2926 = vmatpush.bf16.msra.mxu0 %v2662
        %2927 = vmatpush.bf16.msra.mxu0 %v2661
        %2928 = vmatpush.bf16.msra.mxu0 %v2660
        %2929 = vmatmul.bf16.gmra.mxu0 %v2121
        %v2930 = vpop.f32.mrf.mxu0
        %v2931 = vadd.f32 %v2918, %v2930
        %v2932 = vpop.f32.mrf.mxu0
        %2933 = vdwg.mxu0
        %2934 = vmatpush.bf16.msra.mxu0 %v2675
        %2935 = vmatpush.bf16.msra.mxu0 %v2674
        %2936 = vmatpush.bf16.msra.mxu0 %v2673
        %2937 = vmatpush.bf16.msra.mxu0 %v2672
        %2938 = vmatpush.bf16.msra.mxu0 %v2671
        %2939 = vmatpush.bf16.msra.mxu0 %v2670
        %2940 = vmatpush.bf16.msra.mxu0 %v2669
        %2941 = vmatpush.bf16.msra.mxu0 %v2668
        %2942 = vmatmul.bf16.gmra.mxu0 %v2122
        %v2943 = vpop.f32.mrf.mxu0
        %v2944 = vadd.f32 %v2931, %v2943
        %v2945 = vpop.f32.mrf.mxu0
        %2946 = vdwg.mxu0
        %2947 = vmatpush.bf16.msra.mxu0 %v2683
        %2948 = vmatpush.bf16.msra.mxu0 %v2682
        %2949 = vmatpush.bf16.msra.mxu0 %v2681
        %2950 = vmatpush.bf16.msra.mxu0 %v2680
        %2951 = vmatpush.bf16.msra.mxu0 %v2679
        %2952 = vmatpush.bf16.msra.mxu0 %v2678
        %2953 = vmatpush.bf16.msra.mxu0 %v2677
        %2954 = vmatpush.bf16.msra.mxu0 %v2676
        %2955 = vmatmul.bf16.gmra.mxu0 %v2123
        %v2956 = vpop.f32.mrf.mxu0
        %v2957 = vadd.f32 %v2944, %v2956
        %v2958 = vpop.f32.mrf.mxu0
        %2959 = vdwg.mxu0
        %2960 = vmatpush.bf16.msra.mxu0 %v2691
        %2961 = vmatpush.bf16.msra.mxu0 %v2690
        %2962 = vmatpush.bf16.msra.mxu0 %v2689
        %2963 = vmatpush.bf16.msra.mxu0 %v2688
        %2964 = vmatpush.bf16.msra.mxu0 %v2687
        %2965 = vmatpush.bf16.msra.mxu0 %v2686
        %2966 = vmatpush.bf16.msra.mxu0 %v2685
        %2967 = vmatpush.bf16.msra.mxu0 %v2684
        %2968 = vmatmul.bf16.gmra.mxu0 %v2124
        %v2969 = vpop.f32.mrf.mxu0
        %v2970 = vadd.f32 %v2957, %v2969
        %v2971 = vpop.f32.mrf.mxu0
        %2972 = vdwg.mxu0
        %2973 = vmatpush.bf16.msra.mxu0 %v2699
        %2974 = vmatpush.bf16.msra.mxu0 %v2698
        %2975 = vmatpush.bf16.msra.mxu0 %v2697
        %2976 = vmatpush.bf16.msra.mxu0 %v2696
        %2977 = vmatpush.bf16.msra.mxu0 %v2695
        %2978 = vmatpush.bf16.msra.mxu0 %v2694
        %2979 = vmatpush.bf16.msra.mxu0 %v2693
        %2980 = vmatpush.bf16.msra.mxu0 %v2692
        %2981 = vmatmul.bf16.gmra.mxu0 %v2125
        %v2982 = vpop.f32.mrf.mxu0
        %v2983 = vadd.f32 %v2970, %v2982
        %v2984 = vpop.f32.mrf.mxu0
        %2985 = vdwg.mxu0
        %2986 = vmatpush.bf16.msra.mxu0 %v2707
        %2987 = vmatpush.bf16.msra.mxu0 %v2706
        %2988 = vmatpush.bf16.msra.mxu0 %v2705
        %2989 = vmatpush.bf16.msra.mxu0 %v2704
        %2990 = vmatpush.bf16.msra.mxu0 %v2703
        %2991 = vmatpush.bf16.msra.mxu0 %v2702
        %2992 = vmatpush.bf16.msra.mxu0 %v2701
        %2993 = vmatpush.bf16.msra.mxu0 %v2700
        %2994 = vmatmul.bf16.gmra.mxu0 %v2126
        %v2995 = vpop.f32.mrf.mxu0
        %v2996 = vadd.f32 %v2983, %v2995
        %v2997 = vpop.f32.mrf.mxu0
        %2998 = vdwg.mxu0
        %2999 = vmatpush.bf16.msra.mxu0 %v2715
        %3000 = vmatpush.bf16.msra.mxu0 %v2714
        %3001 = vmatpush.bf16.msra.mxu0 %v2713
        %3002 = vmatpush.bf16.msra.mxu0 %v2712
        %3003 = vmatpush.bf16.msra.mxu0 %v2711
        %3004 = vmatpush.bf16.msra.mxu0 %v2710
        %3005 = vmatpush.bf16.msra.mxu0 %v2709
        %3006 = vmatpush.bf16.msra.mxu0 %v2708
        %3007 = vmatmul.bf16.gmra.mxu0 %v2127
        %v3008 = vpop.f32.mrf.mxu0
        %v3009 = vadd.f32 %v2996, %v3008
        %v3010 = vpop.f32.mrf.mxu0
        %3011 = vdwg.mxu0
        %3012 = vmatpush.bf16.msra.mxu0 %v2723
        %3013 = vmatpush.bf16.msra.mxu0 %v2722
        %3014 = vmatpush.bf16.msra.mxu0 %v2721
        %3015 = vmatpush.bf16.msra.mxu0 %v2720
        %3016 = vmatpush.bf16.msra.mxu0 %v2719
        %3017 = vmatpush.bf16.msra.mxu0 %v2718
        %3018 = vmatpush.bf16.msra.mxu0 %v2717
        %3019 = vmatpush.bf16.msra.mxu0 %v2716
        %3020 = vmatmul.bf16.gmra.mxu0 %v2128
        %v3021 = vpop.f32.mrf.mxu0
        %v3022 = vadd.f32 %v3009, %v3021
        %v3023 = vpop.f32.mrf.mxu0
        %3024 = vdwg.mxu0
        %3025 = vmatpush.bf16.msra.mxu0 %v2731
        %3026 = vmatpush.bf16.msra.mxu0 %v2730
        %3027 = vmatpush.bf16.msra.mxu0 %v2729
        %3028 = vmatpush.bf16.msra.mxu0 %v2728
        %3029 = vmatpush.bf16.msra.mxu0 %v2727
        %3030 = vmatpush.bf16.msra.mxu0 %v2726
        %3031 = vmatpush.bf16.msra.mxu0 %v2725
        %3032 = vmatpush.bf16.msra.mxu0 %v2724
        %3033 = vmatmul.bf16.gmra.mxu0 %v2129
        %v3034 = vpop.f32.mrf.mxu0
        %v3035 = vadd.f32 %v3022, %v3034
        %v3036 = vpop.f32.mrf.mxu0
        %3037 = vdwg.mxu0
        %3038 = vmatpush.bf16.msra.mxu0 %v2739
        %3039 = vmatpush.bf16.msra.mxu0 %v2738
        %3040 = vmatpush.bf16.msra.mxu0 %v2737
        %3041 = vmatpush.bf16.msra.mxu0 %v2736
        %3042 = vmatpush.bf16.msra.mxu0 %v2735
        %3043 = vmatpush.bf16.msra.mxu0 %v2734
        %3044 = vmatpush.bf16.msra.mxu0 %v2733
        %3045 = vmatpush.bf16.msra.mxu0 %v2732
        %3046 = vmatmul.bf16.gmra.mxu0 %v2130
        %v3047 = vpop.f32.mrf.mxu0
        %v3048 = vadd.f32 %v3035, %v3047
        %v3049 = vpop.f32.mrf.mxu0
        %3050 = vdwg.mxu0
        %3051 = vmatpush.bf16.msra.mxu0 %v2747
        %3052 = vmatpush.bf16.msra.mxu0 %v2746
        %3053 = vmatpush.bf16.msra.mxu0 %v2745
        %3054 = vmatpush.bf16.msra.mxu0 %v2744
        %3055 = vmatpush.bf16.msra.mxu0 %v2743
        %3056 = vmatpush.bf16.msra.mxu0 %v2742
        %3057 = vmatpush.bf16.msra.mxu0 %v2741
        %3058 = vmatpush.bf16.msra.mxu0 %v2740
        %3059 = vmatmul.bf16.gmra.mxu0 %v2131
        %v3060 = vpop.f32.mrf.mxu0
        %v3061 = vadd.f32 %v3048, %v3060
        %v3062 = vpop.f32.mrf.mxu0
        %3063 = vdwg.mxu0
        %3064 = vmatpush.bf16.msra.mxu0 %v2755
        %3065 = vmatpush.bf16.msra.mxu0 %v2754
        %3066 = vmatpush.bf16.msra.mxu0 %v2753
        %3067 = vmatpush.bf16.msra.mxu0 %v2752
        %3068 = vmatpush.bf16.msra.mxu0 %v2751
        %3069 = vmatpush.bf16.msra.mxu0 %v2750
        %3070 = vmatpush.bf16.msra.mxu0 %v2749
        %3071 = vmatpush.bf16.msra.mxu0 %v2748
        %3072 = vmatmul.bf16.gmra.mxu0 %v2132
        %v3073 = vpop.f32.mrf.mxu0
        %v3074 = vadd.f32 %v3061, %v3073
        %v3075 = vpop.f32.mrf.mxu0
        %3076 = vdwg.mxu0
        %3077 = vmatpush.bf16.msra.mxu0 %v2763
        %3078 = vmatpush.bf16.msra.mxu0 %v2762
        %3079 = vmatpush.bf16.msra.mxu0 %v2761
        %3080 = vmatpush.bf16.msra.mxu0 %v2760
        %3081 = vmatpush.bf16.msra.mxu0 %v2759
        %3082 = vmatpush.bf16.msra.mxu0 %v2758
        %3083 = vmatpush.bf16.msra.mxu0 %v2757
        %3084 = vmatpush.bf16.msra.mxu0 %v2756
        %3085 = vmatmul.bf16.gmra.mxu0 %v2133
        %v3086 = vpop.f32.mrf.mxu0
        %v3087 = vadd.f32 %v3074, %v3086
        %v3088 = vpop.f32.mrf.mxu0
        %3089 = vdwg.mxu0
        %3090 = vmatpush.bf16.msra.mxu0 %v2771
        %3091 = vmatpush.bf16.msra.mxu0 %v2770
        %3092 = vmatpush.bf16.msra.mxu0 %v2769
        %3093 = vmatpush.bf16.msra.mxu0 %v2768
        %3094 = vmatpush.bf16.msra.mxu0 %v2767
        %3095 = vmatpush.bf16.msra.mxu0 %v2766
        %3096 = vmatpush.bf16.msra.mxu0 %v2765
        %3097 = vmatpush.bf16.msra.mxu0 %v2764
        %3098 = vmatmul.bf16.gmra.mxu0 %v2134
        %v3099 = vpop.f32.mrf.mxu0
        %v3100 = vadd.f32 %v3087, %v3099
        %v3101 = vpop.f32.mrf.mxu0
        %3102 = vdwg.mxu0
        %3103 = vmatpush.bf16.msra.mxu0 %v2779
        %3104 = vmatpush.bf16.msra.mxu0 %v2778
        %3105 = vmatpush.bf16.msra.mxu0 %v2777
        %3106 = vmatpush.bf16.msra.mxu0 %v2776
        %3107 = vmatpush.bf16.msra.mxu0 %v2775
        %3108 = vmatpush.bf16.msra.mxu0 %v2774
        %3109 = vmatpush.bf16.msra.mxu0 %v2773
        %3110 = vmatpush.bf16.msra.mxu0 %v2772
        %3111 = vmatmul.bf16.gmra.mxu0 %v2135
        %v3112 = vpop.f32.mrf.mxu0
        %v3113 = vadd.f32 %v3100, %v3112
        %v3114 = vpop.f32.mrf.mxu0
        %3115 = vdwg.mxu0
        %v3116 = vadd.f32 %v1407, %v3113
        %v3117 = vld [vmem:[%s20] sm:$0x1]
        %v3118 = vld [vmem:[%s21] sm:$0x1]
        %v3119 = vsel %vm875, %v3116, 0.0
        %3120 = vadd.xlane.f32.xlu0 %v3119
        %v3121 = vpop.xlane.xlu0 %3120
        %v3122 = vmul.f32 %v3121, %v885
        %v3123 = vsub.f32 %v3116, %v3122
        %v3124 = vmul.f32 %v3123, %v3123
        %v3125 = vsel %vm875, %v3124, 0.0
        %3126 = vadd.xlane.f32.xlu0 %v3125
        %v3127 = vpop.xlane.xlu0 %3126
        %v3128 = vmul.f32 %v3127, %v885
        %v3129 = vadd.f32 %v3128, 1e-05
        %v3130 = vrsqrt.pop %v3129
        %v3131 = vmul.f32 %v3130, %v3129
        %v3132 = vmul.f32 %v3131, %v3130
        %v3133 = vmul.f32 0.5, %v3132
        %v3134 = vsub.f32 1.5, %v3133
        %v3135 = vmul.f32 %v3130, %v3134
        %vm3136 = vweird.f32 %v3129
        %vm3137 = vweird.f32 %v3130
        %vm3138 = vmor %vm3136, %vm3137
        %v3139 = vsel %vm3138, %v3130, %v3135
        %v3140 = vmul.f32 %v3123, %v3139
        %v3142 = vperm.slane %v3117, 0
        %v3144 = vmul.f32 %v3140, %v3142
        %v3146 = vperm.slane %v3118, 0
        %v3148 = vadd.f32 %v3144, %v3146
        %s3149 = scalar_lea.vmem %s6, 16
        %v3150 = vld [vmem:[%s3149] sm:$0xf]
        %v3151 = vld [vmem:[%s3149 + $0x4] sm:$0xf]
        %v3152 = vld [vmem:[%s3149 + $0x8] sm:$0xf]
        %v3153 = vld [vmem:[%s3149 + $0xc] sm:$0xf]
        %v3154 = vpack.c.bf16 %v3148, %v3148
        %s3155 = scalar_lea.vmem %s7, 1
        %v3156 = vld [vmem:[%s3155] sm:$0x1]
        %v3158 = vperm.slane %v3156, 0
        %v3164 = vunpack.c.l.b16 %v3150
        %v3165 = vunpack.c.l.b16 %v3151
        %v3166 = vunpack.c.l.b16 %v3152
        %v3167 = vunpack.c.l.b16 %v3153
        %v3168 = vpack.c.b16 %v3165, %v3164
        %v3169 = vpack.c.b16 %v3167, %v3166
        %v3173 = vsel %vm936, %v3154, 0
        %3175 = vmatpush.bf16.msra.mxu0 0
        %3176 = vmatpush.bf16.msra.mxu0 0
        %3177 = vmatpush.bf16.msra.mxu0 0
        %3178 = vmatpush.bf16.msra.mxu0 0
        %3179 = vmatpush.bf16.msra.mxu0 0
        %3180 = vmatpush.bf16.msra.mxu0 0
        %3181 = vmatpush.bf16.msra.mxu0 %v3169
        %3182 = vmatpush.bf16.msra.mxu0 %v3168
        %3183 = vmatmul.bf16.gmra.mxu0 %v3173
        %v3184 = vpop.f32.mrf.mxu0
        %v3185 = vadd.f32 %v3158, %v3184
        %v3186 = vpop.f32.mrf.mxu0
        %3187 = vdwg.mxu0
        %3189 = vrot.lane.b32.xlu0 %v3185, 120
        %v3190 = vpop.permute.xlu0 %3189
        %3191 = vrot.lane.b32.xlu0 %v3185, 112
        %v3192 = vpop.permute.xlu0 %3191
        %3193 = vrot.lane.b32.xlu0 %v3185, 104
        %v3194 = vpop.permute.xlu0 %3193
        %s3195 = scalar_lea.vmem %s8, 16
        %v3196 = vld [vmem:[%s3195] sm:$0xf]
        %v3197 = vld [vmem:[%s3195 + $0x4] sm:$0xf]
        %v3198 = vld [vmem:[%s3195 + $0x8] sm:$0xf]
        %v3199 = vld [vmem:[%s3195 + $0xc] sm:$0xf]
        %s3200 = scalar_lea.vmem %s9, 1
        %v3201 = vld [vmem:[%s3200] sm:$0x1]
        %v3203 = vperm.slane %v3201, 0
        %v3209 = vunpack.c.l.b16 %v3196
        %v3210 = vunpack.c.l.b16 %v3197
        %v3211 = vunpack.c.l.b16 %v3198
        %v3212 = vunpack.c.l.b16 %v3199
        %v3213 = vpack.c.b16 %v3210, %v3209
        %v3214 = vpack.c.b16 %v3212, %v3211
        %3217 = vmatpush.bf16.msra.mxu0 0
        %3218 = vmatpush.bf16.msra.mxu0 0
        %3219 = vmatpush.bf16.msra.mxu0 0
        %3220 = vmatpush.bf16.msra.mxu0 0
        %3221 = vmatpush.bf16.msra.mxu0 0
        %3222 = vmatpush.bf16.msra.mxu0 0
        %3223 = vmatpush.bf16.msra.mxu0 %v3214
        %3224 = vmatpush.bf16.msra.mxu0 %v3213
        %3225 = vmatmul.bf16.gmra.mxu0 %v3173
        %v3226 = vpop.f32.mrf.mxu0
        %v3227 = vadd.f32 %v3203, %v3226
        %v3228 = vpop.f32.mrf.mxu0
        %3229 = vdwg.mxu0
        %3231 = vrot.lane.b32.xlu0 %v3227, 120
        %v3232 = vpop.permute.xlu0 %3231
        %3233 = vrot.lane.b32.xlu0 %v3227, 112
        %v3234 = vpop.permute.xlu0 %3233
        %3235 = vrot.lane.b32.xlu0 %v3227, 104
        %v3236 = vpop.permute.xlu0 %3235
        %s3237 = scalar_lea.vmem %s10, 16
        %v3238 = vld [vmem:[%s3237] sm:$0xf]
        %v3239 = vld [vmem:[%s3237 + $0x4] sm:$0xf]
        %v3240 = vld [vmem:[%s3237 + $0x8] sm:$0xf]
        %v3241 = vld [vmem:[%s3237 + $0xc] sm:$0xf]
        %s3242 = scalar_lea.vmem %s11, 1
        %v3243 = vld [vmem:[%s3242] sm:$0x1]
        %v3245 = vperm.slane %v3243, 0
        %v3251 = vunpack.c.l.b16 %v3238
        %v3252 = vunpack.c.l.b16 %v3239
        %v3253 = vunpack.c.l.b16 %v3240
        %v3254 = vunpack.c.l.b16 %v3241
        %v3255 = vpack.c.b16 %v3252, %v3251
        %v3256 = vpack.c.b16 %v3254, %v3253
        %3259 = vmatpush.bf16.msra.mxu0 0
        %3260 = vmatpush.bf16.msra.mxu0 0
        %3261 = vmatpush.bf16.msra.mxu0 0
        %3262 = vmatpush.bf16.msra.mxu0 0
        %3263 = vmatpush.bf16.msra.mxu0 0
        %3264 = vmatpush.bf16.msra.mxu0 0
        %3265 = vmatpush.bf16.msra.mxu0 %v3256
        %3266 = vmatpush.bf16.msra.mxu0 %v3255
        %3267 = vmatmul.bf16.gmra.mxu0 %v3173
        %v3268 = vpop.f32.mrf.mxu0
        %v3269 = vadd.f32 %v3245, %v3268
        %v3270 = vpop.f32.mrf.mxu0
        %3271 = vdwg.mxu0
        %3273 = vrot.lane.b32.xlu0 %v3269, 120
        %v3274 = vpop.permute.xlu0 %3273
        %3275 = vrot.lane.b32.xlu0 %v3269, 112
        %v3276 = vpop.permute.xlu0 %3275
        %3277 = vrot.lane.b32.xlu0 %v3269, 104
        %v3278 = vpop.permute.xlu0 %3277
        %v3279 = vsel %vm1040, %v3185, 0
        %v3281 = vsel %vm1040, %v3227, 0
        %3283 = vmatpush.xpose.msra.mxu0 0.0
        %3284 = vmatpush.xpose.msra.mxu0 0.0
        %3285 = vmatpush.xpose.msra.mxu0 0.0
        %3286 = vmatpush.xpose.msra.mxu0 0.0
        %3287 = vmatpush.xpose.msra.mxu0 0.0
        %3288 = vmatpush.xpose.msra.mxu0 0.0
        %3289 = vmatpush.xpose.msra.mxu0 0.0
        %3290 = vmatpush.xpose.msra.mxu0 0.0
        %3291 = vmatpush.xpose.msra.mxu0 0.0
        %3292 = vmatpush.xpose.msra.mxu0 0.0
        %3293 = vmatpush.xpose.msra.mxu0 0.0
        %3294 = vmatpush.xpose.msra.mxu0 0.0
        %3295 = vmatpush.xpose.msra.mxu0 0.0
        %3296 = vmatpush.xpose.msra.mxu0 0.0
        %3297 = vmatpush.xpose.msra.mxu0 0.0
        %3298 = vmatpush.xpose.msra.mxu0 %v3281
        %3299 = vmatmul.f32.gmra.mxu0 %v3279
        %v3300 = vpop.f32.mrf.mxu0
        %v3301 = vadd.f32 0.0, %v3300
        %3302 = vdwg.mxu0
        %v3303 = vsel %vm1040, %v3190, 0
        %v3305 = vsel %vm1040, %v3232, 0
        %3307 = vmatpush.xpose.msra.mxu0 0.0
        %3308 = vmatpush.xpose.msra.mxu0 0.0
        %3309 = vmatpush.xpose.msra.mxu0 0.0
        %3310 = vmatpush.xpose.msra.mxu0 0.0
        %3311 = vmatpush.xpose.msra.mxu0 0.0
        %3312 = vmatpush.xpose.msra.mxu0 0.0
        %3313 = vmatpush.xpose.msra.mxu0 0.0
        %3314 = vmatpush.xpose.msra.mxu0 0.0
        %3315 = vmatpush.xpose.msra.mxu0 0.0
        %3316 = vmatpush.xpose.msra.mxu0 0.0
        %3317 = vmatpush.xpose.msra.mxu0 0.0
        %3318 = vmatpush.xpose.msra.mxu0 0.0
        %3319 = vmatpush.xpose.msra.mxu0 0.0
        %3320 = vmatpush.xpose.msra.mxu0 0.0
        %3321 = vmatpush.xpose.msra.mxu0 0.0
        %3322 = vmatpush.xpose.msra.mxu0 %v3305
        %3323 = vmatmul.f32.gmra.mxu0 %v3303
        %v3324 = vpop.f32.mrf.mxu0
        %v3325 = vadd.f32 0.0, %v3324
        %3326 = vdwg.mxu0
        %v3327 = vsel %vm1040, %v3192, 0
        %v3329 = vsel %vm1040, %v3234, 0
        %3331 = vmatpush.xpose.msra.mxu0 0.0
        %3332 = vmatpush.xpose.msra.mxu0 0.0
        %3333 = vmatpush.xpose.msra.mxu0 0.0
        %3334 = vmatpush.xpose.msra.mxu0 0.0
        %3335 = vmatpush.xpose.msra.mxu0 0.0
        %3336 = vmatpush.xpose.msra.mxu0 0.0
        %3337 = vmatpush.xpose.msra.mxu0 0.0
        %3338 = vmatpush.xpose.msra.mxu0 0.0
        %3339 = vmatpush.xpose.msra.mxu0 0.0
        %3340 = vmatpush.xpose.msra.mxu0 0.0
        %3341 = vmatpush.xpose.msra.mxu0 0.0
        %3342 = vmatpush.xpose.msra.mxu0 0.0
        %3343 = vmatpush.xpose.msra.mxu0 0.0
        %3344 = vmatpush.xpose.msra.mxu0 0.0
        %3345 = vmatpush.xpose.msra.mxu0 0.0
        %3346 = vmatpush.xpose.msra.mxu0 %v3329
        %3347 = vmatmul.f32.gmra.mxu0 %v3327
        %v3348 = vpop.f32.mrf.mxu0
        %v3349 = vadd.f32 0.0, %v3348
        %3350 = vdwg.mxu0
        %v3351 = vsel %vm1040, %v3194, 0
        %v3353 = vsel %vm1040, %v3236, 0
        %3355 = vmatpush.xpose.msra.mxu0 0.0
        %3356 = vmatpush.xpose.msra.mxu0 0.0
        %3357 = vmatpush.xpose.msra.mxu0 0.0
        %3358 = vmatpush.xpose.msra.mxu0 0.0
        %3359 = vmatpush.xpose.msra.mxu0 0.0
        %3360 = vmatpush.xpose.msra.mxu0 0.0
        %3361 = vmatpush.xpose.msra.mxu0 0.0
        %3362 = vmatpush.xpose.msra.mxu0 0.0
        %3363 = vmatpush.xpose.msra.mxu0 0.0
        %3364 = vmatpush.xpose.msra.mxu0 0.0
        %3365 = vmatpush.xpose.msra.mxu0 0.0
        %3366 = vmatpush.xpose.msra.mxu0 0.0
        %3367 = vmatpush.xpose.msra.mxu0 0.0
        %3368 = vmatpush.xpose.msra.mxu0 0.0
        %3369 = vmatpush.xpose.msra.mxu0 0.0
        %3370 = vmatpush.xpose.msra.mxu0 %v3353
        %3371 = vmatmul.f32.gmra.mxu0 %v3351
        %v3372 = vpop.f32.mrf.mxu0
        %v3373 = vadd.f32 0.0, %v3372
        %3374 = vdwg.mxu0
        %v3375 = vsel %vm1137, %v3301, -inf
        %3376 = vmax.xlane.f32.xlu0 %v3375
        %v3377 = vpop.xlane.xlu0 %3376
        %v3378 = vsel %vm1137, %v3325, -inf
        %3379 = vmax.xlane.f32.xlu0 %v3378
        %v3380 = vpop.xlane.xlu0 %3379
        %v3381 = vsel %vm1137, %v3349, -inf
        %3382 = vmax.xlane.f32.xlu0 %v3381
        %v3383 = vpop.xlane.xlu0 %3382
        %v3384 = vsel %vm1137, %v3373, -inf
        %3385 = vmax.xlane.f32.xlu0 %v3384
        %v3386 = vpop.xlane.xlu0 %3385
        %v3387 = vsub.f32 %v3301, %v3377
        %v3388 = vsub.f32 %v3325, %v3380
        %v3389 = vsub.f32 %v3349, %v3383
        %v3390 = vsub.f32 %v3373, %v3386
        %v3391 = vmul.f32 %v3387, 1.442695
        %v3392 = vpow.pop %v3391
        %v3393 = vmul.f32 %v3388, 1.442695
        %v3394 = vpow.pop %v3393
        %v3395 = vmul.f32 %v3389, 1.442695
        %v3396 = vpow.pop %v3395
        %v3397 = vmul.f32 %v3390, 1.442695
        %v3398 = vpow.pop %v3397
        %v3399 = vsel %vm1137, %v3392, 0.0
        %3400 = vadd.xlane.f32.xlu0 %v3399
        %v3401 = vpop.xlane.xlu0 %3400
        %v3402 = vsel %vm1137, %v3394, 0.0
        %3403 = vadd.xlane.f32.xlu0 %v3402
        %v3404 = vpop.xlane.xlu0 %3403
        %v3405 = vsel %vm1137, %v3396, 0.0
        %3406 = vadd.xlane.f32.xlu0 %v3405
        %v3407 = vpop.xlane.xlu0 %3406
        %v3408 = vsel %vm1137, %v3398, 0.0
        %3409 = vadd.xlane.f32.xlu0 %v3408
        %v3410 = vpop.xlane.xlu0 %3409
        %v3411 = vrcp.pop %v3401
        %v3412 = vrcp.pop %v3404
        %v3413 = vrcp.pop %v3407
        %v3414 = vrcp.pop %v3410
        %v3415 = vmul.f32 %v3392, %v3411
        %v3416 = vmul.f32 %v3394, %v3412
        %v3417 = vmul.f32 %v3396, %v3413
        %v3418 = vmul.f32 %v3398, %v3414
        %v3420 = vsel %vm1182, %v3415, 0
        %v3422 = vsel %vm1186, %v3269, 0
        %3424 = vmatpush.msra.mxu0 0.0
        %3425 = vmatpush.msra.mxu0 0.0
        %3426 = vmatpush.msra.mxu0 0.0
        %3427 = vmatpush.msra.mxu0 0.0
        %3428 = vmatpush.msra.mxu0 0.0
        %3429 = vmatpush.msra.mxu0 0.0
        %3430 = vmatpush.msra.mxu0 0.0
        %3431 = vmatpush.msra.mxu0 0.0
        %3432 = vmatpush.msra.mxu0 0.0
        %3433 = vmatpush.msra.mxu0 0.0
        %3434 = vmatpush.msra.mxu0 0.0
        %3435 = vmatpush.msra.mxu0 0.0
        %3436 = vmatpush.msra.mxu0 0.0
        %3437 = vmatpush.msra.mxu0 0.0
        %3438 = vmatpush.msra.mxu0 0.0
        %3439 = vmatpush.msra.mxu0 %v3422
        %3440 = vmatmul.f32.gmra.mxu0 %v3420
        %v3441 = vpop.f32.mrf.mxu0
        %v3442 = vadd.f32 0.0, %v3441
        %3443 = vdwg.mxu0
        %v3445 = vsel %vm1182, %v3416, 0
        %v3447 = vsel %vm1186, %v3274, 0
        %3449 = vmatpush.msra.mxu0 0.0
        %3450 = vmatpush.msra.mxu0 0.0
        %3451 = vmatpush.msra.mxu0 0.0
        %3452 = vmatpush.msra.mxu0 0.0
        %3453 = vmatpush.msra.mxu0 0.0
        %3454 = vmatpush.msra.mxu0 0.0
        %3455 = vmatpush.msra.mxu0 0.0
        %3456 = vmatpush.msra.mxu0 0.0
        %3457 = vmatpush.msra.mxu0 0.0
        %3458 = vmatpush.msra.mxu0 0.0
        %3459 = vmatpush.msra.mxu0 0.0
        %3460 = vmatpush.msra.mxu0 0.0
        %3461 = vmatpush.msra.mxu0 0.0
        %3462 = vmatpush.msra.mxu0 0.0
        %3463 = vmatpush.msra.mxu0 0.0
        %3464 = vmatpush.msra.mxu0 %v3447
        %3465 = vmatmul.f32.gmra.mxu0 %v3445
        %v3466 = vpop.f32.mrf.mxu0
        %v3467 = vadd.f32 0.0, %v3466
        %3468 = vdwg.mxu0
        %v3470 = vsel %vm1182, %v3417, 0
        %v3472 = vsel %vm1186, %v3276, 0
        %3474 = vmatpush.msra.mxu0 0.0
        %3475 = vmatpush.msra.mxu0 0.0
        %3476 = vmatpush.msra.mxu0 0.0
        %3477 = vmatpush.msra.mxu0 0.0
        %3478 = vmatpush.msra.mxu0 0.0
        %3479 = vmatpush.msra.mxu0 0.0
        %3480 = vmatpush.msra.mxu0 0.0
        %3481 = vmatpush.msra.mxu0 0.0
        %3482 = vmatpush.msra.mxu0 0.0
        %3483 = vmatpush.msra.mxu0 0.0
        %3484 = vmatpush.msra.mxu0 0.0
        %3485 = vmatpush.msra.mxu0 0.0
        %3486 = vmatpush.msra.mxu0 0.0
        %3487 = vmatpush.msra.mxu0 0.0
        %3488 = vmatpush.msra.mxu0 0.0
        %3489 = vmatpush.msra.mxu0 %v3472
        %3490 = vmatmul.f32.gmra.mxu0 %v3470
        %v3491 = vpop.f32.mrf.mxu0
        %v3492 = vadd.f32 0.0, %v3491
        %3493 = vdwg.mxu0
        %v3495 = vsel %vm1182, %v3418, 0
        %v3497 = vsel %vm1186, %v3278, 0
        %3499 = vmatpush.msra.mxu0 0.0
        %3500 = vmatpush.msra.mxu0 0.0
        %3501 = vmatpush.msra.mxu0 0.0
        %3502 = vmatpush.msra.mxu0 0.0
        %3503 = vmatpush.msra.mxu0 0.0
        %3504 = vmatpush.msra.mxu0 0.0
        %3505 = vmatpush.msra.mxu0 0.0
        %3506 = vmatpush.msra.mxu0 0.0
        %3507 = vmatpush.msra.mxu0 0.0
        %3508 = vmatpush.msra.mxu0 0.0
        %3509 = vmatpush.msra.mxu0 0.0
        %3510 = vmatpush.msra.mxu0 0.0
        %3511 = vmatpush.msra.mxu0 0.0
        %3512 = vmatpush.msra.mxu0 0.0
        %3513 = vmatpush.msra.mxu0 0.0
        %3514 = vmatpush.msra.mxu0 %v3497
        %3515 = vmatmul.f32.gmra.mxu0 %v3495
        %v3516 = vpop.f32.mrf.mxu0
        %v3517 = vadd.f32 0.0, %v3516
        %3518 = vdwg.mxu0
        %s3519 = scalar_lea.vmem %s12, 16
        %v3520 = vld [vmem:[%s3519] sm:$0xf]
        %v3521 = vld [vmem:[%s3519 + $0x4] sm:$0xf]
        %v3522 = vld [vmem:[%s3519 + $0x8] sm:$0xf]
        %v3523 = vld [vmem:[%s3519 + $0xc] sm:$0xf]
        %v3524 = vpack.c.bf16 %v3442, %v3442
        %v3525 = vpack.c.bf16 %v3467, %v3467
        %v3527 = vsel %vm1040, %v3525, 0
        %v3530 = vsel %vm1186, %v3521, 0
        %3532 = vmatpush.bf16.msra.mxu0 0
        %3533 = vmatpush.bf16.msra.mxu0 0
        %3534 = vmatpush.bf16.msra.mxu0 0
        %3535 = vmatpush.bf16.msra.mxu0 0
        %3536 = vmatpush.bf16.msra.mxu0 0
        %3537 = vmatpush.bf16.msra.mxu0 0
        %3538 = vmatpush.bf16.msra.mxu0 0
        %3539 = vmatpush.bf16.msra.mxu0 %v3530
        %3540 = vmatmul.bf16.gmra.mxu0 %v3527
        %v3541 = vpop.f32.mrf.mxu0
        %v3542 = vadd.f32 0.0, %v3541
        %v3543 = vpop.f32.mrf.mxu0
        %3544 = vdwg.mxu0
        %v3546 = vsel %vm1040, %v3524, 0
        %v3549 = vsel %vm1186, %v3520, 0
        %3551 = vmatpush.bf16.msra.mxu0 0
        %3552 = vmatpush.bf16.msra.mxu0 0
        %3553 = vmatpush.bf16.msra.mxu0 0
        %3554 = vmatpush.bf16.msra.mxu0 0
        %3555 = vmatpush.bf16.msra.mxu0 0
        %3556 = vmatpush.bf16.msra.mxu0 0
        %3557 = vmatpush.bf16.msra.mxu0 0
        %3558 = vmatpush.bf16.msra.mxu0 %v3549
        %3559 = vmatmul.bf16.gmra.mxu0 %v3546
        %v3560 = vpop.f32.mrf.mxu0
        %v3561 = vadd.f32 %v3542, %v3560
        %v3562 = vpop.f32.mrf.mxu0
        %3563 = vdwg.mxu0
        %v3564 = vpack.c.bf16 %v3492, %v3492
        %v3566 = vsel %vm1040, %v3564, 0
        %v3569 = vsel %vm1186, %v3522, 0
        %3571 = vmatpush.bf16.msra.mxu0 0
        %3572 = vmatpush.bf16.msra.mxu0 0
        %3573 = vmatpush.bf16.msra.mxu0 0
        %3574 = vmatpush.bf16.msra.mxu0 0
        %3575 = vmatpush.bf16.msra.mxu0 0
        %3576 = vmatpush.bf16.msra.mxu0 0
        %3577 = vmatpush.bf16.msra.mxu0 0
        %3578 = vmatpush.bf16.msra.mxu0 %v3569
        %3579 = vmatmul.bf16.gmra.mxu0 %v3566
        %v3580 = vpop.f32.mrf.mxu0
        %v3581 = vadd.f32 0.0, %v3580
        %v3582 = vpop.f32.mrf.mxu0
        %3583 = vdwg.mxu0
        %v3584 = vadd.f32 %v3561, %v3581
        %v3585 = vpack.c.bf16 %v3517, %v3517
        %v3587 = vsel %vm1040, %v3585, 0
        %v3590 = vsel %vm1186, %v3523, 0
        %3592 = vmatpush.bf16.msra.mxu0 0
        %3593 = vmatpush.bf16.msra.mxu0 0
        %3594 = vmatpush.bf16.msra.mxu0 0
        %3595 = vmatpush.bf16.msra.mxu0 0
        %3596 = vmatpush.bf16.msra.mxu0 0
        %3597 = vmatpush.bf16.msra.mxu0 0
        %3598 = vmatpush.bf16.msra.mxu0 0
        %3599 = vmatpush.bf16.msra.mxu0 %v3590
        %3600 = vmatmul.bf16.gmra.mxu0 %v3587
        %v3601 = vpop.f32.mrf.mxu0
        %v3602 = vadd.f32 0.0, %v3601
        %v3603 = vpop.f32.mrf.mxu0
        %3604 = vdwg.mxu0
        %v3605 = vadd.f32 %v3584, %v3602
        %s3606 = scalar_lea.vmem %s13, 1
        %v3607 = vld [vmem:[%s3606] sm:$0x1]
        %v3609 = vperm.slane %v3607, 0
        %v3611 = vadd.f32 %v3605, %v3609
        %v3612 = vadd.f32 %v3148, %v3611
        %s3613 = scalar_lea.vmem %s14, 1
        %v3614 = vld [vmem:[%s3613] sm:$0x1]
        %s3615 = scalar_lea.vmem %s15, 1
        %v3616 = vld [vmem:[%s3615] sm:$0x1]
        %v3617 = vsel %vm875, %v3612, 0.0
        %3618 = vadd.xlane.f32.xlu0 %v3617
        %v3619 = vpop.xlane.xlu0 %3618
        %v3620 = vmul.f32 %v3619, %v885
        %v3621 = vsub.f32 %v3612, %v3620
        %v3622 = vmul.f32 %v3621, %v3621
        %v3623 = vsel %vm875, %v3622, 0.0
        %3624 = vadd.xlane.f32.xlu0 %v3623
        %v3625 = vpop.xlane.xlu0 %3624
        %v3626 = vmul.f32 %v3625, %v885
        %v3627 = vadd.f32 %v3626, 1e-05
        %v3628 = vrsqrt.pop %v3627
        %v3629 = vmul.f32 %v3628, %v3627
        %v3630 = vmul.f32 %v3629, %v3628
        %v3631 = vmul.f32 0.5, %v3630
        %v3632 = vsub.f32 1.5, %v3631
        %v3633 = vmul.f32 %v3628, %v3632
        %vm3634 = vweird.f32 %v3627
        %vm3635 = vweird.f32 %v3628
        %vm3636 = vmor %vm3634, %vm3635
        %v3637 = vsel %vm3636, %v3628, %v3633
        %v3638 = vmul.f32 %v3621, %v3637
        %v3640 = vperm.slane %v3614, 0
        %v3642 = vmul.f32 %v3638, %v3640
        %v3644 = vperm.slane %v3616, 0
        %v3646 = vadd.f32 %v3642, %v3644
        %s3647 = scalar_lea.vmem %s16, 256
        %v3648 = vld [vmem:[%s3647] sm:$0xff]
        %v3649 = vld [vmem:[%s3647 + $0x8] sm:$0xff]
        %v3650 = vld [vmem:[%s3647 + $0x10] sm:$0xff]
        %v3651 = vld [vmem:[%s3647 + $0x18] sm:$0xff]
        %v3652 = vld [vmem:[%s3647 + $0x20] sm:$0xff]
        %v3653 = vld [vmem:[%s3647 + $0x28] sm:$0xff]
        %v3654 = vld [vmem:[%s3647 + $0x30] sm:$0xff]
        %v3655 = vld [vmem:[%s3647 + $0x38] sm:$0xff]
        %v3656 = vld [vmem:[%s3647 + $0x40] sm:$0xff]
        %v3657 = vld [vmem:[%s3647 + $0x48] sm:$0xff]
        %v3658 = vld [vmem:[%s3647 + $0x50] sm:$0xff]
        %v3659 = vld [vmem:[%s3647 + $0x58] sm:$0xff]
        %v3660 = vld [vmem:[%s3647 + $0x60] sm:$0xff]
        %v3661 = vld [vmem:[%s3647 + $0x68] sm:$0xff]
        %v3662 = vld [vmem:[%s3647 + $0x70] sm:$0xff]
        %v3663 = vld [vmem:[%s3647 + $0x78] sm:$0xff]
        %v3664 = vld [vmem:[%s3647 + $0x80] sm:$0xff]
        %v3665 = vld [vmem:[%s3647 + $0x88] sm:$0xff]
        %v3666 = vld [vmem:[%s3647 + $0x90] sm:$0xff]
        %v3667 = vld [vmem:[%s3647 + $0x98] sm:$0xff]
        %v3668 = vld [vmem:[%s3647 + $0xa0] sm:$0xff]
        %v3669 = vld [vmem:[%s3647 + $0xa8] sm:$0xff]
        %v3670 = vld [vmem:[%s3647 + $0xb0] sm:$0xff]
        %v3671 = vld [vmem:[%s3647 + $0xb8] sm:$0xff]
        %v3672 = vld [vmem:[%s3647 + $0xc0] sm:$0xff]
        %v3673 = vld [vmem:[%s3647 + $0xc8] sm:$0xff]
        %v3674 = vld [vmem:[%s3647 + $0xd0] sm:$0xff]
        %v3675 = vld [vmem:[%s3647 + $0xd8] sm:$0xff]
        %v3676 = vld [vmem:[%s3647 + $0xe0] sm:$0xff]
        %v3677 = vld [vmem:[%s3647 + $0xe8] sm:$0xff]
        %v3678 = vld [vmem:[%s3647 + $0xf0] sm:$0xff]
        %v3679 = vld [vmem:[%s3647 + $0xf8] sm:$0xff]
        %v3680 = vpack.c.bf16 %v3646, %v3646
        %s3681 = scalar_lea.vmem %s17, 16
        %v3682 = vld [vmem:[%s3681] sm:$0xff]
        %v3683 = vld [vmem:[%s3681 + $0x8] sm:$0xff]
        %v3686 = vperm.slane %v3682, 0
        %v3687 = vperm.slane %v3682, 1
        %v3688 = vperm.slane %v3682, 2
        %v3689 = vperm.slane %v3682, 3
        %v3690 = vperm.slane %v3682, 4
        %v3691 = vperm.slane %v3682, 5
        %v3692 = vperm.slane %v3682, 6
        %v3693 = vperm.slane %v3682, 7
        %v3694 = vperm.slane %v3683, 0
        %v3695 = vperm.slane %v3683, 1
        %v3696 = vperm.slane %v3683, 2
        %v3697 = vperm.slane %v3683, 3
        %v3698 = vperm.slane %v3683, 4
        %v3699 = vperm.slane %v3683, 5
        %v3700 = vperm.slane %v3683, 6
        %v3701 = vperm.slane %v3683, 7
        %v3750 = vunpack.c.l.b16 %v3648
        %v3751 = vunpack.c.h.b16 %v3648
        %v3752 = vunpack.c.l.b16 %v3649
        %v3753 = vunpack.c.h.b16 %v3649
        %v3754 = vunpack.c.l.b16 %v3650
        %v3755 = vunpack.c.h.b16 %v3650
        %v3756 = vunpack.c.l.b16 %v3651
        %v3757 = vunpack.c.h.b16 %v3651
        %v3758 = vunpack.c.l.b16 %v3652
        %v3759 = vunpack.c.h.b16 %v3652
        %v3760 = vunpack.c.l.b16 %v3653
        %v3761 = vunpack.c.h.b16 %v3653
        %v3762 = vunpack.c.l.b16 %v3654
        %v3763 = vunpack.c.h.b16 %v3654
        %v3764 = vunpack.c.l.b16 %v3655
        %v3765 = vunpack.c.h.b16 %v3655
        %v3766 = vunpack.c.l.b16 %v3656
        %v3767 = vunpack.c.h.b16 %v3656
        %v3768 = vunpack.c.l.b16 %v3657
        %v3769 = vunpack.c.h.b16 %v3657
        %v3770 = vunpack.c.l.b16 %v3658
        %v3771 = vunpack.c.h.b16 %v3658
        %v3772 = vunpack.c.l.b16 %v3659
        %v3773 = vunpack.c.h.b16 %v3659
        %v3774 = vunpack.c.l.b16 %v3660
        %v3775 = vunpack.c.h.b16 %v3660
        %v3776 = vunpack.c.l.b16 %v3661
        %v3777 = vunpack.c.h.b16 %v3661
        %v3778 = vunpack.c.l.b16 %v3662
        %v3779 = vunpack.c.h.b16 %v3662
        %v3780 = vunpack.c.l.b16 %v3663
        %v3781 = vunpack.c.h.b16 %v3663
        %v3782 = vunpack.c.l.b16 %v3664
        %v3783 = vunpack.c.h.b16 %v3664
        %v3784 = vunpack.c.l.b16 %v3665
        %v3785 = vunpack.c.h.b16 %v3665
        %v3786 = vunpack.c.l.b16 %v3666
        %v3787 = vunpack.c.h.b16 %v3666
        %v3788 = vunpack.c.l.b16 %v3667
        %v3789 = vunpack.c.h.b16 %v3667
        %v3790 = vunpack.c.l.b16 %v3668
        %v3791 = vunpack.c.h.b16 %v3668
        %v3792 = vunpack.c.l.b16 %v3669
        %v3793 = vunpack.c.h.b16 %v3669
        %v3794 = vunpack.c.l.b16 %v3670
        %v3795 = vunpack.c.h.b16 %v3670
        %v3796 = vunpack.c.l.b16 %v3671
        %v3797 = vunpack.c.h.b16 %v3671
        %v3798 = vunpack.c.l.b16 %v3672
        %v3799 = vunpack.c.h.b16 %v3672
        %v3800 = vunpack.c.l.b16 %v3673
        %v3801 = vunpack.c.h.b16 %v3673
        %v3802 = vunpack.c.l.b16 %v3674
        %v3803 = vunpack.c.h.b16 %v3674
        %v3804 = vunpack.c.l.b16 %v3675
        %v3805 = vunpack.c.h.b16 %v3675
        %v3806 = vunpack.c.l.b16 %v3676
        %v3807 = vunpack.c.h.b16 %v3676
        %v3808 = vunpack.c.l.b16 %v3677
        %v3809 = vunpack.c.h.b16 %v3677
        %v3810 = vunpack.c.l.b16 %v3678
        %v3811 = vunpack.c.h.b16 %v3678
        %v3812 = vunpack.c.l.b16 %v3679
        %v3813 = vunpack.c.h.b16 %v3679
        %v3814 = vpack.c.b16 %v3766, %v3750
        %v3815 = vpack.c.b16 %v3767, %v3751
        %v3816 = vpack.c.b16 %v3768, %v3752
        %v3817 = vpack.c.b16 %v3769, %v3753
        %v3818 = vpack.c.b16 %v3770, %v3754
        %v3819 = vpack.c.b16 %v3771, %v3755
        %v3820 = vpack.c.b16 %v3772, %v3756
        %v3821 = vpack.c.b16 %v3773, %v3757
        %v3822 = vpack.c.b16 %v3774, %v3758
        %v3823 = vpack.c.b16 %v3775, %v3759
        %v3824 = vpack.c.b16 %v3776, %v3760
        %v3825 = vpack.c.b16 %v3777, %v3761
        %v3826 = vpack.c.b16 %v3778, %v3762
        %v3827 = vpack.c.b16 %v3779, %v3763
        %v3828 = vpack.c.b16 %v3780, %v3764
        %v3829 = vpack.c.b16 %v3781, %v3765
        %v3830 = vpack.c.b16 %v3798, %v3782
        %v3831 = vpack.c.b16 %v3799, %v3783
        %v3832 = vpack.c.b16 %v3800, %v3784
        %v3833 = vpack.c.b16 %v3801, %v3785
        %v3834 = vpack.c.b16 %v3802, %v3786
        %v3835 = vpack.c.b16 %v3803, %v3787
        %v3836 = vpack.c.b16 %v3804, %v3788
        %v3837 = vpack.c.b16 %v3805, %v3789
        %v3838 = vpack.c.b16 %v3806, %v3790
        %v3839 = vpack.c.b16 %v3807, %v3791
        %v3840 = vpack.c.b16 %v3808, %v3792
        %v3841 = vpack.c.b16 %v3809, %v3793
        %v3842 = vpack.c.b16 %v3810, %v3794
        %v3843 = vpack.c.b16 %v3811, %v3795
        %v3844 = vpack.c.b16 %v3812, %v3796
        %v3845 = vpack.c.b16 %v3813, %v3797
        %v3879 = vsel %vm936, %v3680, 0
        %3881 = vmatpush.bf16.msra.mxu0 0
        %3882 = vmatpush.bf16.msra.mxu0 0
        %3883 = vmatpush.bf16.msra.mxu0 0
        %3884 = vmatpush.bf16.msra.mxu0 0
        %3885 = vmatpush.bf16.msra.mxu0 0
        %3886 = vmatpush.bf16.msra.mxu0 0
        %3887 = vmatpush.bf16.msra.mxu0 %v3830
        %3888 = vmatpush.bf16.msra.mxu0 %v3814
        %3889 = vmatmul.bf16.gmra.mxu0 %v3879
        %v3890 = vpop.f32.mrf.mxu0
        %v3891 = vadd.f32 %v3686, %v3890
        %v3892 = vpop.f32.mrf.mxu0
        %3893 = vdwg.mxu0
        %3894 = vmatpush.bf16.msra.mxu0 0
        %3895 = vmatpush.bf16.msra.mxu0 0
        %3896 = vmatpush.bf16.msra.mxu0 0
        %3897 = vmatpush.bf16.msra.mxu0 0
        %3898 = vmatpush.bf16.msra.mxu0 0
        %3899 = vmatpush.bf16.msra.mxu0 0
        %3900 = vmatpush.bf16.msra.mxu0 %v3831
        %3901 = vmatpush.bf16.msra.mxu0 %v3815
        %3902 = vmatmul.bf16.gmra.mxu0 %v3879
        %v3903 = vpop.f32.mrf.mxu0
        %v3904 = vadd.f32 %v3687, %v3903
        %v3905 = vpop.f32.mrf.mxu0
        %3906 = vdwg.mxu0
        %3907 = vmatpush.bf16.msra.mxu0 0
        %3908 = vmatpush.bf16.msra.mxu0 0
        %3909 = vmatpush.bf16.msra.mxu0 0
        %3910 = vmatpush.bf16.msra.mxu0 0
        %3911 = vmatpush.bf16.msra.mxu0 0
        %3912 = vmatpush.bf16.msra.mxu0 0
        %3913 = vmatpush.bf16.msra.mxu0 %v3832
        %3914 = vmatpush.bf16.msra.mxu0 %v3816
        %3915 = vmatmul.bf16.gmra.mxu0 %v3879
        %v3916 = vpop.f32.mrf.mxu0
        %v3917 = vadd.f32 %v3688, %v3916
        %v3918 = vpop.f32.mrf.mxu0
        %3919 = vdwg.mxu0
        %3920 = vmatpush.bf16.msra.mxu0 0
        %3921 = vmatpush.bf16.msra.mxu0 0
        %3922 = vmatpush.bf16.msra.mxu0 0
        %3923 = vmatpush.bf16.msra.mxu0 0
        %3924 = vmatpush.bf16.msra.mxu0 0
        %3925 = vmatpush.bf16.msra.mxu0 0
        %3926 = vmatpush.bf16.msra.mxu0 %v3833
        %3927 = vmatpush.bf16.msra.mxu0 %v3817
        %3928 = vmatmul.bf16.gmra.mxu0 %v3879
        %v3929 = vpop.f32.mrf.mxu0
        %v3930 = vadd.f32 %v3689, %v3929
        %v3931 = vpop.f32.mrf.mxu0
        %3932 = vdwg.mxu0
        %3933 = vmatpush.bf16.msra.mxu0 0
        %3934 = vmatpush.bf16.msra.mxu0 0
        %3935 = vmatpush.bf16.msra.mxu0 0
        %3936 = vmatpush.bf16.msra.mxu0 0
        %3937 = vmatpush.bf16.msra.mxu0 0
        %3938 = vmatpush.bf16.msra.mxu0 0
        %3939 = vmatpush.bf16.msra.mxu0 %v3834
        %3940 = vmatpush.bf16.msra.mxu0 %v3818
        %3941 = vmatmul.bf16.gmra.mxu0 %v3879
        %v3942 = vpop.f32.mrf.mxu0
        %v3943 = vadd.f32 %v3690, %v3942
        %v3944 = vpop.f32.mrf.mxu0
        %3945 = vdwg.mxu0
        %3946 = vmatpush.bf16.msra.mxu0 0
        %3947 = vmatpush.bf16.msra.mxu0 0
        %3948 = vmatpush.bf16.msra.mxu0 0
        %3949 = vmatpush.bf16.msra.mxu0 0
        %3950 = vmatpush.bf16.msra.mxu0 0
        %3951 = vmatpush.bf16.msra.mxu0 0
        %3952 = vmatpush.bf16.msra.mxu0 %v3835
        %3953 = vmatpush.bf16.msra.mxu0 %v3819
        %3954 = vmatmul.bf16.gmra.mxu0 %v3879
        %v3955 = vpop.f32.mrf.mxu0
        %v3956 = vadd.f32 %v3691, %v3955
        %v3957 = vpop.f32.mrf.mxu0
        %3958 = vdwg.mxu0
        %3959 = vmatpush.bf16.msra.mxu0 0
        %3960 = vmatpush.bf16.msra.mxu0 0
        %3961 = vmatpush.bf16.msra.mxu0 0
        %3962 = vmatpush.bf16.msra.mxu0 0
        %3963 = vmatpush.bf16.msra.mxu0 0
        %3964 = vmatpush.bf16.msra.mxu0 0
        %3965 = vmatpush.bf16.msra.mxu0 %v3836
        %3966 = vmatpush.bf16.msra.mxu0 %v3820
        %3967 = vmatmul.bf16.gmra.mxu0 %v3879
        %v3968 = vpop.f32.mrf.mxu0
        %v3969 = vadd.f32 %v3692, %v3968
        %v3970 = vpop.f32.mrf.mxu0
        %3971 = vdwg.mxu0
        %3972 = vmatpush.bf16.msra.mxu0 0
        %3973 = vmatpush.bf16.msra.mxu0 0
        %3974 = vmatpush.bf16.msra.mxu0 0
        %3975 = vmatpush.bf16.msra.mxu0 0
        %3976 = vmatpush.bf16.msra.mxu0 0
        %3977 = vmatpush.bf16.msra.mxu0 0
        %3978 = vmatpush.bf16.msra.mxu0 %v3837
        %3979 = vmatpush.bf16.msra.mxu0 %v3821
        %3980 = vmatmul.bf16.gmra.mxu0 %v3879
        %v3981 = vpop.f32.mrf.mxu0
        %v3982 = vadd.f32 %v3693, %v3981
        %v3983 = vpop.f32.mrf.mxu0
        %3984 = vdwg.mxu0
        %3985 = vmatpush.bf16.msra.mxu0 0
        %3986 = vmatpush.bf16.msra.mxu0 0
        %3987 = vmatpush.bf16.msra.mxu0 0
        %3988 = vmatpush.bf16.msra.mxu0 0
        %3989 = vmatpush.bf16.msra.mxu0 0
        %3990 = vmatpush.bf16.msra.mxu0 0
        %3991 = vmatpush.bf16.msra.mxu0 %v3838
        %3992 = vmatpush.bf16.msra.mxu0 %v3822
        %3993 = vmatmul.bf16.gmra.mxu0 %v3879
        %v3994 = vpop.f32.mrf.mxu0
        %v3995 = vadd.f32 %v3694, %v3994
        %v3996 = vpop.f32.mrf.mxu0
        %3997 = vdwg.mxu0
        %3998 = vmatpush.bf16.msra.mxu0 0
        %3999 = vmatpush.bf16.msra.mxu0 0
        %4000 = vmatpush.bf16.msra.mxu0 0
        %4001 = vmatpush.bf16.msra.mxu0 0
        %4002 = vmatpush.bf16.msra.mxu0 0
        %4003 = vmatpush.bf16.msra.mxu0 0
        %4004 = vmatpush.bf16.msra.mxu0 %v3839
        %4005 = vmatpush.bf16.msra.mxu0 %v3823
        %4006 = vmatmul.bf16.gmra.mxu0 %v3879
        %v4007 = vpop.f32.mrf.mxu0
        %v4008 = vadd.f32 %v3695, %v4007
        %v4009 = vpop.f32.mrf.mxu0
        %4010 = vdwg.mxu0
        %4011 = vmatpush.bf16.msra.mxu0 0
        %4012 = vmatpush.bf16.msra.mxu0 0
        %4013 = vmatpush.bf16.msra.mxu0 0
        %4014 = vmatpush.bf16.msra.mxu0 0
        %4015 = vmatpush.bf16.msra.mxu0 0
        %4016 = vmatpush.bf16.msra.mxu0 0
        %4017 = vmatpush.bf16.msra.mxu0 %v3840
        %4018 = vmatpush.bf16.msra.mxu0 %v3824
        %4019 = vmatmul.bf16.gmra.mxu0 %v3879
        %v4020 = vpop.f32.mrf.mxu0
        %v4021 = vadd.f32 %v3696, %v4020
        %v4022 = vpop.f32.mrf.mxu0
        %4023 = vdwg.mxu0
        %4024 = vmatpush.bf16.msra.mxu0 0
        %4025 = vmatpush.bf16.msra.mxu0 0
        %4026 = vmatpush.bf16.msra.mxu0 0
        %4027 = vmatpush.bf16.msra.mxu0 0
        %4028 = vmatpush.bf16.msra.mxu0 0
        %4029 = vmatpush.bf16.msra.mxu0 0
        %4030 = vmatpush.bf16.msra.mxu0 %v3841
        %4031 = vmatpush.bf16.msra.mxu0 %v3825
        %4032 = vmatmul.bf16.gmra.mxu0 %v3879
        %v4033 = vpop.f32.mrf.mxu0
        %v4034 = vadd.f32 %v3697, %v4033
        %v4035 = vpop.f32.mrf.mxu0
        %4036 = vdwg.mxu0
        %4037 = vmatpush.bf16.msra.mxu0 0
        %4038 = vmatpush.bf16.msra.mxu0 0
        %4039 = vmatpush.bf16.msra.mxu0 0
        %4040 = vmatpush.bf16.msra.mxu0 0
        %4041 = vmatpush.bf16.msra.mxu0 0
        %4042 = vmatpush.bf16.msra.mxu0 0
        %4043 = vmatpush.bf16.msra.mxu0 %v3842
        %4044 = vmatpush.bf16.msra.mxu0 %v3826
        %4045 = vmatmul.bf16.gmra.mxu0 %v3879
        %v4046 = vpop.f32.mrf.mxu0
        %v4047 = vadd.f32 %v3698, %v4046
        %v4048 = vpop.f32.mrf.mxu0
        %4049 = vdwg.mxu0
        %4050 = vmatpush.bf16.msra.mxu0 0
        %4051 = vmatpush.bf16.msra.mxu0 0
        %4052 = vmatpush.bf16.msra.mxu0 0
        %4053 = vmatpush.bf16.msra.mxu0 0
        %4054 = vmatpush.bf16.msra.mxu0 0
        %4055 = vmatpush.bf16.msra.mxu0 0
        %4056 = vmatpush.bf16.msra.mxu0 %v3843
        %4057 = vmatpush.bf16.msra.mxu0 %v3827
        %4058 = vmatmul.bf16.gmra.mxu0 %v3879
        %v4059 = vpop.f32.mrf.mxu0
        %v4060 = vadd.f32 %v3699, %v4059
        %v4061 = vpop.f32.mrf.mxu0
        %4062 = vdwg.mxu0
        %4063 = vmatpush.bf16.msra.mxu0 0
        %4064 = vmatpush.bf16.msra.mxu0 0
        %4065 = vmatpush.bf16.msra.mxu0 0
        %4066 = vmatpush.bf16.msra.mxu0 0
        %4067 = vmatpush.bf16.msra.mxu0 0
        %4068 = vmatpush.bf16.msra.mxu0 0
        %4069 = vmatpush.bf16.msra.mxu0 %v3844
        %4070 = vmatpush.bf16.msra.mxu0 %v3828
        %4071 = vmatmul.bf16.gmra.mxu0 %v3879
        %v4072 = vpop.f32.mrf.mxu0
        %v4073 = vadd.f32 %v3700, %v4072
        %v4074 = vpop.f32.mrf.mxu0
        %4075 = vdwg.mxu0
        %4076 = vmatpush.bf16.msra.mxu0 0
        %4077 = vmatpush.bf16.msra.mxu0 0
        %4078 = vmatpush.bf16.msra.mxu0 0
        %4079 = vmatpush.bf16.msra.mxu0 0
        %4080 = vmatpush.bf16.msra.mxu0 0
        %4081 = vmatpush.bf16.msra.mxu0 0
        %4082 = vmatpush.bf16.msra.mxu0 %v3845
        %4083 = vmatpush.bf16.msra.mxu0 %v3829
        %4084 = vmatmul.bf16.gmra.mxu0 %v3879
        %v4085 = vpop.f32.mrf.mxu0
        %v4086 = vadd.f32 %v3701, %v4085
        %v4087 = vpop.f32.mrf.mxu0
        %4088 = vdwg.mxu0
        %v4089 = vmax.f32 %v3891, 0.0
        %v4090 = vmax.f32 %v3904, 0.0
        %v4091 = vmax.f32 %v3917, 0.0
        %v4092 = vmax.f32 %v3930, 0.0
        %v4093 = vmax.f32 %v3943, 0.0
        %v4094 = vmax.f32 %v3956, 0.0
        %v4095 = vmax.f32 %v3969, 0.0
        %v4096 = vmax.f32 %v3982, 0.0
        %v4097 = vmax.f32 %v3995, 0.0
        %v4098 = vmax.f32 %v4008, 0.0
        %v4099 = vmax.f32 %v4021, 0.0
        %v4100 = vmax.f32 %v4034, 0.0
        %v4101 = vmax.f32 %v4047, 0.0
        %v4102 = vmax.f32 %v4060, 0.0
        %v4103 = vmax.f32 %v4073, 0.0
        %v4104 = vmax.f32 %v4086, 0.0
        %s4105 = scalar_lea.vmem %s18, 1024
        %v4106 = vld [vmem:[%s4105] sm:$0xf]
        %v4107 = vld [vmem:[%s4105 + $0x4] sm:$0xf]
        %v4108 = vld [vmem:[%s4105 + $0x8] sm:$0xf]
        %v4109 = vld [vmem:[%s4105 + $0xc] sm:$0xf]
        %v4110 = vld [vmem:[%s4105 + $0x10] sm:$0xf]
        %v4111 = vld [vmem:[%s4105 + $0x14] sm:$0xf]
        %v4112 = vld [vmem:[%s4105 + $0x18] sm:$0xf]
        %v4113 = vld [vmem:[%s4105 + $0x1c] sm:$0xf]
        %v4114 = vld [vmem:[%s4105 + $0x20] sm:$0xf]
        %v4115 = vld [vmem:[%s4105 + $0x24] sm:$0xf]
        %v4116 = vld [vmem:[%s4105 + $0x28] sm:$0xf]
        %v4117 = vld [vmem:[%s4105 + $0x2c] sm:$0xf]
        %v4118 = vld [vmem:[%s4105 + $0x30] sm:$0xf]
        %v4119 = vld [vmem:[%s4105 + $0x34] sm:$0xf]
        %v4120 = vld [vmem:[%s4105 + $0x38] sm:$0xf]
        %v4121 = vld [vmem:[%s4105 + $0x3c] sm:$0xf]
        %v4122 = vld [vmem:[%s4105 + $0x40] sm:$0xf]
        %v4123 = vld [vmem:[%s4105 + $0x44] sm:$0xf]
        %v4124 = vld [vmem:[%s4105 + $0x48] sm:$0xf]
        %v4125 = vld [vmem:[%s4105 + $0x4c] sm:$0xf]
        %v4126 = vld [vmem:[%s4105 + $0x50] sm:$0xf]
        %v4127 = vld [vmem:[%s4105 + $0x54] sm:$0xf]
        %v4128 = vld [vmem:[%s4105 + $0x58] sm:$0xf]
        %v4129 = vld [vmem:[%s4105 + $0x5c] sm:$0xf]
        %v4130 = vld [vmem:[%s4105 + $0x60] sm:$0xf]
        %v4131 = vld [vmem:[%s4105 + $0x64] sm:$0xf]
        %v4132 = vld [vmem:[%s4105 + $0x68] sm:$0xf]
        %v4133 = vld [vmem:[%s4105 + $0x6c] sm:$0xf]
        %v4134 = vld [vmem:[%s4105 + $0x70] sm:$0xf]
        %v4135 = vld [vmem:[%s4105 + $0x74] sm:$0xf]
        %v4136 = vld [vmem:[%s4105 + $0x78] sm:$0xf]
        %v4137 = vld [vmem:[%s4105 + $0x7c] sm:$0xf]
        %v4138 = vld [vmem:[%s4105 + $0x80] sm:$0xf]
        %v4139 = vld [vmem:[%s4105 + $0x84] sm:$0xf]
        %v4140 = vld [vmem:[%s4105 + $0x88] sm:$0xf]
        %v4141 = vld [vmem:[%s4105 + $0x8c] sm:$0xf]
        %v4142 = vld [vmem:[%s4105 + $0x90] sm:$0xf]
        %v4143 = vld [vmem:[%s4105 + $0x94] sm:$0xf]
        %v4144 = vld [vmem:[%s4105 + $0x98] sm:$0xf]
        %v4145 = vld [vmem:[%s4105 + $0x9c] sm:$0xf]
        %v4146 = vld [vmem:[%s4105 + $0xa0] sm:$0xf]
        %v4147 = vld [vmem:[%s4105 + $0xa4] sm:$0xf]
        %v4148 = vld [vmem:[%s4105 + $0xa8] sm:$0xf]
        %v4149 = vld [vmem:[%s4105 + $0xac] sm:$0xf]
        %v4150 = vld [vmem:[%s4105 + $0xb0] sm:$0xf]
        %v4151 = vld [vmem:[%s4105 + $0xb4] sm:$0xf]
        %v4152 = vld [vmem:[%s4105 + $0xb8] sm:$0xf]
        %v4153 = vld [vmem:[%s4105 + $0xbc] sm:$0xf]
        %v4154 = vld [vmem:[%s4105 + $0xc0] sm:$0xf]
        %v4155 = vld [vmem:[%s4105 + $0xc4] sm:$0xf]
        %v4156 = vld [vmem:[%s4105 + $0xc8] sm:$0xf]
        %v4157 = vld [vmem:[%s4105 + $0xcc] sm:$0xf]
        %v4158 = vld [vmem:[%s4105 + $0xd0] sm:$0xf]
        %v4159 = vld [vmem:[%s4105 + $0xd4] sm:$0xf]
        %v4160 = vld [vmem:[%s4105 + $0xd8] sm:$0xf]
        %v4161 = vld [vmem:[%s4105 + $0xdc] sm:$0xf]
        %v4162 = vld [vmem:[%s4105 + $0xe0] sm:$0xf]
        %v4163 = vld [vmem:[%s4105 + $0xe4] sm:$0xf]
        %v4164 = vld [vmem:[%s4105 + $0xe8] sm:$0xf]
        %v4165 = vld [vmem:[%s4105 + $0xec] sm:$0xf]
        %v4166 = vld [vmem:[%s4105 + $0xf0] sm:$0xf]
        %v4167 = vld [vmem:[%s4105 + $0xf4] sm:$0xf]
        %v4168 = vld [vmem:[%s4105 + $0xf8] sm:$0xf]
        %v4169 = vld [vmem:[%s4105 + $0xfc] sm:$0xf]
        %v4170 = vld [vmem:[%s4105 + $0x100] sm:$0xf]
        %v4171 = vld [vmem:[%s4105 + $0x104] sm:$0xf]
        %v4172 = vld [vmem:[%s4105 + $0x108] sm:$0xf]
        %v4173 = vld [vmem:[%s4105 + $0x10c] sm:$0xf]
        %v4174 = vld [vmem:[%s4105 + $0x110] sm:$0xf]
        %v4175 = vld [vmem:[%s4105 + $0x114] sm:$0xf]
        %v4176 = vld [vmem:[%s4105 + $0x118] sm:$0xf]
        %v4177 = vld [vmem:[%s4105 + $0x11c] sm:$0xf]
        %v4178 = vld [vmem:[%s4105 + $0x120] sm:$0xf]
        %v4179 = vld [vmem:[%s4105 + $0x124] sm:$0xf]
        %v4180 = vld [vmem:[%s4105 + $0x128] sm:$0xf]
        %v4181 = vld [vmem:[%s4105 + $0x12c] sm:$0xf]
        %v4182 = vld [vmem:[%s4105 + $0x130] sm:$0xf]
        %v4183 = vld [vmem:[%s4105 + $0x134] sm:$0xf]
        %v4184 = vld [vmem:[%s4105 + $0x138] sm:$0xf]
        %v4185 = vld [vmem:[%s4105 + $0x13c] sm:$0xf]
        %v4186 = vld [vmem:[%s4105 + $0x140] sm:$0xf]
        %v4187 = vld [vmem:[%s4105 + $0x144] sm:$0xf]
        %v4188 = vld [vmem:[%s4105 + $0x148] sm:$0xf]
        %v4189 = vld [vmem:[%s4105 + $0x14c] sm:$0xf]
        %v4190 = vld [vmem:[%s4105 + $0x150] sm:$0xf]
        %v4191 = vld [vmem:[%s4105 + $0x154] sm:$0xf]
        %v4192 = vld [vmem:[%s4105 + $0x158] sm:$0xf]
        %v4193 = vld [vmem:[%s4105 + $0x15c] sm:$0xf]
        %v4194 = vld [vmem:[%s4105 + $0x160] sm:$0xf]
        %v4195 = vld [vmem:[%s4105 + $0x164] sm:$0xf]
        %v4196 = vld [vmem:[%s4105 + $0x168] sm:$0xf]
        %v4197 = vld [vmem:[%s4105 + $0x16c] sm:$0xf]
        %v4198 = vld [vmem:[%s4105 + $0x170] sm:$0xf]
        %v4199 = vld [vmem:[%s4105 + $0x174] sm:$0xf]
        %v4200 = vld [vmem:[%s4105 + $0x178] sm:$0xf]
        %v4201 = vld [vmem:[%s4105 + $0x17c] sm:$0xf]
        %v4202 = vld [vmem:[%s4105 + $0x180] sm:$0xf]
        %v4203 = vld [vmem:[%s4105 + $0x184] sm:$0xf]
        %v4204 = vld [vmem:[%s4105 + $0x188] sm:$0xf]
        %v4205 = vld [vmem:[%s4105 + $0x18c] sm:$0xf]
        %v4206 = vld [vmem:[%s4105 + $0x190] sm:$0xf]
        %v4207 = vld [vmem:[%s4105 + $0x194] sm:$0xf]
        %v4208 = vld [vmem:[%s4105 + $0x198] sm:$0xf]
        %v4209 = vld [vmem:[%s4105 + $0x19c] sm:$0xf]
        %v4210 = vld [vmem:[%s4105 + $0x1a0] sm:$0xf]
        %v4211 = vld [vmem:[%s4105 + $0x1a4] sm:$0xf]
        %v4212 = vld [vmem:[%s4105 + $0x1a8] sm:$0xf]
        %v4213 = vld [vmem:[%s4105 + $0x1ac] sm:$0xf]
        %v4214 = vld [vmem:[%s4105 + $0x1b0] sm:$0xf]
        %v4215 = vld [vmem:[%s4105 + $0x1b4] sm:$0xf]
        %v4216 = vld [vmem:[%s4105 + $0x1b8] sm:$0xf]
        %v4217 = vld [vmem:[%s4105 + $0x1bc] sm:$0xf]
        %v4218 = vld [vmem:[%s4105 + $0x1c0] sm:$0xf]
        %v4219 = vld [vmem:[%s4105 + $0x1c4] sm:$0xf]
        %v4220 = vld [vmem:[%s4105 + $0x1c8] sm:$0xf]
        %v4221 = vld [vmem:[%s4105 + $0x1cc] sm:$0xf]
        %v4222 = vld [vmem:[%s4105 + $0x1d0] sm:$0xf]
        %v4223 = vld [vmem:[%s4105 + $0x1d4] sm:$0xf]
        %v4224 = vld [vmem:[%s4105 + $0x1d8] sm:$0xf]
        %v4225 = vld [vmem:[%s4105 + $0x1dc] sm:$0xf]
        %v4226 = vld [vmem:[%s4105 + $0x1e0] sm:$0xf]
        %v4227 = vld [vmem:[%s4105 + $0x1e4] sm:$0xf]
        %v4228 = vld [vmem:[%s4105 + $0x1e8] sm:$0xf]
        %v4229 = vld [vmem:[%s4105 + $0x1ec] sm:$0xf]
        %v4230 = vld [vmem:[%s4105 + $0x1f0] sm:$0xf]
        %v4231 = vld [vmem:[%s4105 + $0x1f4] sm:$0xf]
        %v4232 = vld [vmem:[%s4105 + $0x1f8] sm:$0xf]
        %v4233 = vld [vmem:[%s4105 + $0x1fc] sm:$0xf]
        %v4234 = vld [vmem:[%s4105 + $0x200] sm:$0xf]
        %v4235 = vld [vmem:[%s4105 + $0x204] sm:$0xf]
        %v4236 = vld [vmem:[%s4105 + $0x208] sm:$0xf]
        %v4237 = vld [vmem:[%s4105 + $0x20c] sm:$0xf]
        %v4238 = vld [vmem:[%s4105 + $0x210] sm:$0xf]
        %v4239 = vld [vmem:[%s4105 + $0x214] sm:$0xf]
        %v4240 = vld [vmem:[%s4105 + $0x218] sm:$0xf]
        %v4241 = vld [vmem:[%s4105 + $0x21c] sm:$0xf]
        %v4242 = vld [vmem:[%s4105 + $0x220] sm:$0xf]
        %v4243 = vld [vmem:[%s4105 + $0x224] sm:$0xf]
        %v4244 = vld [vmem:[%s4105 + $0x228] sm:$0xf]
        %v4245 = vld [vmem:[%s4105 + $0x22c] sm:$0xf]
        %v4246 = vld [vmem:[%s4105 + $0x230] sm:$0xf]
        %v4247 = vld [vmem:[%s4105 + $0x234] sm:$0xf]
        %v4248 = vld [vmem:[%s4105 + $0x238] sm:$0xf]
        %v4249 = vld [vmem:[%s4105 + $0x23c] sm:$0xf]
        %v4250 = vld [vmem:[%s4105 + $0x240] sm:$0xf]
        %v4251 = vld [vmem:[%s4105 + $0x244] sm:$0xf]
        %v4252 = vld [vmem:[%s4105 + $0x248] sm:$0xf]
        %v4253 = vld [vmem:[%s4105 + $0x24c] sm:$0xf]
        %v4254 = vld [vmem:[%s4105 + $0x250] sm:$0xf]
        %v4255 = vld [vmem:[%s4105 + $0x254] sm:$0xf]
        %v4256 = vld [vmem:[%s4105 + $0x258] sm:$0xf]
        %v4257 = vld [vmem:[%s4105 + $0x25c] sm:$0xf]
        %v4258 = vld [vmem:[%s4105 + $0x260] sm:$0xf]
        %v4259 = vld [vmem:[%s4105 + $0x264] sm:$0xf]
        %v4260 = vld [vmem:[%s4105 + $0x268] sm:$0xf]
        %v4261 = vld [vmem:[%s4105 + $0x26c] sm:$0xf]
        %v4262 = vld [vmem:[%s4105 + $0x270] sm:$0xf]
        %v4263 = vld [vmem:[%s4105 + $0x274] sm:$0xf]
        %v4264 = vld [vmem:[%s4105 + $0x278] sm:$0xf]
        %v4265 = vld [vmem:[%s4105 + $0x27c] sm:$0xf]
        %v4266 = vld [vmem:[%s4105 + $0x280] sm:$0xf]
        %v4267 = vld [vmem:[%s4105 + $0x284] sm:$0xf]
        %v4268 = vld [vmem:[%s4105 + $0x288] sm:$0xf]
        %v4269 = vld [vmem:[%s4105 + $0x28c] sm:$0xf]
        %v4270 = vld [vmem:[%s4105 + $0x290] sm:$0xf]
        %v4271 = vld [vmem:[%s4105 + $0x294] sm:$0xf]
        %v4272 = vld [vmem:[%s4105 + $0x298] sm:$0xf]
        %v4273 = vld [vmem:[%s4105 + $0x29c] sm:$0xf]
        %v4274 = vld [vmem:[%s4105 + $0x2a0] sm:$0xf]
        %v4275 = vld [vmem:[%s4105 + $0x2a4] sm:$0xf]
        %v4276 = vld [vmem:[%s4105 + $0x2a8] sm:$0xf]
        %v4277 = vld [vmem:[%s4105 + $0x2ac] sm:$0xf]
        %v4278 = vld [vmem:[%s4105 + $0x2b0] sm:$0xf]
        %v4279 = vld [vmem:[%s4105 + $0x2b4] sm:$0xf]
        %v4280 = vld [vmem:[%s4105 + $0x2b8] sm:$0xf]
        %v4281 = vld [vmem:[%s4105 + $0x2bc] sm:$0xf]
        %v4282 = vld [vmem:[%s4105 + $0x2c0] sm:$0xf]
        %v4283 = vld [vmem:[%s4105 + $0x2c4] sm:$0xf]
        %v4284 = vld [vmem:[%s4105 + $0x2c8] sm:$0xf]
        %v4285 = vld [vmem:[%s4105 + $0x2cc] sm:$0xf]
        %v4286 = vld [vmem:[%s4105 + $0x2d0] sm:$0xf]
        %v4287 = vld [vmem:[%s4105 + $0x2d4] sm:$0xf]
        %v4288 = vld [vmem:[%s4105 + $0x2d8] sm:$0xf]
        %v4289 = vld [vmem:[%s4105 + $0x2dc] sm:$0xf]
        %v4290 = vld [vmem:[%s4105 + $0x2e0] sm:$0xf]
        %v4291 = vld [vmem:[%s4105 + $0x2e4] sm:$0xf]
        %v4292 = vld [vmem:[%s4105 + $0x2e8] sm:$0xf]
        %v4293 = vld [vmem:[%s4105 + $0x2ec] sm:$0xf]
        %v4294 = vld [vmem:[%s4105 + $0x2f0] sm:$0xf]
        %v4295 = vld [vmem:[%s4105 + $0x2f4] sm:$0xf]
        %v4296 = vld [vmem:[%s4105 + $0x2f8] sm:$0xf]
        %v4297 = vld [vmem:[%s4105 + $0x2fc] sm:$0xf]
        %v4298 = vld [vmem:[%s4105 + $0x300] sm:$0xf]
        %v4299 = vld [vmem:[%s4105 + $0x304] sm:$0xf]
        %v4300 = vld [vmem:[%s4105 + $0x308] sm:$0xf]
        %v4301 = vld [vmem:[%s4105 + $0x30c] sm:$0xf]
        %v4302 = vld [vmem:[%s4105 + $0x310] sm:$0xf]
        %v4303 = vld [vmem:[%s4105 + $0x314] sm:$0xf]
        %v4304 = vld [vmem:[%s4105 + $0x318] sm:$0xf]
        %v4305 = vld [vmem:[%s4105 + $0x31c] sm:$0xf]
        %v4306 = vld [vmem:[%s4105 + $0x320] sm:$0xf]
        %v4307 = vld [vmem:[%s4105 + $0x324] sm:$0xf]
        %v4308 = vld [vmem:[%s4105 + $0x328] sm:$0xf]
        %v4309 = vld [vmem:[%s4105 + $0x32c] sm:$0xf]
        %v4310 = vld [vmem:[%s4105 + $0x330] sm:$0xf]
        %v4311 = vld [vmem:[%s4105 + $0x334] sm:$0xf]
        %v4312 = vld [vmem:[%s4105 + $0x338] sm:$0xf]
        %v4313 = vld [vmem:[%s4105 + $0x33c] sm:$0xf]
        %v4314 = vld [vmem:[%s4105 + $0x340] sm:$0xf]
        %v4315 = vld [vmem:[%s4105 + $0x344] sm:$0xf]
        %v4316 = vld [vmem:[%s4105 + $0x348] sm:$0xf]
        %v4317 = vld [vmem:[%s4105 + $0x34c] sm:$0xf]
        %v4318 = vld [vmem:[%s4105 + $0x350] sm:$0xf]
        %v4319 = vld [vmem:[%s4105 + $0x354] sm:$0xf]
        %v4320 = vld [vmem:[%s4105 + $0x358] sm:$0xf]
        %v4321 = vld [vmem:[%s4105 + $0x35c] sm:$0xf]
        %v4322 = vld [vmem:[%s4105 + $0x360] sm:$0xf]
        %v4323 = vld [vmem:[%s4105 + $0x364] sm:$0xf]
        %v4324 = vld [vmem:[%s4105 + $0x368] sm:$0xf]
        %v4325 = vld [vmem:[%s4105 + $0x36c] sm:$0xf]
        %v4326 = vld [vmem:[%s4105 + $0x370] sm:$0xf]
        %v4327 = vld [vmem:[%s4105 + $0x374] sm:$0xf]
        %v4328 = vld [vmem:[%s4105 + $0x378] sm:$0xf]
        %v4329 = vld [vmem:[%s4105 + $0x37c] sm:$0xf]
        %v4330 = vld [vmem:[%s4105 + $0x380] sm:$0xf]
        %v4331 = vld [vmem:[%s4105 + $0x384] sm:$0xf]
        %v4332 = vld [vmem:[%s4105 + $0x388] sm:$0xf]
        %v4333 = vld [vmem:[%s4105 + $0x38c] sm:$0xf]
        %v4334 = vld [vmem:[%s4105 + $0x390] sm:$0xf]
        %v4335 = vld [vmem:[%s4105 + $0x394] sm:$0xf]
        %v4336 = vld [vmem:[%s4105 + $0x398] sm:$0xf]
        %v4337 = vld [vmem:[%s4105 + $0x39c] sm:$0xf]
        %v4338 = vld [vmem:[%s4105 + $0x3a0] sm:$0xf]
        %v4339 = vld [vmem:[%s4105 + $0x3a4] sm:$0xf]
        %v4340 = vld [vmem:[%s4105 + $0x3a8] sm:$0xf]
        %v4341 = vld [vmem:[%s4105 + $0x3ac] sm:$0xf]
        %v4342 = vld [vmem:[%s4105 + $0x3b0] sm:$0xf]
        %v4343 = vld [vmem:[%s4105 + $0x3b4] sm:$0xf]
        %v4344 = vld [vmem:[%s4105 + $0x3b8] sm:$0xf]
        %v4345 = vld [vmem:[%s4105 + $0x3bc] sm:$0xf]
        %v4346 = vld [vmem:[%s4105 + $0x3c0] sm:$0xf]
        %v4347 = vld [vmem:[%s4105 + $0x3c4] sm:$0xf]
        %v4348 = vld [vmem:[%s4105 + $0x3c8] sm:$0xf]
        %v4349 = vld [vmem:[%s4105 + $0x3cc] sm:$0xf]
        %v4350 = vld [vmem:[%s4105 + $0x3d0] sm:$0xf]
        %v4351 = vld [vmem:[%s4105 + $0x3d4] sm:$0xf]
        %v4352 = vld [vmem:[%s4105 + $0x3d8] sm:$0xf]
        %v4353 = vld [vmem:[%s4105 + $0x3dc] sm:$0xf]
        %v4354 = vld [vmem:[%s4105 + $0x3e0] sm:$0xf]
        %v4355 = vld [vmem:[%s4105 + $0x3e4] sm:$0xf]
        %v4356 = vld [vmem:[%s4105 + $0x3e8] sm:$0xf]
        %v4357 = vld [vmem:[%s4105 + $0x3ec] sm:$0xf]
        %v4358 = vld [vmem:[%s4105 + $0x3f0] sm:$0xf]
        %v4359 = vld [vmem:[%s4105 + $0x3f4] sm:$0xf]
        %v4360 = vld [vmem:[%s4105 + $0x3f8] sm:$0xf]
        %v4361 = vld [vmem:[%s4105 + $0x3fc] sm:$0xf]
        %v4362 = vpack.c.bf16 %v4089, %v4089
        %v4363 = vpack.c.bf16 %v4090, %v4090
        %v4364 = vpack.c.bf16 %v4091, %v4091
        %v4365 = vpack.c.bf16 %v4092, %v4092
        %v4366 = vpack.c.bf16 %v4093, %v4093
        %v4367 = vpack.c.bf16 %v4094, %v4094
        %v4368 = vpack.c.bf16 %v4095, %v4095
        %v4369 = vpack.c.bf16 %v4096, %v4096
        %v4370 = vpack.c.bf16 %v4097, %v4097
        %v4371 = vpack.c.bf16 %v4098, %v4098
        %v4372 = vpack.c.bf16 %v4099, %v4099
        %v4373 = vpack.c.bf16 %v4100, %v4100
        %v4374 = vpack.c.bf16 %v4101, %v4101
        %v4375 = vpack.c.bf16 %v4102, %v4102
        %v4376 = vpack.c.bf16 %v4103, %v4103
        %v4377 = vpack.c.bf16 %v4104, %v4104
        %s4378 = scalar_lea.vmem %s19, 1
        %v4379 = vld [vmem:[%s4378] sm:$0x1]
        %v4381 = vperm.slane %v4379, 0
        %v4639 = vunpack.c.l.b16 %v4106
        %v4640 = vunpack.c.l.b16 %v4107
        %v4641 = vunpack.c.l.b16 %v4108
        %v4642 = vunpack.c.l.b16 %v4109
        %v4643 = vunpack.c.l.b16 %v4110
        %v4644 = vunpack.c.l.b16 %v4111
        %v4645 = vunpack.c.l.b16 %v4112
        %v4646 = vunpack.c.l.b16 %v4113
        %v4647 = vunpack.c.l.b16 %v4114
        %v4648 = vunpack.c.l.b16 %v4115
        %v4649 = vunpack.c.l.b16 %v4116
        %v4650 = vunpack.c.l.b16 %v4117
        %v4651 = vunpack.c.l.b16 %v4118
        %v4652 = vunpack.c.l.b16 %v4119
        %v4653 = vunpack.c.l.b16 %v4120
        %v4654 = vunpack.c.l.b16 %v4121
        %v4655 = vunpack.c.l.b16 %v4122
        %v4656 = vunpack.c.l.b16 %v4123
        %v4657 = vunpack.c.l.b16 %v4124
        %v4658 = vunpack.c.l.b16 %v4125
        %v4659 = vunpack.c.l.b16 %v4126
        %v4660 = vunpack.c.l.b16 %v4127
        %v4661 = vunpack.c.l.b16 %v4128
        %v4662 = vunpack.c.l.b16 %v4129
        %v4663 = vunpack.c.l.b16 %v4130
        %v4664 = vunpack.c.l.b16 %v4131
        %v4665 = vunpack.c.l.b16 %v4132
        %v4666 = vunpack.c.l.b16 %v4133
        %v4667 = vunpack.c.l.b16 %v4134
        %v4668 = vunpack.c.l.b16 %v4135
        %v4669 = vunpack.c.l.b16 %v4136
        %v4670 = vunpack.c.l.b16 %v4137
        %v4671 = vunpack.c.l.b16 %v4138
        %v4672 = vunpack.c.l.b16 %v4139
        %v4673 = vunpack.c.l.b16 %v4140
        %v4674 = vunpack.c.l.b16 %v4141
        %v4675 = vunpack.c.l.b16 %v4142
        %v4676 = vunpack.c.l.b16 %v4143
        %v4677 = vunpack.c.l.b16 %v4144
        %v4678 = vunpack.c.l.b16 %v4145
        %v4679 = vunpack.c.l.b16 %v4146
        %v4680 = vunpack.c.l.b16 %v4147
        %v4681 = vunpack.c.l.b16 %v4148
        %v4682 = vunpack.c.l.b16 %v4149
        %v4683 = vunpack.c.l.b16 %v4150
        %v4684 = vunpack.c.l.b16 %v4151
        %v4685 = vunpack.c.l.b16 %v4152
        %v4686 = vunpack.c.l.b16 %v4153
        %v4687 = vunpack.c.l.b16 %v4154
        %v4688 = vunpack.c.l.b16 %v4155
        %v4689 = vunpack.c.l.b16 %v4156
        %v4690 = vunpack.c.l.b16 %v4157
        %v4691 = vunpack.c.l.b16 %v4158
        %v4692 = vunpack.c.l.b16 %v4159
        %v4693 = vunpack.c.l.b16 %v4160
        %v4694 = vunpack.c.l.b16 %v4161
        %v4695 = vunpack.c.l.b16 %v4162
        %v4696 = vunpack.c.l.b16 %v4163
        %v4697 = vunpack.c.l.b16 %v4164
        %v4698 = vunpack.c.l.b16 %v4165
        %v4699 = vunpack.c.l.b16 %v4166
        %v4700 = vunpack.c.l.b16 %v4167
        %v4701 = vunpack.c.l.b16 %v4168
        %v4702 = vunpack.c.l.b16 %v4169
        %v4703 = vunpack.c.l.b16 %v4170
        %v4704 = vunpack.c.l.b16 %v4171
        %v4705 = vunpack.c.l.b16 %v4172
        %v4706 = vunpack.c.l.b16 %v4173
        %v4707 = vunpack.c.l.b16 %v4174
        %v4708 = vunpack.c.l.b16 %v4175
        %v4709 = vunpack.c.l.b16 %v4176
        %v4710 = vunpack.c.l.b16 %v4177
        %v4711 = vunpack.c.l.b16 %v4178
        %v4712 = vunpack.c.l.b16 %v4179
        %v4713 = vunpack.c.l.b16 %v4180
        %v4714 = vunpack.c.l.b16 %v4181
        %v4715 = vunpack.c.l.b16 %v4182
        %v4716 = vunpack.c.l.b16 %v4183
        %v4717 = vunpack.c.l.b16 %v4184
        %v4718 = vunpack.c.l.b16 %v4185
        %v4719 = vunpack.c.l.b16 %v4186
        %v4720 = vunpack.c.l.b16 %v4187
        %v4721 = vunpack.c.l.b16 %v4188
        %v4722 = vunpack.c.l.b16 %v4189
        %v4723 = vunpack.c.l.b16 %v4190
        %v4724 = vunpack.c.l.b16 %v4191
        %v4725 = vunpack.c.l.b16 %v4192
        %v4726 = vunpack.c.l.b16 %v4193
        %v4727 = vunpack.c.l.b16 %v4194
        %v4728 = vunpack.c.l.b16 %v4195
        %v4729 = vunpack.c.l.b16 %v4196
        %v4730 = vunpack.c.l.b16 %v4197
        %v4731 = vunpack.c.l.b16 %v4198
        %v4732 = vunpack.c.l.b16 %v4199
        %v4733 = vunpack.c.l.b16 %v4200
        %v4734 = vunpack.c.l.b16 %v4201
        %v4735 = vunpack.c.l.b16 %v4202
        %v4736 = vunpack.c.l.b16 %v4203
        %v4737 = vunpack.c.l.b16 %v4204
        %v4738 = vunpack.c.l.b16 %v4205
        %v4739 = vunpack.c.l.b16 %v4206
        %v4740 = vunpack.c.l.b16 %v4207
        %v4741 = vunpack.c.l.b16 %v4208
        %v4742 = vunpack.c.l.b16 %v4209
        %v4743 = vunpack.c.l.b16 %v4210
        %v4744 = vunpack.c.l.b16 %v4211
        %v4745 = vunpack.c.l.b16 %v4212
        %v4746 = vunpack.c.l.b16 %v4213
        %v4747 = vunpack.c.l.b16 %v4214
        %v4748 = vunpack.c.l.b16 %v4215
        %v4749 = vunpack.c.l.b16 %v4216
        %v4750 = vunpack.c.l.b16 %v4217
        %v4751 = vunpack.c.l.b16 %v4218
        %v4752 = vunpack.c.l.b16 %v4219
        %v4753 = vunpack.c.l.b16 %v4220
        %v4754 = vunpack.c.l.b16 %v4221
        %v4755 = vunpack.c.l.b16 %v4222
        %v4756 = vunpack.c.l.b16 %v4223
        %v4757 = vunpack.c.l.b16 %v4224
        %v4758 = vunpack.c.l.b16 %v4225
        %v4759 = vunpack.c.l.b16 %v4226
        %v4760 = vunpack.c.l.b16 %v4227
        %v4761 = vunpack.c.l.b16 %v4228
        %v4762 = vunpack.c.l.b16 %v4229
        %v4763 = vunpack.c.l.b16 %v4230
        %v4764 = vunpack.c.l.b16 %v4231
        %v4765 = vunpack.c.l.b16 %v4232
        %v4766 = vunpack.c.l.b16 %v4233
        %v4767 = vunpack.c.l.b16 %v4234
        %v4768 = vunpack.c.l.b16 %v4235
        %v4769 = vunpack.c.l.b16 %v4236
        %v4770 = vunpack.c.l.b16 %v4237
        %v4771 = vunpack.c.l.b16 %v4238
        %v4772 = vunpack.c.l.b16 %v4239
        %v4773 = vunpack.c.l.b16 %v4240
        %v4774 = vunpack.c.l.b16 %v4241
        %v4775 = vunpack.c.l.b16 %v4242
        %v4776 = vunpack.c.l.b16 %v4243
        %v4777 = vunpack.c.l.b16 %v4244
        %v4778 = vunpack.c.l.b16 %v4245
        %v4779 = vunpack.c.l.b16 %v4246
        %v4780 = vunpack.c.l.b16 %v4247
        %v4781 = vunpack.c.l.b16 %v4248
        %v4782 = vunpack.c.l.b16 %v4249
        %v4783 = vunpack.c.l.b16 %v4250
        %v4784 = vunpack.c.l.b16 %v4251
        %v4785 = vunpack.c.l.b16 %v4252
        %v4786 = vunpack.c.l.b16 %v4253
        %v4787 = vunpack.c.l.b16 %v4254
        %v4788 = vunpack.c.l.b16 %v4255
        %v4789 = vunpack.c.l.b16 %v4256
        %v4790 = vunpack.c.l.b16 %v4257
        %v4791 = vunpack.c.l.b16 %v4258
        %v4792 = vunpack.c.l.b16 %v4259
        %v4793 = vunpack.c.l.b16 %v4260
        %v4794 = vunpack.c.l.b16 %v4261
        %v4795 = vunpack.c.l.b16 %v4262
        %v4796 = vunpack.c.l.b16 %v4263
        %v4797 = vunpack.c.l.b16 %v4264
        %v4798 = vunpack.c.l.b16 %v4265
        %v4799 = vunpack.c.l.b16 %v4266
        %v4800 = vunpack.c.l.b16 %v4267
        %v4801 = vunpack.c.l.b16 %v4268
        %v4802 = vunpack.c.l.b16 %v4269
        %v4803 = vunpack.c.l.b16 %v4270
        %v4804 = vunpack.c.l.b16 %v4271
        %v4805 = vunpack.c.l.b16 %v4272
        %v4806 = vunpack.c.l.b16 %v4273
        %v4807 = vunpack.c.l.b16 %v4274
        %v4808 = vunpack.c.l.b16 %v4275
        %v4809 = vunpack.c.l.b16 %v4276
        %v4810 = vunpack.c.l.b16 %v4277
        %v4811 = vunpack.c.l.b16 %v4278
        %v4812 = vunpack.c.l.b16 %v4279
        %v4813 = vunpack.c.l.b16 %v4280
        %v4814 = vunpack.c.l.b16 %v4281
        %v4815 = vunpack.c.l.b16 %v4282
        %v4816 = vunpack.c.l.b16 %v4283
        %v4817 = vunpack.c.l.b16 %v4284
        %v4818 = vunpack.c.l.b16 %v4285
        %v4819 = vunpack.c.l.b16 %v4286
        %v4820 = vunpack.c.l.b16 %v4287
        %v4821 = vunpack.c.l.b16 %v4288
        %v4822 = vunpack.c.l.b16 %v4289
        %v4823 = vunpack.c.l.b16 %v4290
        %v4824 = vunpack.c.l.b16 %v4291
        %v4825 = vunpack.c.l.b16 %v4292
        %v4826 = vunpack.c.l.b16 %v4293
        %v4827 = vunpack.c.l.b16 %v4294
        %v4828 = vunpack.c.l.b16 %v4295
        %v4829 = vunpack.c.l.b16 %v4296
        %v4830 = vunpack.c.l.b16 %v4297
        %v4831 = vunpack.c.l.b16 %v4298
        %v4832 = vunpack.c.l.b16 %v4299
        %v4833 = vunpack.c.l.b16 %v4300
        %v4834 = vunpack.c.l.b16 %v4301
        %v4835 = vunpack.c.l.b16 %v4302
        %v4836 = vunpack.c.l.b16 %v4303
        %v4837 = vunpack.c.l.b16 %v4304
        %v4838 = vunpack.c.l.b16 %v4305
        %v4839 = vunpack.c.l.b16 %v4306
        %v4840 = vunpack.c.l.b16 %v4307
        %v4841 = vunpack.c.l.b16 %v4308
        %v4842 = vunpack.c.l.b16 %v4309
        %v4843 = vunpack.c.l.b16 %v4310
        %v4844 = vunpack.c.l.b16 %v4311
        %v4845 = vunpack.c.l.b16 %v4312
        %v4846 = vunpack.c.l.b16 %v4313
        %v4847 = vunpack.c.l.b16 %v4314
        %v4848 = vunpack.c.l.b16 %v4315
        %v4849 = vunpack.c.l.b16 %v4316
        %v4850 = vunpack.c.l.b16 %v4317
        %v4851 = vunpack.c.l.b16 %v4318
        %v4852 = vunpack.c.l.b16 %v4319
        %v4853 = vunpack.c.l.b16 %v4320
        %v4854 = vunpack.c.l.b16 %v4321
        %v4855 = vunpack.c.l.b16 %v4322
        %v4856 = vunpack.c.l.b16 %v4323
        %v4857 = vunpack.c.l.b16 %v4324
        %v4858 = vunpack.c.l.b16 %v4325
        %v4859 = vunpack.c.l.b16 %v4326
        %v4860 = vunpack.c.l.b16 %v4327
        %v4861 = vunpack.c.l.b16 %v4328
        %v4862 = vunpack.c.l.b16 %v4329
        %v4863 = vunpack.c.l.b16 %v4330
        %v4864 = vunpack.c.l.b16 %v4331
        %v4865 = vunpack.c.l.b16 %v4332
        %v4866 = vunpack.c.l.b16 %v4333
        %v4867 = vunpack.c.l.b16 %v4334
        %v4868 = vunpack.c.l.b16 %v4335
        %v4869 = vunpack.c.l.b16 %v4336
        %v4870 = vunpack.c.l.b16 %v4337
        %v4871 = vunpack.c.l.b16 %v4338
        %v4872 = vunpack.c.l.b16 %v4339
        %v4873 = vunpack.c.l.b16 %v4340
        %v4874 = vunpack.c.l.b16 %v4341
        %v4875 = vunpack.c.l.b16 %v4342
        %v4876 = vunpack.c.l.b16 %v4343
        %v4877 = vunpack.c.l.b16 %v4344
        %v4878 = vunpack.c.l.b16 %v4345
        %v4879 = vunpack.c.l.b16 %v4346
        %v4880 = vunpack.c.l.b16 %v4347
        %v4881 = vunpack.c.l.b16 %v4348
        %v4882 = vunpack.c.l.b16 %v4349
        %v4883 = vunpack.c.l.b16 %v4350
        %v4884 = vunpack.c.l.b16 %v4351
        %v4885 = vunpack.c.l.b16 %v4352
        %v4886 = vunpack.c.l.b16 %v4353
        %v4887 = vunpack.c.l.b16 %v4354
        %v4888 = vunpack.c.l.b16 %v4355
        %v4889 = vunpack.c.l.b16 %v4356
        %v4890 = vunpack.c.l.b16 %v4357
        %v4891 = vunpack.c.l.b16 %v4358
        %v4892 = vunpack.c.l.b16 %v4359
        %v4893 = vunpack.c.l.b16 %v4360
        %v4894 = vunpack.c.l.b16 %v4361
        %v4895 = vpack.c.b16 %v4640, %v4639
        %v4896 = vpack.c.b16 %v4642, %v4641
        %v4897 = vpack.c.b16 %v4644, %v4643
        %v4898 = vpack.c.b16 %v4646, %v4645
        %v4899 = vpack.c.b16 %v4648, %v4647
        %v4900 = vpack.c.b16 %v4650, %v4649
        %v4901 = vpack.c.b16 %v4652, %v4651
        %v4902 = vpack.c.b16 %v4654, %v4653
        %v4903 = vpack.c.b16 %v4656, %v4655
        %v4904 = vpack.c.b16 %v4658, %v4657
        %v4905 = vpack.c.b16 %v4660, %v4659
        %v4906 = vpack.c.b16 %v4662, %v4661
        %v4907 = vpack.c.b16 %v4664, %v4663
        %v4908 = vpack.c.b16 %v4666, %v4665
        %v4909 = vpack.c.b16 %v4668, %v4667
        %v4910 = vpack.c.b16 %v4670, %v4669
        %v4911 = vpack.c.b16 %v4672, %v4671
        %v4912 = vpack.c.b16 %v4674, %v4673
        %v4913 = vpack.c.b16 %v4676, %v4675
        %v4914 = vpack.c.b16 %v4678, %v4677
        %v4915 = vpack.c.b16 %v4680, %v4679
        %v4916 = vpack.c.b16 %v4682, %v4681
        %v4917 = vpack.c.b16 %v4684, %v4683
        %v4918 = vpack.c.b16 %v4686, %v4685
        %v4919 = vpack.c.b16 %v4688, %v4687
        %v4920 = vpack.c.b16 %v4690, %v4689
        %v4921 = vpack.c.b16 %v4692, %v4691
        %v4922 = vpack.c.b16 %v4694, %v4693
        %v4923 = vpack.c.b16 %v4696, %v4695
        %v4924 = vpack.c.b16 %v4698, %v4697
        %v4925 = vpack.c.b16 %v4700, %v4699
        %v4926 = vpack.c.b16 %v4702, %v4701
        %v4927 = vpack.c.b16 %v4704, %v4703
        %v4928 = vpack.c.b16 %v4706, %v4705
        %v4929 = vpack.c.b16 %v4708, %v4707
        %v4930 = vpack.c.b16 %v4710, %v4709
        %v4931 = vpack.c.b16 %v4712, %v4711
        %v4932 = vpack.c.b16 %v4714, %v4713
        %v4933 = vpack.c.b16 %v4716, %v4715
        %v4934 = vpack.c.b16 %v4718, %v4717
        %v4935 = vpack.c.b16 %v4720, %v4719
        %v4936 = vpack.c.b16 %v4722, %v4721
        %v4937 = vpack.c.b16 %v4724, %v4723
        %v4938 = vpack.c.b16 %v4726, %v4725
        %v4939 = vpack.c.b16 %v4728, %v4727
        %v4940 = vpack.c.b16 %v4730, %v4729
        %v4941 = vpack.c.b16 %v4732, %v4731
        %v4942 = vpack.c.b16 %v4734, %v4733
        %v4943 = vpack.c.b16 %v4736, %v4735
        %v4944 = vpack.c.b16 %v4738, %v4737
        %v4945 = vpack.c.b16 %v4740, %v4739
        %v4946 = vpack.c.b16 %v4742, %v4741
        %v4947 = vpack.c.b16 %v4744, %v4743
        %v4948 = vpack.c.b16 %v4746, %v4745
        %v4949 = vpack.c.b16 %v4748, %v4747
        %v4950 = vpack.c.b16 %v4750, %v4749
        %v4951 = vpack.c.b16 %v4752, %v4751
        %v4952 = vpack.c.b16 %v4754, %v4753
        %v4953 = vpack.c.b16 %v4756, %v4755
        %v4954 = vpack.c.b16 %v4758, %v4757
        %v4955 = vpack.c.b16 %v4760, %v4759
        %v4956 = vpack.c.b16 %v4762, %v4761
        %v4957 = vpack.c.b16 %v4764, %v4763
        %v4958 = vpack.c.b16 %v4766, %v4765
        %v4959 = vpack.c.b16 %v4768, %v4767
        %v4960 = vpack.c.b16 %v4770, %v4769
        %v4961 = vpack.c.b16 %v4772, %v4771
        %v4962 = vpack.c.b16 %v4774, %v4773
        %v4963 = vpack.c.b16 %v4776, %v4775
        %v4964 = vpack.c.b16 %v4778, %v4777
        %v4965 = vpack.c.b16 %v4780, %v4779
        %v4966 = vpack.c.b16 %v4782, %v4781
        %v4967 = vpack.c.b16 %v4784, %v4783
        %v4968 = vpack.c.b16 %v4786, %v4785
        %v4969 = vpack.c.b16 %v4788, %v4787
        %v4970 = vpack.c.b16 %v4790, %v4789
        %v4971 = vpack.c.b16 %v4792, %v4791
        %v4972 = vpack.c.b16 %v4794, %v4793
        %v4973 = vpack.c.b16 %v4796, %v4795
        %v4974 = vpack.c.b16 %v4798, %v4797
        %v4975 = vpack.c.b16 %v4800, %v4799
        %v4976 = vpack.c.b16 %v4802, %v4801
        %v4977 = vpack.c.b16 %v4804, %v4803
        %v4978 = vpack.c.b16 %v4806, %v4805
        %v4979 = vpack.c.b16 %v4808, %v4807
        %v4980 = vpack.c.b16 %v4810, %v4809
        %v4981 = vpack.c.b16 %v4812, %v4811
        %v4982 = vpack.c.b16 %v4814, %v4813
        %v4983 = vpack.c.b16 %v4816, %v4815
        %v4984 = vpack.c.b16 %v4818, %v4817
        %v4985 = vpack.c.b16 %v4820, %v4819
        %v4986 = vpack.c.b16 %v4822, %v4821
        %v4987 = vpack.c.b16 %v4824, %v4823
        %v4988 = vpack.c.b16 %v4826, %v4825
        %v4989 = vpack.c.b16 %v4828, %v4827
        %v4990 = vpack.c.b16 %v4830, %v4829
        %v4991 = vpack.c.b16 %v4832, %v4831
        %v4992 = vpack.c.b16 %v4834, %v4833
        %v4993 = vpack.c.b16 %v4836, %v4835
        %v4994 = vpack.c.b16 %v4838, %v4837
        %v4995 = vpack.c.b16 %v4840, %v4839
        %v4996 = vpack.c.b16 %v4842, %v4841
        %v4997 = vpack.c.b16 %v4844, %v4843
        %v4998 = vpack.c.b16 %v4846, %v4845
        %v4999 = vpack.c.b16 %v4848, %v4847
        %v5000 = vpack.c.b16 %v4850, %v4849
        %v5001 = vpack.c.b16 %v4852, %v4851
        %v5002 = vpack.c.b16 %v4854, %v4853
        %v5003 = vpack.c.b16 %v4856, %v4855
        %v5004 = vpack.c.b16 %v4858, %v4857
        %v5005 = vpack.c.b16 %v4860, %v4859
        %v5006 = vpack.c.b16 %v4862, %v4861
        %v5007 = vpack.c.b16 %v4864, %v4863
        %v5008 = vpack.c.b16 %v4866, %v4865
        %v5009 = vpack.c.b16 %v4868, %v4867
        %v5010 = vpack.c.b16 %v4870, %v4869
        %v5011 = vpack.c.b16 %v4872, %v4871
        %v5012 = vpack.c.b16 %v4874, %v4873
        %v5013 = vpack.c.b16 %v4876, %v4875
        %v5014 = vpack.c.b16 %v4878, %v4877
        %v5015 = vpack.c.b16 %v4880, %v4879
        %v5016 = vpack.c.b16 %v4882, %v4881
        %v5017 = vpack.c.b16 %v4884, %v4883
        %v5018 = vpack.c.b16 %v4886, %v4885
        %v5019 = vpack.c.b16 %v4888, %v4887
        %v5020 = vpack.c.b16 %v4890, %v4889
        %v5021 = vpack.c.b16 %v4892, %v4891
        %v5022 = vpack.c.b16 %v4894, %v4893
        %5151 = vmatpush.bf16.msra.mxu0 %v4902
        %5152 = vmatpush.bf16.msra.mxu0 %v4901
        %5153 = vmatpush.bf16.msra.mxu0 %v4900
        %5154 = vmatpush.bf16.msra.mxu0 %v4899
        %5155 = vmatpush.bf16.msra.mxu0 %v4898
        %5156 = vmatpush.bf16.msra.mxu0 %v4897
        %5157 = vmatpush.bf16.msra.mxu0 %v4896
        %5158 = vmatpush.bf16.msra.mxu0 %v4895
        %5159 = vmatmul.bf16.gmra.mxu0 %v4362
        %v5160 = vpop.f32.mrf.mxu0
        %v5161 = vadd.f32 %v4381, %v5160
        %v5162 = vpop.f32.mrf.mxu0
        %5163 = vdwg.mxu0
        %5164 = vmatpush.bf16.msra.mxu0 %v4910
        %5165 = vmatpush.bf16.msra.mxu0 %v4909
        %5166 = vmatpush.bf16.msra.mxu0 %v4908
        %5167 = vmatpush.bf16.msra.mxu0 %v4907
        %5168 = vmatpush.bf16.msra.mxu0 %v4906
        %5169 = vmatpush.bf16.msra.mxu0 %v4905
        %5170 = vmatpush.bf16.msra.mxu0 %v4904
        %5171 = vmatpush.bf16.msra.mxu0 %v4903
        %5172 = vmatmul.bf16.gmra.mxu0 %v4363
        %v5173 = vpop.f32.mrf.mxu0
        %v5174 = vadd.f32 %v5161, %v5173
        %v5175 = vpop.f32.mrf.mxu0
        %5176 = vdwg.mxu0
        %5177 = vmatpush.bf16.msra.mxu0 %v4918
        %5178 = vmatpush.bf16.msra.mxu0 %v4917
        %5179 = vmatpush.bf16.msra.mxu0 %v4916
        %5180 = vmatpush.bf16.msra.mxu0 %v4915
        %5181 = vmatpush.bf16.msra.mxu0 %v4914
        %5182 = vmatpush.bf16.msra.mxu0 %v4913
        %5183 = vmatpush.bf16.msra.mxu0 %v4912
        %5184 = vmatpush.bf16.msra.mxu0 %v4911
        %5185 = vmatmul.bf16.gmra.mxu0 %v4364
        %v5186 = vpop.f32.mrf.mxu0
        %v5187 = vadd.f32 %v5174, %v5186
        %v5188 = vpop.f32.mrf.mxu0
        %5189 = vdwg.mxu0
        %5190 = vmatpush.bf16.msra.mxu0 %v4926
        %5191 = vmatpush.bf16.msra.mxu0 %v4925
        %5192 = vmatpush.bf16.msra.mxu0 %v4924
        %5193 = vmatpush.bf16.msra.mxu0 %v4923
        %5194 = vmatpush.bf16.msra.mxu0 %v4922
        %5195 = vmatpush.bf16.msra.mxu0 %v4921
        %5196 = vmatpush.bf16.msra.mxu0 %v4920
        %5197 = vmatpush.bf16.msra.mxu0 %v4919
        %5198 = vmatmul.bf16.gmra.mxu0 %v4365
        %v5199 = vpop.f32.mrf.mxu0
        %v5200 = vadd.f32 %v5187, %v5199
        %v5201 = vpop.f32.mrf.mxu0
        %5202 = vdwg.mxu0
        %5203 = vmatpush.bf16.msra.mxu0 %v4934
        %5204 = vmatpush.bf16.msra.mxu0 %v4933
        %5205 = vmatpush.bf16.msra.mxu0 %v4932
        %5206 = vmatpush.bf16.msra.mxu0 %v4931
        %5207 = vmatpush.bf16.msra.mxu0 %v4930
        %5208 = vmatpush.bf16.msra.mxu0 %v4929
        %5209 = vmatpush.bf16.msra.mxu0 %v4928
        %5210 = vmatpush.bf16.msra.mxu0 %v4927
        %5211 = vmatmul.bf16.gmra.mxu0 %v4366
        %v5212 = vpop.f32.mrf.mxu0
        %v5213 = vadd.f32 %v5200, %v5212
        %v5214 = vpop.f32.mrf.mxu0
        %5215 = vdwg.mxu0
        %5216 = vmatpush.bf16.msra.mxu0 %v4942
        %5217 = vmatpush.bf16.msra.mxu0 %v4941
        %5218 = vmatpush.bf16.msra.mxu0 %v4940
        %5219 = vmatpush.bf16.msra.mxu0 %v4939
        %5220 = vmatpush.bf16.msra.mxu0 %v4938
        %5221 = vmatpush.bf16.msra.mxu0 %v4937
        %5222 = vmatpush.bf16.msra.mxu0 %v4936
        %5223 = vmatpush.bf16.msra.mxu0 %v4935
        %5224 = vmatmul.bf16.gmra.mxu0 %v4367
        %v5225 = vpop.f32.mrf.mxu0
        %v5226 = vadd.f32 %v5213, %v5225
        %v5227 = vpop.f32.mrf.mxu0
        %5228 = vdwg.mxu0
        %5229 = vmatpush.bf16.msra.mxu0 %v4950
        %5230 = vmatpush.bf16.msra.mxu0 %v4949
        %5231 = vmatpush.bf16.msra.mxu0 %v4948
        %5232 = vmatpush.bf16.msra.mxu0 %v4947
        %5233 = vmatpush.bf16.msra.mxu0 %v4946
        %5234 = vmatpush.bf16.msra.mxu0 %v4945
        %5235 = vmatpush.bf16.msra.mxu0 %v4944
        %5236 = vmatpush.bf16.msra.mxu0 %v4943
        %5237 = vmatmul.bf16.gmra.mxu0 %v4368
        %v5238 = vpop.f32.mrf.mxu0
        %v5239 = vadd.f32 %v5226, %v5238
        %v5240 = vpop.f32.mrf.mxu0
        %5241 = vdwg.mxu0
        %5242 = vmatpush.bf16.msra.mxu0 %v4958
        %5243 = vmatpush.bf16.msra.mxu0 %v4957
        %5244 = vmatpush.bf16.msra.mxu0 %v4956
        %5245 = vmatpush.bf16.msra.mxu0 %v4955
        %5246 = vmatpush.bf16.msra.mxu0 %v4954
        %5247 = vmatpush.bf16.msra.mxu0 %v4953
        %5248 = vmatpush.bf16.msra.mxu0 %v4952
        %5249 = vmatpush.bf16.msra.mxu0 %v4951
        %5250 = vmatmul.bf16.gmra.mxu0 %v4369
        %v5251 = vpop.f32.mrf.mxu0
        %v5252 = vadd.f32 %v5239, %v5251
        %v5253 = vpop.f32.mrf.mxu0
        %5254 = vdwg.mxu0
        %5255 = vmatpush.bf16.msra.mxu0 %v4966
        %5256 = vmatpush.bf16.msra.mxu0 %v4965
        %5257 = vmatpush.bf16.msra.mxu0 %v4964
        %5258 = vmatpush.bf16.msra.mxu0 %v4963
        %5259 = vmatpush.bf16.msra.mxu0 %v4962
        %5260 = vmatpush.bf16.msra.mxu0 %v4961
        %5261 = vmatpush.bf16.msra.mxu0 %v4960
        %5262 = vmatpush.bf16.msra.mxu0 %v4959
        %5263 = vmatmul.bf16.gmra.mxu0 %v4370
        %v5264 = vpop.f32.mrf.mxu0
        %v5265 = vadd.f32 %v5252, %v5264
        %v5266 = vpop.f32.mrf.mxu0
        %5267 = vdwg.mxu0
        %5268 = vmatpush.bf16.msra.mxu0 %v4974
        %5269 = vmatpush.bf16.msra.mxu0 %v4973
        %5270 = vmatpush.bf16.msra.mxu0 %v4972
        %5271 = vmatpush.bf16.msra.mxu0 %v4971
        %5272 = vmatpush.bf16.msra.mxu0 %v4970
        %5273 = vmatpush.bf16.msra.mxu0 %v4969
        %5274 = vmatpush.bf16.msra.mxu0 %v4968
        %5275 = vmatpush.bf16.msra.mxu0 %v4967
        %5276 = vmatmul.bf16.gmra.mxu0 %v4371
        %v5277 = vpop.f32.mrf.mxu0
        %v5278 = vadd.f32 %v5265, %v5277
        %v5279 = vpop.f32.mrf.mxu0
        %5280 = vdwg.mxu0
        %5281 = vmatpush.bf16.msra.mxu0 %v4982
        %5282 = vmatpush.bf16.msra.mxu0 %v4981
        %5283 = vmatpush.bf16.msra.mxu0 %v4980
        %5284 = vmatpush.bf16.msra.mxu0 %v4979
        %5285 = vmatpush.bf16.msra.mxu0 %v4978
        %5286 = vmatpush.bf16.msra.mxu0 %v4977
        %5287 = vmatpush.bf16.msra.mxu0 %v4976
        %5288 = vmatpush.bf16.msra.mxu0 %v4975
        %5289 = vmatmul.bf16.gmra.mxu0 %v4372
        %v5290 = vpop.f32.mrf.mxu0
        %v5291 = vadd.f32 %v5278, %v5290
        %v5292 = vpop.f32.mrf.mxu0
        %5293 = vdwg.mxu0
        %5294 = vmatpush.bf16.msra.mxu0 %v4990
        %5295 = vmatpush.bf16.msra.mxu0 %v4989
        %5296 = vmatpush.bf16.msra.mxu0 %v4988
        %5297 = vmatpush.bf16.msra.mxu0 %v4987
        %5298 = vmatpush.bf16.msra.mxu0 %v4986
        %5299 = vmatpush.bf16.msra.mxu0 %v4985
        %5300 = vmatpush.bf16.msra.mxu0 %v4984
        %5301 = vmatpush.bf16.msra.mxu0 %v4983
        %5302 = vmatmul.bf16.gmra.mxu0 %v4373
        %v5303 = vpop.f32.mrf.mxu0
        %v5304 = vadd.f32 %v5291, %v5303
        %v5305 = vpop.f32.mrf.mxu0
        %5306 = vdwg.mxu0
        %5307 = vmatpush.bf16.msra.mxu0 %v4998
        %5308 = vmatpush.bf16.msra.mxu0 %v4997
        %5309 = vmatpush.bf16.msra.mxu0 %v4996
        %5310 = vmatpush.bf16.msra.mxu0 %v4995
        %5311 = vmatpush.bf16.msra.mxu0 %v4994
        %5312 = vmatpush.bf16.msra.mxu0 %v4993
        %5313 = vmatpush.bf16.msra.mxu0 %v4992
        %5314 = vmatpush.bf16.msra.mxu0 %v4991
        %5315 = vmatmul.bf16.gmra.mxu0 %v4374
        %v5316 = vpop.f32.mrf.mxu0
        %v5317 = vadd.f32 %v5304, %v5316
        %v5318 = vpop.f32.mrf.mxu0
        %5319 = vdwg.mxu0
        %5320 = vmatpush.bf16.msra.mxu0 %v5006
        %5321 = vmatpush.bf16.msra.mxu0 %v5005
        %5322 = vmatpush.bf16.msra.mxu0 %v5004
        %5323 = vmatpush.bf16.msra.mxu0 %v5003
        %5324 = vmatpush.bf16.msra.mxu0 %v5002
        %5325 = vmatpush.bf16.msra.mxu0 %v5001
        %5326 = vmatpush.bf16.msra.mxu0 %v5000
        %5327 = vmatpush.bf16.msra.mxu0 %v4999
        %5328 = vmatmul.bf16.gmra.mxu0 %v4375
        %v5329 = vpop.f32.mrf.mxu0
        %v5330 = vadd.f32 %v5317, %v5329
        %v5331 = vpop.f32.mrf.mxu0
        %5332 = vdwg.mxu0
        %5333 = vmatpush.bf16.msra.mxu0 %v5014
        %5334 = vmatpush.bf16.msra.mxu0 %v5013
        %5335 = vmatpush.bf16.msra.mxu0 %v5012
        %5336 = vmatpush.bf16.msra.mxu0 %v5011
        %5337 = vmatpush.bf16.msra.mxu0 %v5010
        %5338 = vmatpush.bf16.msra.mxu0 %v5009
        %5339 = vmatpush.bf16.msra.mxu0 %v5008
        %5340 = vmatpush.bf16.msra.mxu0 %v5007
        %5341 = vmatmul.bf16.gmra.mxu0 %v4376
        %v5342 = vpop.f32.mrf.mxu0
        %v5343 = vadd.f32 %v5330, %v5342
        %v5344 = vpop.f32.mrf.mxu0
        %5345 = vdwg.mxu0
        %5346 = vmatpush.bf16.msra.mxu0 %v5022
        %5347 = vmatpush.bf16.msra.mxu0 %v5021
        %5348 = vmatpush.bf16.msra.mxu0 %v5020
        %5349 = vmatpush.bf16.msra.mxu0 %v5019
        %5350 = vmatpush.bf16.msra.mxu0 %v5018
        %5351 = vmatpush.bf16.msra.mxu0 %v5017
        %5352 = vmatpush.bf16.msra.mxu0 %v5016
        %5353 = vmatpush.bf16.msra.mxu0 %v5015
        %5354 = vmatmul.bf16.gmra.mxu0 %v4377
        %v5355 = vpop.f32.mrf.mxu0
        %v5356 = vadd.f32 %v5343, %v5355
        %v5357 = vpop.f32.mrf.mxu0
        %5358 = vdwg.mxu0
        %v5359 = vadd.f32 %v3646, %v5356
        %s5360 = scalar_lea.vmem %s20, 1
        %v5361 = vld [vmem:[%s5360] sm:$0x1]
        %s5362 = scalar_lea.vmem %s21, 1
        %v5363 = vld [vmem:[%s5362] sm:$0x1]
        %v5364 = vsel %vm875, %v5359, 0.0
        %5365 = vadd.xlane.f32.xlu0 %v5364
        %v5366 = vpop.xlane.xlu0 %5365
        %v5367 = vmul.f32 %v5366, %v885
        %v5368 = vsub.f32 %v5359, %v5367
        %v5369 = vmul.f32 %v5368, %v5368
        %v5370 = vsel %vm875, %v5369, 0.0
        %5371 = vadd.xlane.f32.xlu0 %v5370
        %v5372 = vpop.xlane.xlu0 %5371
        %v5373 = vmul.f32 %v5372, %v885
        %v5374 = vadd.f32 %v5373, 1e-05
        %v5375 = vrsqrt.pop %v5374
        %v5376 = vmul.f32 %v5375, %v5374
        %v5377 = vmul.f32 %v5376, %v5375
        %v5378 = vmul.f32 0.5, %v5377
        %v5379 = vsub.f32 1.5, %v5378
        %v5380 = vmul.f32 %v5375, %v5379
        %vm5381 = vweird.f32 %v5374
        %vm5382 = vweird.f32 %v5375
        %vm5383 = vmor %vm5381, %vm5382
        %v5384 = vsel %vm5383, %v5375, %v5380
        %v5385 = vmul.f32 %v5368, %v5384
        %v5387 = vperm.slane %v5361, 0
        %v5389 = vmul.f32 %v5385, %v5387
        %v5391 = vperm.slane %v5363, 0
        %v5393 = vadd.f32 %v5389, %v5391
        %v5394 = vsel %vm875, %v5393, 0.0
        %v5395 = vrot.slane %v5394, 4
        %v5396 = vadd.f32 %v5394, %v5395
        %v5397 = vrot.slane %v5396, 2
        %v5398 = vadd.f32 %v5396, %v5397
        %v5399 = vrot.slane %v5398, 1
        %v5400 = vadd.f32 %v5398, %v5399
        %v5401 = vrcp.pop 4.0
        %v5402 = vmul.f32 4.0, %v5401
        %v5403 = vsub.f32 1.0, %v5402
        %v5404 = vmul.f32 %v5401, %v5403
        %v5405 = vadd.f32 %v5401, %v5404
        %vm5406 = vweird.f32 %v5401
        %v5407 = vsel %vm5406, %v5401, %v5405
        %v5408 = vmul.f32 %v5400, %v5407
        %v5409 = vld [vmem:[%s22] sm:$0xff]
        %v5410 = vld [vmem:[%s22 + $0x8] sm:$0xff]
        %v5411 = vld [vmem:[%s22 + $0x10] sm:$0xff]
        %v5412 = vld [vmem:[%s22 + $0x18] sm:$0xff]
        %v5413 = vld [vmem:[%s23] sm:$0x1]
        %v5415 = vsel %vm936, %v5408, 0
        %5417 = vmatpush.msra.mxu0 0.0
        %5418 = vmatpush.msra.mxu0 0.0
        %5419 = vmatpush.msra.mxu0 0.0
        %5420 = vmatpush.msra.mxu0 0.0
        %5421 = vmatpush.msra.mxu0 0.0
        %5422 = vmatpush.msra.mxu0 0.0
        %5423 = vmatpush.msra.mxu0 0.0
        %5424 = vmatpush.msra.mxu0 0.0
        %5425 = vmatpush.msra.mxu0 0.0
        %5426 = vmatpush.msra.mxu0 0.0
        %5427 = vmatpush.msra.mxu0 0.0
        %5428 = vmatpush.msra.mxu0 0.0
        %5429 = vmatpush.msra.mxu0 %v5412
        %5430 = vmatpush.msra.mxu0 %v5411
        %5431 = vmatpush.msra.mxu0 %v5410
        %5432 = vmatpush.msra.mxu0 %v5409
        %5433 = vmatmul.f32.gmra.mxu0 %v5415
        %v5434 = vpop.f32.mrf.mxu0
        %v5435 = vadd.f32 %v5413, %v5434
        %5436 = vdwg.mxu0
        %v5437 = vmax.f32 %v5435, 0.0
        %v5438 = vld [vmem:[%s24] sm:$0xff]
        %v5439 = vld [vmem:[%s24 + $0x8] sm:$0xff]
        %v5440 = vld [vmem:[%s24 + $0x10] sm:$0xff]
        %v5441 = vld [vmem:[%s24 + $0x18] sm:$0xff]
        %v5442 = vld [vmem:[%s24 + $0x20] sm:$0xff]
        %v5443 = vld [vmem:[%s24 + $0x28] sm:$0xff]
        %v5444 = vld [vmem:[%s24 + $0x30] sm:$0xff]
        %v5445 = vld [vmem:[%s24 + $0x38] sm:$0xff]
        %v5446 = vld [vmem:[%s24 + $0x40] sm:$0xff]
        %v5447 = vld [vmem:[%s24 + $0x48] sm:$0xff]
        %v5448 = vld [vmem:[%s24 + $0x50] sm:$0xff]
        %v5449 = vld [vmem:[%s24 + $0x58] sm:$0xff]
        %v5450 = vld [vmem:[%s24 + $0x60] sm:$0xff]
        %v5451 = vld [vmem:[%s24 + $0x68] sm:$0xff]
        %v5452 = vld [vmem:[%s24 + $0x70] sm:$0xff]
        %v5453 = vld [vmem:[%s24 + $0x78] sm:$0xff]
        %v5454 = vld [vmem:[%s25] sm:$0x1]
        %5455 = vmatpush.msra.mxu0 %v5453
        %5456 = vmatpush.msra.mxu0 %v5452
        %5457 = vmatpush.msra.mxu0 %v5451
        %5458 = vmatpush.msra.mxu0 %v5450
        %5459 = vmatpush.msra.mxu0 %v5449
        %5460 = vmatpush.msra.mxu0 %v5448
        %5461 = vmatpush.msra.mxu0 %v5447
        %5462 = vmatpush.msra.mxu0 %v5446
        %5463 = vmatpush.msra.mxu0 %v5445
        %5464 = vmatpush.msra.mxu0 %v5444
        %5465 = vmatpush.msra.mxu0 %v5443
        %5466 = vmatpush.msra.mxu0 %v5442
        %5467 = vmatpush.msra.mxu0 %v5441
        %5468 = vmatpush.msra.mxu0 %v5440
        %5469 = vmatpush.msra.mxu0 %v5439
        %5470 = vmatpush.msra.mxu0 %v5438
        %5471 = vmatmul.f32.gmra.mxu0 %v5437
        %v5472 = vpop.f32.mrf.mxu0
        %v5473 = vadd.f32 %v5454, %v5472
        %5474 = vdwg.mxu0
        %5475 = vst [vmem:[%s783] sm:$0x1] %v5473
        %s5476 = sand.u32 %s599, 1
        %s5477 = scalar_lea.sflag [#allocation3], %s5476
        %s5478 = sand.u32 %s599, 1
        %s5479 = scalar_lea.vmem [#allocation2], %s5478
        // Predicated region
        $region125: #{tpu_custom_call.1} parent=123 // pred_check
          %p5480 = pneg %p609
        $region126: #{tpu_custom_call.1} parent=123 // pred_check_branch
          %5482 = sbr.rel (%p5480) target = $region128
        $region127: #{tpu_custom_call.1} parent=123 // pred_region
          %5484 = vsyncadd %s5477, 0
          %s5485 = scalar_lea.hbm %s26, %s40
          %s5487 = sshll.u32 %s5479, 4
          %s5488 = int_to_ptr.vmem [resolvable:$true] %s5487
          %s5489 = sshll.u32 %s5485, 4
          %s5490 = int_to_ptr.hbm [resolvable:$true] %s5489
          %5492 = dma.vmem_to_hbm [thread:$0]  %s5488, 16, %s5490, %s5477
        $region128: #{tpu_custom_call.1} parent=123 // pred_fallthru
          _
      $region124: #{tpu_custom_call.1} parent=5 // pred_fallthru
        _
      %p5493 = scmp.le.s32.totalorder 2, %s35
      // Predicated region
      $region129: #{tpu_custom_call.1} parent=5 // pred_check
        %p5494 = pneg %p5493
      $region130: #{tpu_custom_call.1} parent=5 // pred_check_branch
        %5496 = sbr.rel (%p5494) target = $region132
      $region131: #{tpu_custom_call.1} parent=5 // pred_region
        %s5497 = ssub.s32 %s35, 2
        // Predicated region
        $region133: #{tpu_custom_call.1} parent=131 // pred_check
          %p5498 = pneg %p615
        $region134: #{tpu_custom_call.1} parent=131 // pred_check_branch
          %5500 = sbr.rel (%p5498) target = $region136
        $region135: #{tpu_custom_call.1} parent=131 // pred_region
          %s5501 = sand.u32 %s600, 1
          %s5502 = scalar_lea.sflag [#allocation3], %s5501
          %s5503 = sand.u32 %s600, 1
          %s5504 = scalar_lea.vmem [#allocation2], %s5503
          %5506 = dma.done %s5502, 16
        $region136: #{tpu_custom_call.1} parent=131 // pred_fallthru
          _
      $region132: #{tpu_custom_call.1} parent=5 // pred_fallthru
        _
    $region6: #{tpu_custom_call.1} parent=1 // loop_footer
      %s39 = sadd.s32 1, %s35
    $region7: #{tpu_custom_call.1} parent=1 // loop_footer_branch
      %34 = sbr.rel target = $region3
    $region8: #{tpu_custom_call.1} parent=1 // loop_exit
      _
    %5507 = vsyncpa [#allocation3], 1
    %s5508 = scalar_lea.sflag [#allocation3], 1
    %5509 = vsyncpa %s5508, 1

</llo_original>
